<compile_context>
chip_gen: v7x
topology: tpu7x:2x2x1
jax: 0.10.0
libtpu: 0.0.40
codegen_flags: <defaults>
</compile_context>

<pallas_src>
import functools

import jax
import jax.numpy as jnp
from jax.experimental import pallas as pl
from jax.experimental.pallas import tpu as pltpu


# ----------------------------------------------------------------------------
# In-kernel helper: axis attention over axis 1 of a (G, L, C) tile, batched
# over axis 0.  Implements exactly the PyTorch H_/W_Attention math.
# ----------------------------------------------------------------------------
def _axis_attention_block(t, wqkv, bqkv, gamma, c8):
    G, L, C = t.shape
    cqkv = 2 * c8 + C

    # Fused Q/K/V projection: one (G*L, C) @ (C, 2*C8 + C) matmul.
    flat = t.reshape(G * L, C)
    qkv = jnp.dot(flat, wqkv, preferred_element_type=jnp.float32) + bqkv
    qkv = qkv.reshape(G, L, cqkv)
    q = qkv[:, :, :c8]              # (G, L, C8)
    k = qkv[:, :, c8:2 * c8]        # (G, L, C8)
    v = qkv[:, :, 2 * c8:]          # (G, L, C)

    # energy[g, i, j] = <q_{g,i}, k_{g,j}>  (batched over groups)
    energy = jnp.einsum('glc,gmc->glm', q, k,
                        preferred_element_type=jnp.float32)      # (G, L, L)

    # softmax over last axis (f32); reciprocal on the EUP slot.
    m = jnp.max(energy, axis=-1, keepdims=True)
    p = jnp.exp(energy - m)
    denom = jnp.sum(p, axis=-1, keepdims=True)
    p = p * pl.reciprocal(denom, approx=True)

    # out[g, i, c] = sum_j p[g, i, j] * v[g, j, c]
    out = jnp.einsum('glm,gmc->glc', p, v,
                     preferred_element_type=jnp.float32)         # (G, L, C)

    return gamma * out + t


# ----------------------------------------------------------------------------
# Fused R3Attention kernel: one batch element per grid step.
# Kernel-side layout: (W, H, C)  (lane dim = C).
# ----------------------------------------------------------------------------
def _r3_kernel(c8, gam_ref, x_ref,
               w1_ref, b1_ref, w2_ref, b2_ref, w3_ref, b3_ref, o_ref):
    x = x_ref[0]                                       # (W, H, C) f32

    # Stage 1: H-attention  (groups = W, attention axis = H)
    t = _axis_attention_block(x, w1_ref[...], b1_ref[...], gam_ref[0], c8)

    # Stage 2: W-attention  (groups = H, attention axis = W)
    t = jnp.transpose(t, (1, 0, 2))                    # (H, W, C)
    t = _axis_attention_block(t, w2_ref[...], b2_ref[...], gam_ref[1], c8)

    # Stage 3: H-attention
    t = jnp.transpose(t, (1, 0, 2))                    # (W, H, C)
    t = _axis_attention_block(t, w3_ref[...], b3_ref[...], gam_ref[2], c8)

    o_ref[0] = t


# ----------------------------------------------------------------------------
# Public wrapper: NCHW in, NCHW out (PyTorch convention).
# ----------------------------------------------------------------------------
def r3_attention(x_nchw, params, residual=False):
    B, C, H, W = x_nchw.shape
    c8 = C // 8
    cqkv = 2 * c8 + C

    def fuse(p):
        wq = jnp.asarray(p["wq"], jnp.float32)          # (C8, C)
        wk = jnp.asarray(p["wk"], jnp.float32)          # (C8, C)
        wv = jnp.asarray(p["wv"], jnp.float32)          # (C,  C)
        w = jnp.concatenate([wq.T, wk.T, wv.T], axis=1)  # (C, 2*C8 + C)
        b = jnp.concatenate([jnp.asarray(p["bq"], jnp.float32),
                             jnp.asarray(p["bk"], jnp.float32),
                             jnp.asarray(p["bv"], jnp.float32)]).reshape(1, cqkv)
        return w, b

    w1, b1 = fuse(params["h1"])
    w2, b2 = fuse(params["w"])
    w3, b3 = fuse(params["h2"])
    gammas = jnp.stack([jnp.asarray(params["h1"]["gamma"], jnp.float32).reshape(()),
                        jnp.asarray(params["w"]["gamma"], jnp.float32).reshape(()),
                        jnp.asarray(params["h2"]["gamma"], jnp.float32).reshape(())])

    # (B, C, H, W) -> (B, W, H, C): H-attention groups (W) lead, channels on lanes.
    x_k = jnp.transpose(x_nchw.astype(jnp.float32), (0, 3, 2, 1))   # (B, W, H, C)

    kernel = functools.partial(_r3_kernel, c8)

    out = pl.pallas_call(
        kernel,
        out_shape=jax.ShapeDtypeStruct((B, W, H, C), jnp.float32),
        grid=(B,),
        in_specs=[
            pl.BlockSpec(memory_space=pltpu.MemorySpace.SMEM),         # gammas (3,)
            pl.BlockSpec((1, W, H, C), lambda b: (b, 0, 0, 0)),        # x tile
            pl.BlockSpec((C, cqkv), lambda b: (0, 0)),                 # Wqkv stage 1
            pl.BlockSpec((1, cqkv), lambda b: (0, 0)),                 # bqkv stage 1
            pl.BlockSpec((C, cqkv), lambda b: (0, 0)),                 # Wqkv stage 2
            pl.BlockSpec((1, cqkv), lambda b: (0, 0)),                 # bqkv stage 2
            pl.BlockSpec((C, cqkv), lambda b: (0, 0)),                 # Wqkv stage 3
            pl.BlockSpec((1, cqkv), lambda b: (0, 0)),                 # bqkv stage 3
        ],
        out_specs=pl.BlockSpec((1, W, H, C), lambda b: (b, 0, 0, 0)),
        compiler_params=pltpu.CompilerParams(
            dimension_semantics=("parallel",)),
    )(gammas, x_k, w1, b1, w2, b2, w3, b3)

    out_nchw = jnp.transpose(out, (0, 3, 2, 1))                       # (B, C, H, W)
    if residual:
        out_nchw = x_nchw + out_nchw
    return out_nchw


# ----------------------------------------------------------------------------
# Pure-JAX reference (for correctness check)
# ----------------------------------------------------------------------------
def _ref_axis_attention(xr, p):
    q = xr @ p["wq"].T + p["bq"]
    k = xr @ p["wk"].T + p["bk"]
    v = xr @ p["wv"].T + p["bv"]
    e = jnp.einsum("gic,gjc->gij", q, k)
    a = jax.nn.softmax(e, axis=-1)
    out = jnp.einsum("gij,gjc->gic", a, v)
    return p["gamma"] * out + xr


def _ref_h_attention(x, p):
    B, C, H, W = x.shape
    xr = jnp.transpose(x, (0, 3, 2, 1)).reshape(B * W, H, C)
    out = _ref_axis_attention(xr, p)
    return jnp.transpose(out.reshape(B, W, H, C), (0, 3, 2, 1))


def _ref_w_attention(x, p):
    B, C, H, W = x.shape
    xr = jnp.transpose(x, (0, 2, 3, 1)).reshape(B * H, W, C)
    out = _ref_axis_attention(xr, p)
    return jnp.transpose(out.reshape(B, H, W, C), (0, 3, 1, 2))


def _ref_r3(x, params, residual=False):
    y = _ref_h_attention(x, params["h1"])
    y = _ref_w_attention(y, params["w"])
    y = _ref_h_attention(y, params["h2"])
    if residual:
        y = x + y
    return y


# ----------------------------------------------------------------------------
# Deterministic parameter init (PyTorch inits gamma=0; use nonzero gamma so the
# attention path is actually exercised).
# ----------------------------------------------------------------------------
def init_attention_params(key, in_dim, gamma_val):
    c8 = in_dim // 8
    ks = jax.random.split(key, 6)
    scale = 0.1
    return {
        "wq": scale * jax.random.normal(ks[0], (c8, in_dim), jnp.float32),
        "bq": scale * jax.random.normal(ks[1], (c8,), jnp.float32),
        "wk": scale * jax.random.normal(ks[2], (c8, in_dim), jnp.float32),
        "bk": scale * jax.random.normal(ks[3], (c8,), jnp.float32),
        "wv": scale * jax.random.normal(ks[4], (in_dim, in_dim), jnp.float32),
        "bv": scale * jax.random.normal(ks[5], (in_dim,), jnp.float32),
        "gamma": jnp.float32(gamma_val),
    }


if __name__ == "__main__":
    key = jax.random.PRNGKey(0)
    k_x, k_h1, k_w, k_h2 = jax.random.split(key, 4)

    B, C, H, W = 2, 16, 8, 8          # in_dim=16 -> C//8 = 2
    x = jax.random.normal(k_x, (B, C, H, W), jnp.float32)

    params = {
        "h1": init_attention_params(k_h1, C, 0.3),
        "w":  init_attention_params(k_w,  C, 0.5),
        "h2": init_attention_params(k_h2, C, 0.7),
    }

    out = r3_attention(x, params, residual=False)
    out = jax.block_until_ready(out)

    ref = _ref_r3(x, params, residual=False)
    assert out.shape == (B, C, H, W)
    # Tolerance accounts for the approximate (EUP) reciprocal in the softmax.
    assert jnp.allclose(out, ref, atol=5e-3, rtol=5e-3), "mismatch vs reference"

    print("KERNEL_OK")
</pallas_src>

<mosaic_0001>
module attributes {stable_mosaic.version = 11 : i64} {
  func.func @_r3_kernel(%arg0: i32, %arg1: memref<3xf32, #tpu.memory_space<smem>>, %arg2: memref<1x8x8x16xf32, #tpu.memory_space<vmem>>, %arg3: memref<16x20xf32, #tpu.memory_space<vmem>>, %arg4: memref<1x20xf32, #tpu.memory_space<vmem>>, %arg5: memref<16x20xf32, #tpu.memory_space<vmem>>, %arg6: memref<1x20xf32, #tpu.memory_space<vmem>>, %arg7: memref<16x20xf32, #tpu.memory_space<vmem>>, %arg8: memref<1x20xf32, #tpu.memory_space<vmem>>, %arg9: memref<1x8x8x16xf32, #tpu.memory_space<vmem>>) attributes {dimension_semantics = [#tpu.dimension_semantics<parallel>], iteration_bounds = array<i64: 2>, scalar_prefetch = 0 : i64, scratch_operands = 0 : i64, tpu.core_type = #tpu.core_type<tc>, window_params = [{transform_indices = @transform_0, window_bounds = array<i64: 3>}, {transform_indices = @transform_1, window_bounds = array<i64: 1, 8, 8, 16>}, {pipeline_mode = #tpu.pipeline_mode<synchronous>, transform_indices = @transform_2, window_bounds = array<i64: 16, 20>}, {pipeline_mode = #tpu.pipeline_mode<synchronous>, transform_indices = @transform_3, window_bounds = array<i64: 1, 20>}, {pipeline_mode = #tpu.pipeline_mode<synchronous>, transform_indices = @transform_4, window_bounds = array<i64: 16, 20>}, {pipeline_mode = #tpu.pipeline_mode<synchronous>, transform_indices = @transform_5, window_bounds = array<i64: 1, 20>}, {pipeline_mode = #tpu.pipeline_mode<synchronous>, transform_indices = @transform_6, window_bounds = array<i64: 16, 20>}, {pipeline_mode = #tpu.pipeline_mode<synchronous>, transform_indices = @transform_7, window_bounds = array<i64: 1, 20>}, {transform_indices = @transform_8, window_bounds = array<i64: 1, 8, 8, 16>}]} {
    %c0 = arith.constant 0 : index
    %c0_0 = arith.constant 0 : index
    %c0_1 = arith.constant 0 : index
    %c0_2 = arith.constant 0 : index
    %0 = vector.load %arg2[%c0, %c0_0, %c0_1, %c0_2] : memref<1x8x8x16xf32, #tpu.memory_space<vmem>>, vector<1x8x8x16xf32>
    %1 = vector.shape_cast %0 : vector<1x8x8x16xf32> to vector<8x8x16xf32>
    %c0_3 = arith.constant 0 : index
    %c0_4 = arith.constant 0 : index
    %2 = vector.load %arg3[%c0_3, %c0_4] : memref<16x20xf32, #tpu.memory_space<vmem>>, vector<16x20xf32>
    %c0_5 = arith.constant 0 : index
    %c0_6 = arith.constant 0 : index
    %3 = vector.load %arg4[%c0_5, %c0_6] : memref<1x20xf32, #tpu.memory_space<vmem>>, vector<1x20xf32>
    %c0_7 = arith.constant 0 : index
    %4 = memref.load %arg1[%c0_7] : memref<3xf32, #tpu.memory_space<smem>>
    %5 = vector.shape_cast %1 : vector<8x8x16xf32> to vector<64x16xf32>
    %cst = arith.constant dense<0.000000e+00> : vector<64x20xf32>
    %6 = tpu.matmul %5, %2, %cst {dimension_numbers = #tpu.dot_dimension_numbers<[1], [0], [0], [1], [0, 0, 1, 1], [], []>} : vector<64x16xf32>, vector<16x20xf32>, vector<64x20xf32> -> vector<64x20xf32>
    %7 = vector.broadcast %3 : vector<1x20xf32> to vector<64x20xf32>
    %8 = arith.addf %6, %7 : vector<64x20xf32>
    %9 = vector.shape_cast %8 : vector<64x20xf32> to vector<8x8x20xf32>
    %10 = vector.extract_strided_slice %9 {offsets = [0, 0, 0], sizes = [8, 8, 2], strides = [1, 1, 1]} : vector<8x8x20xf32> to vector<8x8x2xf32>
    %11 = vector.extract_strided_slice %9 {offsets = [0, 0, 2], sizes = [8, 8, 2], strides = [1, 1, 1]} : vector<8x8x20xf32> to vector<8x8x2xf32>
    %12 = vector.extract_strided_slice %9 {offsets = [0, 0, 4], sizes = [8, 8, 16], strides = [1, 1, 1]} : vector<8x8x20xf32> to vector<8x8x16xf32>
    "tpu.trace_start"() <{level = 10 : i32, message = "glc,gmc->glm"}> : () -> ()
    %cst_8 = arith.constant dense<0.000000e+00> : vector<8x8x8xf32>
    %13 = tpu.matmul %10, %11, %cst_8 {dimension_numbers = #tpu.dot_dimension_numbers<[2], [2], [1], [1], [0, 0, 0, 1, 1, 1], [0], [0]>} : vector<8x8x2xf32>, vector<8x8x2xf32>, vector<8x8x8xf32> -> vector<8x8x8xf32>
    "tpu.trace_stop"() : () -> ()
    %cst_9 = arith.constant dense<0xFF800000> : vector<8x8xf32>
    %14 = vector.multi_reduction <maximumf>, %13, %cst_9 [2] : vector<8x8x8xf32> to vector<8x8xf32>
    %15 = vector.shape_cast %14 : vector<8x8xf32> to vector<8x8x1xf32>
    %16 = vector.broadcast %15 : vector<8x8x1xf32> to vector<8x8x8xf32>
    %17 = arith.subf %13, %16 : vector<8x8x8xf32>
    %18 = math.exp %17 : vector<8x8x8xf32>
    %cst_10 = arith.constant dense<0.000000e+00> : vector<8x8xf32>
    %19 = vector.multi_reduction <add>, %18, %cst_10 [2] : vector<8x8x8xf32> to vector<8x8xf32>
    %20 = vector.shape_cast %19 : vector<8x8xf32> to vector<8x8x1xf32>
    %21 = tpu.reciprocal %20 {approx = true} : vector<8x8x1xf32> -> vector<8x8x1xf32>
    %22 = vector.broadcast %21 : vector<8x8x1xf32> to vector<8x8x8xf32>
    %23 = arith.mulf %18, %22 : vector<8x8x8xf32>
    "tpu.trace_start"() <{level = 10 : i32, message = "glm,gmc->glc"}> : () -> ()
    %cst_11 = arith.constant dense<0.000000e+00> : vector<8x8x16xf32>
    %24 = tpu.matmul %23, %12, %cst_11 {dimension_numbers = #tpu.dot_dimension_numbers<[2], [1], [1], [2], [0, 0, 0, 1, 1, 2], [0], [0]>} : vector<8x8x8xf32>, vector<8x8x16xf32>, vector<8x8x16xf32> -> vector<8x8x16xf32>
    "tpu.trace_stop"() : () -> ()
    %25 = vector.broadcast %4 : f32 to vector<8x8x16xf32>
    %26 = arith.mulf %25, %24 : vector<8x8x16xf32>
    %27 = arith.addf %26, %1 : vector<8x8x16xf32>
    %28 = tpu.transpose %27, [1, 0, 2] : vector<8x8x16xf32> -> vector<8x8x16xf32>
    %c0_12 = arith.constant 0 : index
    %c0_13 = arith.constant 0 : index
    %29 = vector.load %arg5[%c0_12, %c0_13] : memref<16x20xf32, #tpu.memory_space<vmem>>, vector<16x20xf32>
    %c0_14 = arith.constant 0 : index
    %c0_15 = arith.constant 0 : index
    %30 = vector.load %arg6[%c0_14, %c0_15] : memref<1x20xf32, #tpu.memory_space<vmem>>, vector<1x20xf32>
    %c1 = arith.constant 1 : index
    %31 = memref.load %arg1[%c1] : memref<3xf32, #tpu.memory_space<smem>>
    %32 = vector.shape_cast %28 : vector<8x8x16xf32> to vector<64x16xf32>
    %cst_16 = arith.constant dense<0.000000e+00> : vector<64x20xf32>
    %33 = tpu.matmul %32, %29, %cst_16 {dimension_numbers = #tpu.dot_dimension_numbers<[1], [0], [0], [1], [0, 0, 1, 1], [], []>} : vector<64x16xf32>, vector<16x20xf32>, vector<64x20xf32> -> vector<64x20xf32>
    %34 = vector.broadcast %30 : vector<1x20xf32> to vector<64x20xf32>
    %35 = arith.addf %33, %34 : vector<64x20xf32>
    %36 = vector.shape_cast %35 : vector<64x20xf32> to vector<8x8x20xf32>
    %37 = vector.extract_strided_slice %36 {offsets = [0, 0, 0], sizes = [8, 8, 2], strides = [1, 1, 1]} : vector<8x8x20xf32> to vector<8x8x2xf32>
    %38 = vector.extract_strided_slice %36 {offsets = [0, 0, 2], sizes = [8, 8, 2], strides = [1, 1, 1]} : vector<8x8x20xf32> to vector<8x8x2xf32>
    %39 = vector.extract_strided_slice %36 {offsets = [0, 0, 4], sizes = [8, 8, 16], strides = [1, 1, 1]} : vector<8x8x20xf32> to vector<8x8x16xf32>
    "tpu.trace_start"() <{level = 10 : i32, message = "glc,gmc->glm"}> : () -> ()
    %cst_17 = arith.constant dense<0.000000e+00> : vector<8x8x8xf32>
    %40 = tpu.matmul %37, %38, %cst_17 {dimension_numbers = #tpu.dot_dimension_numbers<[2], [2], [1], [1], [0, 0, 0, 1, 1, 1], [0], [0]>} : vector<8x8x2xf32>, vector<8x8x2xf32>, vector<8x8x8xf32> -> vector<8x8x8xf32>
    "tpu.trace_stop"() : () -> ()
    %cst_18 = arith.constant dense<0xFF800000> : vector<8x8xf32>
    %41 = vector.multi_reduction <maximumf>, %40, %cst_18 [2] : vector<8x8x8xf32> to vector<8x8xf32>
    %42 = vector.shape_cast %41 : vector<8x8xf32> to vector<8x8x1xf32>
    %43 = vector.broadcast %42 : vector<8x8x1xf32> to vector<8x8x8xf32>
    %44 = arith.subf %40, %43 : vector<8x8x8xf32>
    %45 = math.exp %44 : vector<8x8x8xf32>
    %cst_19 = arith.constant dense<0.000000e+00> : vector<8x8xf32>
    %46 = vector.multi_reduction <add>, %45, %cst_19 [2] : vector<8x8x8xf32> to vector<8x8xf32>
    %47 = vector.shape_cast %46 : vector<8x8xf32> to vector<8x8x1xf32>
    %48 = tpu.reciprocal %47 {approx = true} : vector<8x8x1xf32> -> vector<8x8x1xf32>
    %49 = vector.broadcast %48 : vector<8x8x1xf32> to vector<8x8x8xf32>
    %50 = arith.mulf %45, %49 : vector<8x8x8xf32>
    "tpu.trace_start"() <{level = 10 : i32, message = "glm,gmc->glc"}> : () -> ()
    %cst_20 = arith.constant dense<0.000000e+00> : vector<8x8x16xf32>
    %51 = tpu.matmul %50, %39, %cst_20 {dimension_numbers = #tpu.dot_dimension_numbers<[2], [1], [1], [2], [0, 0, 0, 1, 1, 2], [0], [0]>} : vector<8x8x8xf32>, vector<8x8x16xf32>, vector<8x8x16xf32> -> vector<8x8x16xf32>
    "tpu.trace_stop"() : () -> ()
    %52 = vector.broadcast %31 : f32 to vector<8x8x16xf32>
    %53 = arith.mulf %52, %51 : vector<8x8x16xf32>
    %54 = arith.addf %53, %28 : vector<8x8x16xf32>
    %55 = tpu.transpose %54, [1, 0, 2] : vector<8x8x16xf32> -> vector<8x8x16xf32>
    %c0_21 = arith.constant 0 : index
    %c0_22 = arith.constant 0 : index
    %56 = vector.load %arg7[%c0_21, %c0_22] : memref<16x20xf32, #tpu.memory_space<vmem>>, vector<16x20xf32>
    %c0_23 = arith.constant 0 : index
    %c0_24 = arith.constant 0 : index
    %57 = vector.load %arg8[%c0_23, %c0_24] : memref<1x20xf32, #tpu.memory_space<vmem>>, vector<1x20xf32>
    %c2 = arith.constant 2 : index
    %58 = memref.load %arg1[%c2] : memref<3xf32, #tpu.memory_space<smem>>
    %59 = vector.shape_cast %55 : vector<8x8x16xf32> to vector<64x16xf32>
    %cst_25 = arith.constant dense<0.000000e+00> : vector<64x20xf32>
    %60 = tpu.matmul %59, %56, %cst_25 {dimension_numbers = #tpu.dot_dimension_numbers<[1], [0], [0], [1], [0, 0, 1, 1], [], []>} : vector<64x16xf32>, vector<16x20xf32>, vector<64x20xf32> -> vector<64x20xf32>
    %61 = vector.broadcast %57 : vector<1x20xf32> to vector<64x20xf32>
    %62 = arith.addf %60, %61 : vector<64x20xf32>
    %63 = vector.shape_cast %62 : vector<64x20xf32> to vector<8x8x20xf32>
    %64 = vector.extract_strided_slice %63 {offsets = [0, 0, 0], sizes = [8, 8, 2], strides = [1, 1, 1]} : vector<8x8x20xf32> to vector<8x8x2xf32>
    %65 = vector.extract_strided_slice %63 {offsets = [0, 0, 2], sizes = [8, 8, 2], strides = [1, 1, 1]} : vector<8x8x20xf32> to vector<8x8x2xf32>
    %66 = vector.extract_strided_slice %63 {offsets = [0, 0, 4], sizes = [8, 8, 16], strides = [1, 1, 1]} : vector<8x8x20xf32> to vector<8x8x16xf32>
    "tpu.trace_start"() <{level = 10 : i32, message = "glc,gmc->glm"}> : () -> ()
    %cst_26 = arith.constant dense<0.000000e+00> : vector<8x8x8xf32>
    %67 = tpu.matmul %64, %65, %cst_26 {dimension_numbers = #tpu.dot_dimension_numbers<[2], [2], [1], [1], [0, 0, 0, 1, 1, 1], [0], [0]>} : vector<8x8x2xf32>, vector<8x8x2xf32>, vector<8x8x8xf32> -> vector<8x8x8xf32>
    "tpu.trace_stop"() : () -> ()
    %cst_27 = arith.constant dense<0xFF800000> : vector<8x8xf32>
    %68 = vector.multi_reduction <maximumf>, %67, %cst_27 [2] : vector<8x8x8xf32> to vector<8x8xf32>
    %69 = vector.shape_cast %68 : vector<8x8xf32> to vector<8x8x1xf32>
    %70 = vector.broadcast %69 : vector<8x8x1xf32> to vector<8x8x8xf32>
    %71 = arith.subf %67, %70 : vector<8x8x8xf32>
    %72 = math.exp %71 : vector<8x8x8xf32>
    %cst_28 = arith.constant dense<0.000000e+00> : vector<8x8xf32>
    %73 = vector.multi_reduction <add>, %72, %cst_28 [2] : vector<8x8x8xf32> to vector<8x8xf32>
    %74 = vector.shape_cast %73 : vector<8x8xf32> to vector<8x8x1xf32>
    %75 = tpu.reciprocal %74 {approx = true} : vector<8x8x1xf32> -> vector<8x8x1xf32>
    %76 = vector.broadcast %75 : vector<8x8x1xf32> to vector<8x8x8xf32>
    %77 = arith.mulf %72, %76 : vector<8x8x8xf32>
    "tpu.trace_start"() <{level = 10 : i32, message = "glm,gmc->glc"}> : () -> ()
    %cst_29 = arith.constant dense<0.000000e+00> : vector<8x8x16xf32>
    %78 = tpu.matmul %77, %66, %cst_29 {dimension_numbers = #tpu.dot_dimension_numbers<[2], [1], [1], [2], [0, 0, 0, 1, 1, 2], [0], [0]>} : vector<8x8x8xf32>, vector<8x8x16xf32>, vector<8x8x16xf32> -> vector<8x8x16xf32>
    "tpu.trace_stop"() : () -> ()
    %79 = vector.broadcast %58 : f32 to vector<8x8x16xf32>
    %80 = arith.mulf %79, %78 : vector<8x8x16xf32>
    %81 = arith.addf %80, %55 : vector<8x8x16xf32>
    %c0_30 = arith.constant 0 : index
    %c0_31 = arith.constant 0 : index
    %c0_32 = arith.constant 0 : index
    %c0_33 = arith.constant 0 : index
    %82 = vector.load %arg9[%c0_30, %c0_31, %c0_32, %c0_33] : memref<1x8x8x16xf32, #tpu.memory_space<vmem>>, vector<1x8x8x16xf32>
    %83 = vector.shape_cast %82 : vector<1x8x8x16xf32> to vector<8x8x16xf32>
    %84 = vector.shape_cast %81 : vector<8x8x16xf32> to vector<1x8x8x16xf32>
    tpu.vector_store %arg9[%c0_30, %c0_31, %c0_32, %c0_33], %84 {strides = array<i32>} : memref<1x8x8x16xf32, #tpu.memory_space<vmem>>, vector<1x8x8x16xf32>,
    return
  }
  func.func @transform_0(%arg0: i32) -> i32 {
    %c0_i32 = arith.constant 0 : i32
    %c0_i32_0 = arith.constant 0 : i32
    return %c0_i32 : i32
  }
  func.func @transform_1(%arg0: i32) -> (i32, i32, i32, i32) {
    %c0_i32 = arith.constant 0 : i32
    %c0_i32_0 = arith.constant 0 : i32
    %c0_i32_1 = arith.constant 0 : i32
    %c0_i32_2 = arith.constant 0 : i32
    return %arg0, %c0_i32, %c0_i32_0, %c0_i32_1 : i32, i32, i32, i32
  }
  func.func @transform_2(%arg0: i32) -> (i32, i32) {
    %c0_i32 = arith.constant 0 : i32
    %c0_i32_0 = arith.constant 0 : i32
    %c0_i32_1 = arith.constant 0 : i32
    return %c0_i32, %c0_i32_0 : i32, i32
  }
  func.func @transform_3(%arg0: i32) -> (i32, i32) {
    %c0_i32 = arith.constant 0 : i32
    %c0_i32_0 = arith.constant 0 : i32
    %c0_i32_1 = arith.constant 0 : i32
    return %c0_i32, %c0_i32_0 : i32, i32
  }
  func.func @transform_4(%arg0: i32) -> (i32, i32) {
    %c0_i32 = arith.constant 0 : i32
    %c0_i32_0 = arith.constant 0 : i32
    %c0_i32_1 = arith.constant 0 : i32
    return %c0_i32, %c0_i32_0 : i32, i32
  }
  func.func @transform_5(%arg0: i32) -> (i32, i32) {
    %c0_i32 = arith.constant 0 : i32
    %c0_i32_0 = arith.constant 0 : i32
    %c0_i32_1 = arith.constant 0 : i32
    return %c0_i32, %c0_i32_0 : i32, i32
  }
  func.func @transform_6(%arg0: i32) -> (i32, i32) {
    %c0_i32 = arith.constant 0 : i32
    %c0_i32_0 = arith.constant 0 : i32
    %c0_i32_1 = arith.constant 0 : i32
    return %c0_i32, %c0_i32_0 : i32, i32
  }
  func.func @transform_7(%arg0: i32) -> (i32, i32) {
    %c0_i32 = arith.constant 0 : i32
    %c0_i32_0 = arith.constant 0 : i32
    %c0_i32_1 = arith.constant 0 : i32
    return %c0_i32, %c0_i32_0 : i32, i32
  }
  func.func @transform_8(%arg0: i32) -> (i32, i32, i32, i32) {
    %c0_i32 = arith.constant 0 : i32
    %c0_i32_0 = arith.constant 0 : i32
    %c0_i32_1 = arith.constant 0 : i32
    %c0_i32_2 = arith.constant 0 : i32
    return %arg0, %c0_i32, %c0_i32_0, %c0_i32_1 : i32, i32, i32, i32
  }
}

</mosaic_0001>

<llo_original>
// kernel: tpu_custom_call.1
$region0: #{tpu_custom_call.1}
  #allocation0 [shape = 'u32[]', space=smem, size = 0x4, offset = 0x4, fixed_abs, tag = 'smem constant byte address 0x4 - core index']
  #allocation1 [shape = 'u32[144,128]{1,0:T(1,128)}', space=vmem, size = 0x12000, scoped, tag = 'internal scratch']
  %s0 = inlined_call_operand.hbm [shape: f32[3], index: 0, kind: input, shape index: {}]
  %s1 = inlined_call_operand.hbm [shape: f32[2,8,8,16], index: 1, kind: input, shape index: {}]
  %s2 = inlined_call_operand.hbm [shape: f32[16,20], index: 2, kind: input, shape index: {}]
  %s3 = inlined_call_operand.vmem [shape: f32[1,20], index: 3, kind: input, shape index: {}]
  %s4 = inlined_call_operand.hbm [shape: f32[16,20], index: 4, kind: input, shape index: {}]
  %s5 = inlined_call_operand.vmem [shape: f32[1,20], index: 5, kind: input, shape index: {}]
  %s6 = inlined_call_operand.vmem [shape: f32[16,20], index: 6, kind: input, shape index: {}]
  %s7 = inlined_call_operand.vmem [shape: f32[1,20], index: 7, kind: input, shape index: {}]
  %s8 = inlined_call_operand.hbm [shape: f32[2,8,8,16], index: 8, kind: output, shape index: {}]
  %s9 = sld [smem:[#allocation0]]
  $region81: #{tpu_custom_call.1} parent=0
    _
  %s11 = ssub.s32 1, %s9
  %s12 = scalar_select 0, %s11, %s9
  $region1: #{tpu_custom_call.1} parent=0
    #allocation2 [shape = 'u8[512]{0}', space=smem, size = 0x200, scoped, tag = 'input window, operand 0, single buffered']
    #allocation3 [shape = 's32[2]{0}', space=sflag, size = 0x8, scoped, tag = 'scoped memory for tpu_custom_call.1']
    #allocation4 [shape = 's32[2]{0}', space=sflag, size = 0x8, scoped, tag = 'scoped memory for tpu_custom_call.1']
    #allocation5 [shape = 's32[2]{0}', space=sflag, size = 0x8, scoped, tag = 'scoped memory for tpu_custom_call.1']
    #allocation6 [shape = 'u8[65536]{0}', space=vmem, size = 0x10000, scoped, tag = 'input window, operand 1']
    #allocation7 [shape = 'u8[8192]{0}', space=vmem, size = 0x2000, scoped, tag = 'input window, operand 2, single buffered']
    #allocation8 [shape = 's32[1]{0}', space=sflag, size = 0x4, scoped, tag = 'scoped memory for tpu_custom_call.1']
    #allocation9 [shape = 'u8[8192]{0}', space=vmem, size = 0x2000, scoped, tag = 'input window, operand 4, single buffered']
    #allocation10 [shape = 'u8[65536]{0}', space=vmem, size = 0x10000, scoped, tag = 'output window, operand 0']
    %13 = vsyncpa [#allocation5], 0
    %14 = vsyncpa [#allocation3], 0
    %s15 = scalar_lea.sflag [#allocation3], 1
    %16 = vsyncpa %s15, 0
    %17 = vsyncpa [#allocation8], 0
    %18 = vsyncpa [#allocation4], 0
    %s19 = scalar_lea.sflag [#allocation4], 1
    %20 = vsyncpa %s19, 0
    loop: start=0, step=1, limit=4
    $region2: #{tpu_custom_call.1} parent=1 // loop_pre_header
      _
    $region3: #{tpu_custom_call.1} parent=1 // loop_header
      %s22 = sphi 0, %s26
      %p23 = scmp.ge.s32.totalorder %s22, 4
      %s30 = sphi 0, %s30
      %s32 = sphi 0, %s30
      %s33 = sphi 0, %s32
      %s47 = sphi 0, %s33
      %s53 = sphi 0, %s55
      %s56 = sphi 0, %s53
      %s57 = sphi 0, %s56
      %s73 = sphi 0, %s57
      %s77 = sphi 0, %s77
      %s79 = sphi 0, %s77
      %s80 = sphi 0, %s79
      %s94 = sphi 0, %s80
      %s98 = sphi 0, %s98
      %s100 = sphi 0, %s98
      %s101 = sphi 0, %s100
      %s115 = sphi 0, %s101
      %s119 = sphi 0, %s119
      %s121 = sphi 0, %s119
      %s122 = sphi 0, %s121
      %s136 = sphi 0, %s122
      %s140 = sphi 0, %s140
      %s142 = sphi 0, %s140
      %s143 = sphi 0, %s142
      %s157 = sphi 0, %s143
      %s161 = sphi 0, %s161
      %s163 = sphi 0, %s161
      %s164 = sphi 0, %s163
      %s178 = sphi 0, %s164
      %s182 = sphi 0, %s182
      %s184 = sphi 0, %s182
      %s185 = sphi 0, %s184
      %s199 = sphi 0, %s185
      %s205 = sphi 0, %s207
      %s208 = sphi 0, %s205
      %s209 = sphi 0, %s208
      %s225 = sphi 0, %s209
    $region4: #{tpu_custom_call.1} parent=1 // loop_header_branch
      %25 = sbr.rel (%p23) target = $region8
    $region5: #{tpu_custom_call.1} parent=1 // loop_body
      %s27 = ssub.s32 %s22, 1
      %s28 = ssub.s32 %s22, 2
      %s29 = sadd.s32 %s22, 1
      %s31 = sadd.s32 %s30, 1
      %p34 = scmp.eq.s32.totalorder %s22, 1
      %p35 = scmp.ne.s32.totalorder %s30, %s32
      %p36 = scmp.eq.s32.totalorder %s22, 0
      %p37 = por %p35, %p36
      %p38 = scmp.ne.s32.totalorder %s30, %s32
      %p39 = scmp.eq.s32.totalorder %s27, 1
      %p40 = por %p38, %p39
      %p41 = scmp.ne.s32.totalorder %s32, %s33
      %p42 = scmp.eq.s32.totalorder %s27, 0
      %p43 = por %p41, %p42
      %p44 = scmp.ne.s32.totalorder %s32, %s33
      %p45 = scmp.eq.s32.totalorder %s28, 1
      %p46 = por %p44, %p45
      %p48 = scmp.ne.s32.totalorder %s33, %s47
      %p49 = scmp.eq.s32.totalorder %s28, 0
      %p50 = por %p48, %p49
      %s51 = ssub.s32 %s22, %s29
      %p52 = scmp.eq.s32.totalorder %s51, 0
      %s54 = sadd.s32 %s53, 1
      %s55 = scalar_select %p52, %s53, %s54
      %p58 = pneg %p52
      %p59 = scmp.eq.s32.totalorder %s22, 1
      %p60 = por %p58, %p59
      %p61 = scmp.ne.s32.totalorder %s53, %s56
      %p62 = scmp.eq.s32.totalorder %s22, 0
      %p63 = por %p61, %p62
      %p64 = scmp.ne.s32.totalorder %s53, %s56
      %p65 = scmp.eq.s32.totalorder %s27, 1
      %p66 = por %p64, %p65
      %p67 = scmp.ne.s32.totalorder %s56, %s57
      %p68 = scmp.eq.s32.totalorder %s27, 0
      %p69 = por %p67, %p68
      %p70 = scmp.ne.s32.totalorder %s56, %s57
      %p71 = scmp.eq.s32.totalorder %s28, 1
      %p72 = por %p70, %p71
      %p74 = scmp.ne.s32.totalorder %s57, %s73
      %p75 = scmp.eq.s32.totalorder %s28, 0
      %p76 = por %p74, %p75
      %s78 = sadd.s32 %s77, 1
      %p81 = scmp.eq.s32.totalorder %s22, 1
      %p82 = scmp.ne.s32.totalorder %s77, %s79
      %p83 = scmp.eq.s32.totalorder %s22, 0
      %p84 = por %p82, %p83
      %p85 = scmp.ne.s32.totalorder %s77, %s79
      %p86 = scmp.eq.s32.totalorder %s27, 1
      %p87 = por %p85, %p86
      %p88 = scmp.ne.s32.totalorder %s79, %s80
      %p89 = scmp.eq.s32.totalorder %s27, 0
      %p90 = por %p88, %p89
      %p91 = scmp.ne.s32.totalorder %s79, %s80
      %p92 = scmp.eq.s32.totalorder %s28, 1
      %p93 = por %p91, %p92
      %p95 = scmp.ne.s32.totalorder %s80, %s94
      %p96 = scmp.eq.s32.totalorder %s28, 0
      %p97 = por %p95, %p96
      %s99 = sadd.s32 %s98, 1
      %p102 = scmp.eq.s32.totalorder %s22, 1
      %p103 = scmp.ne.s32.totalorder %s98, %s100
      %p104 = scmp.eq.s32.totalorder %s22, 0
      %p105 = por %p103, %p104
      %p106 = scmp.ne.s32.totalorder %s98, %s100
      %p107 = scmp.eq.s32.totalorder %s27, 1
      %p108 = por %p106, %p107
      %p109 = scmp.ne.s32.totalorder %s100, %s101
      %p110 = scmp.eq.s32.totalorder %s27, 0
      %p111 = por %p109, %p110
      %p112 = scmp.ne.s32.totalorder %s100, %s101
      %p113 = scmp.eq.s32.totalorder %s28, 1
      %p114 = por %p112, %p113
      %p116 = scmp.ne.s32.totalorder %s101, %s115
      %p117 = scmp.eq.s32.totalorder %s28, 0
      %p118 = por %p116, %p117
      %s120 = sadd.s32 %s119, 1
      %p123 = scmp.eq.s32.totalorder %s22, 1
      %p124 = scmp.ne.s32.totalorder %s119, %s121
      %p125 = scmp.eq.s32.totalorder %s22, 0
      %p126 = por %p124, %p125
      %p127 = scmp.ne.s32.totalorder %s119, %s121
      %p128 = scmp.eq.s32.totalorder %s27, 1
      %p129 = por %p127, %p128
      %p130 = scmp.ne.s32.totalorder %s121, %s122
      %p131 = scmp.eq.s32.totalorder %s27, 0
      %p132 = por %p130, %p131
      %p133 = scmp.ne.s32.totalorder %s121, %s122
      %p134 = scmp.eq.s32.totalorder %s28, 1
      %p135 = por %p133, %p134
      %p137 = scmp.ne.s32.totalorder %s122, %s136
      %p138 = scmp.eq.s32.totalorder %s28, 0
      %p139 = por %p137, %p138
      %s141 = sadd.s32 %s140, 1
      %p144 = scmp.eq.s32.totalorder %s22, 1
      %p145 = scmp.ne.s32.totalorder %s140, %s142
      %p146 = scmp.eq.s32.totalorder %s22, 0
      %p147 = por %p145, %p146
      %p148 = scmp.ne.s32.totalorder %s140, %s142
      %p149 = scmp.eq.s32.totalorder %s27, 1
      %p150 = por %p148, %p149
      %p151 = scmp.ne.s32.totalorder %s142, %s143
      %p152 = scmp.eq.s32.totalorder %s27, 0
      %p153 = por %p151, %p152
      %p154 = scmp.ne.s32.totalorder %s142, %s143
      %p155 = scmp.eq.s32.totalorder %s28, 1
      %p156 = por %p154, %p155
      %p158 = scmp.ne.s32.totalorder %s143, %s157
      %p159 = scmp.eq.s32.totalorder %s28, 0
      %p160 = por %p158, %p159
      %s162 = sadd.s32 %s161, 1
      %p165 = scmp.eq.s32.totalorder %s22, 1
      %p166 = scmp.ne.s32.totalorder %s161, %s163
      %p167 = scmp.eq.s32.totalorder %s22, 0
      %p168 = por %p166, %p167
      %p169 = scmp.ne.s32.totalorder %s161, %s163
      %p170 = scmp.eq.s32.totalorder %s27, 1
      %p171 = por %p169, %p170
      %p172 = scmp.ne.s32.totalorder %s163, %s164
      %p173 = scmp.eq.s32.totalorder %s27, 0
      %p174 = por %p172, %p173
      %p175 = scmp.ne.s32.totalorder %s163, %s164
      %p176 = scmp.eq.s32.totalorder %s28, 1
      %p177 = por %p175, %p176
      %p179 = scmp.ne.s32.totalorder %s164, %s178
      %p180 = scmp.eq.s32.totalorder %s28, 0
      %p181 = por %p179, %p180
      %s183 = sadd.s32 %s182, 1
      %p186 = scmp.eq.s32.totalorder %s22, 1
      %p187 = scmp.ne.s32.totalorder %s182, %s184
      %p188 = scmp.eq.s32.totalorder %s22, 0
      %p189 = por %p187, %p188
      %p190 = scmp.ne.s32.totalorder %s182, %s184
      %p191 = scmp.eq.s32.totalorder %s27, 1
      %p192 = por %p190, %p191
      %p193 = scmp.ne.s32.totalorder %s184, %s185
      %p194 = scmp.eq.s32.totalorder %s27, 0
      %p195 = por %p193, %p194
      %p196 = scmp.ne.s32.totalorder %s184, %s185
      %p197 = scmp.eq.s32.totalorder %s28, 1
      %p198 = por %p196, %p197
      %p200 = scmp.ne.s32.totalorder %s185, %s199
      %p201 = scmp.eq.s32.totalorder %s28, 0
      %p202 = por %p200, %p201
      %s203 = ssub.s32 %s22, %s29
      %p204 = scmp.eq.s32.totalorder %s203, 0
      %s206 = sadd.s32 %s205, 1
      %s207 = scalar_select %p204, %s205, %s206
      %p210 = pneg %p204
      %p211 = scmp.eq.s32.totalorder %s22, 1
      %p212 = por %p210, %p211
      %p213 = scmp.ne.s32.totalorder %s205, %s208
      %p214 = scmp.eq.s32.totalorder %s22, 0
      %p215 = por %p213, %p214
      %p216 = scmp.ne.s32.totalorder %s205, %s208
      %p217 = scmp.eq.s32.totalorder %s27, 1
      %p218 = por %p216, %p217
      %p219 = scmp.ne.s32.totalorder %s208, %s209
      %p220 = scmp.eq.s32.totalorder %s27, 0
      %p221 = por %p219, %p220
      %p222 = scmp.ne.s32.totalorder %s208, %s209
      %p223 = scmp.eq.s32.totalorder %s28, 1
      %p224 = por %p222, %p223
      %p226 = scmp.ne.s32.totalorder %s209, %s225
      %p227 = scmp.eq.s32.totalorder %s28, 0
      %p228 = por %p226, %p227
      %p229 = scmp.le.s32.totalorder 1, %s22
      %p230 = scmp.lt.s32.totalorder %s22, 3
      %p231 = pnand %p229, %p230
      %p232 = pneg %p231
      // Predicated region
      $region9: #{tpu_custom_call.1} parent=5 // pred_check
        _
      $region10: #{tpu_custom_call.1} parent=5 // pred_check_branch
        %234 = sbr.rel (%p231) target = $region12
      $region11: #{tpu_custom_call.1} parent=5 // pred_region
        %s235 = ssub.s32 %s22, 1
        // Predicated region
        $region13: #{tpu_custom_call.1} parent=11 // pred_check
          %p236 = pneg %p43
        $region14: #{tpu_custom_call.1} parent=11 // pred_check_branch
          %238 = sbr.rel (%p236) target = $region16
        $region15: #{tpu_custom_call.1} parent=11 // pred_region
          %s240 = ssub.s32 16, 16
          %241 = vsyncadd [#allocation5], %s240
          %244 = dma.hbm_to_smem %s0, 16, [#allocation2], [#allocation5]
        $region16: #{tpu_custom_call.1} parent=11 // pred_fallthru
          _
        // Predicated region
        $region17: #{tpu_custom_call.1} parent=11 // pred_check
          %p245 = pneg %p90
        $region18: #{tpu_custom_call.1} parent=11 // pred_check_branch
          %247 = sbr.rel (%p245) target = $region20
        $region19: #{tpu_custom_call.1} parent=11 // pred_region
          %s249 = ssub.s32 256, 256
          %250 = vsyncadd [#allocation8], %s249
          %s251 = sshll.u32 [#allocation7], 4
          %s252 = int_to_ptr.vmem [resolvable:$true] %s251
          %257 = dma.hbm_to_vmem [thread:$0]  %s2, 256, %s252, [#allocation8], 128, 128, 8
        $region20: #{tpu_custom_call.1} parent=11 // pred_fallthru
          _
        // Predicated region
        $region21: #{tpu_custom_call.1} parent=11 // pred_check
          %p258 = pneg %p111
        $region22: #{tpu_custom_call.1} parent=11 // pred_check_branch
          %260 = sbr.rel (%p258) target = $region24
        $region23: #{tpu_custom_call.1} parent=11 // pred_region
          _
        $region24: #{tpu_custom_call.1} parent=11 // pred_fallthru
          _
        // Predicated region
        $region25: #{tpu_custom_call.1} parent=11 // pred_check
          %p261 = pneg %p132
        $region26: #{tpu_custom_call.1} parent=11 // pred_check_branch
          %263 = sbr.rel (%p261) target = $region28
        $region27: #{tpu_custom_call.1} parent=11 // pred_region
          %s265 = ssub.s32 256, 256
          %266 = vsyncadd [#allocation8], %s265
          %s267 = sshll.u32 [#allocation9], 4
          %s268 = int_to_ptr.vmem [resolvable:$true] %s267
          %273 = dma.hbm_to_vmem [thread:$0]  %s4, 256, %s268, [#allocation8], 128, 128, 8
        $region28: #{tpu_custom_call.1} parent=11 // pred_fallthru
          _
        // Predicated region
        $region29: #{tpu_custom_call.1} parent=11 // pred_check
          %p274 = pneg %p153
        $region30: #{tpu_custom_call.1} parent=11 // pred_check_branch
          %276 = sbr.rel (%p274) target = $region32
        $region31: #{tpu_custom_call.1} parent=11 // pred_region
          _
        $region32: #{tpu_custom_call.1} parent=11 // pred_fallthru
          _
        // Predicated region
        $region33: #{tpu_custom_call.1} parent=11 // pred_check
          %p277 = pneg %p174
        $region34: #{tpu_custom_call.1} parent=11 // pred_check_branch
          %279 = sbr.rel (%p277) target = $region36
        $region35: #{tpu_custom_call.1} parent=11 // pred_region
          _
        $region36: #{tpu_custom_call.1} parent=11 // pred_fallthru
          _
        // Predicated region
        $region37: #{tpu_custom_call.1} parent=11 // pred_check
          %p280 = pneg %p195
        $region38: #{tpu_custom_call.1} parent=11 // pred_check_branch
          %282 = sbr.rel (%p280) target = $region40
        $region39: #{tpu_custom_call.1} parent=11 // pred_region
          _
        $region40: #{tpu_custom_call.1} parent=11 // pred_fallthru
          _
      $region12: #{tpu_custom_call.1} parent=5 // pred_fallthru
        _
      %p283 = scmp.lt.s32.totalorder %s22, 2
      // Predicated region
      $region41: #{tpu_custom_call.1} parent=5 // pred_check
        %p284 = pneg %p283
      $region42: #{tpu_custom_call.1} parent=5 // pred_check_branch
        %286 = sbr.rel (%p284) target = $region44
      $region43: #{tpu_custom_call.1} parent=5 // pred_region
        // Predicated region
        $region45: #{tpu_custom_call.1} parent=43 // pred_check
          %p287 = pneg %p63
        $region46: #{tpu_custom_call.1} parent=43 // pred_check_branch
          %289 = sbr.rel (%p287) target = $region48
        $region47: #{tpu_custom_call.1} parent=43 // pred_region
          %s290 = sand.u32 %s53, 1
          %s291 = scalar_lea.sflag [#allocation3], %s290
          %s292 = sand.u32 %s53, 1
          %s293 = smul.addr %s292, 64
          %s294 = scalar_lea.vmem [#allocation6], %s293
          %s296 = ssub.s32 1024, 1024
          %297 = vsyncadd %s291, %s296
          %s298 = smul.addr %s22, 8
          %s299 = smul.addr %s298, 128
          %s300 = scalar_lea.hbm %s1, %s299
          %s301 = sshll.u32 %s294, 4
          %s302 = int_to_ptr.vmem [resolvable:$true] %s301
          %307 = dma.hbm_to_vmem [thread:$0]  %s300, 1024, %s302, %s291, 128, 128, 8
        $region48: #{tpu_custom_call.1} parent=43 // pred_fallthru
          _
      $region44: #{tpu_custom_call.1} parent=5 // pred_fallthru
        _
      %p308 = scmp.le.s32.totalorder 1, %s22
      %p309 = scmp.lt.s32.totalorder %s22, 3
      %p310 = pnand %p308, %p309
      %p311 = pneg %p310
      // Predicated region
      $region49: #{tpu_custom_call.1} parent=5 // pred_check
        _
      $region50: #{tpu_custom_call.1} parent=5 // pred_check_branch
        %313 = sbr.rel (%p310) target = $region52
      $region51: #{tpu_custom_call.1} parent=5 // pred_region
        %s314 = ssub.s32 %s22, 1
        // Predicated region
        $region53: #{tpu_custom_call.1} parent=51 // pred_check
          %p315 = pneg %p43
        $region54: #{tpu_custom_call.1} parent=51 // pred_check_branch
          %317 = sbr.rel (%p315) target = $region56
        $region55: #{tpu_custom_call.1} parent=51 // pred_region
          %318 = dma.done [#allocation5], 16
        $region56: #{tpu_custom_call.1} parent=51 // pred_fallthru
          _
        %s319 = sand.u32 %s56, 1
        %s320 = scalar_lea.sflag [#allocation3], %s319
        %s321 = sand.u32 %s56, 1
        %s322 = smul.addr %s321, 64
        %s323 = scalar_lea.vmem [#allocation6], %s322
        // Predicated region
        $region57: #{tpu_custom_call.1} parent=51 // pred_check
          %p324 = pneg %p69
        $region58: #{tpu_custom_call.1} parent=51 // pred_check_branch
          %326 = sbr.rel (%p324) target = $region60
        $region59: #{tpu_custom_call.1} parent=51 // pred_region
          %327 = dma.done %s320, 1024
        $region60: #{tpu_custom_call.1} parent=51 // pred_fallthru
          _
        // Predicated region
        $region61: #{tpu_custom_call.1} parent=51 // pred_check
          %p328 = pneg %p90
        $region62: #{tpu_custom_call.1} parent=51 // pred_check_branch
          %330 = sbr.rel (%p328) target = $region64
        $region63: #{tpu_custom_call.1} parent=51 // pred_region
          %331 = dma.done [#allocation8], 256
        $region64: #{tpu_custom_call.1} parent=51 // pred_fallthru
          _
        // Predicated region
        $region65: #{tpu_custom_call.1} parent=51 // pred_check
          %p332 = pneg %p132
        $region66: #{tpu_custom_call.1} parent=51 // pred_check_branch
          %334 = sbr.rel (%p332) target = $region68
        $region67: #{tpu_custom_call.1} parent=51 // pred_region
          %335 = dma.done [#allocation8], 256
        $region68: #{tpu_custom_call.1} parent=51 // pred_fallthru
          _
        %336 = sfence
        %p337 = pneg %p43
        %p338 = pneg %p40
        %s339 = sand.u32 %s56, 1
        %s340 = scalar_lea.sflag [#allocation3], %s339
        %s341 = sand.u32 %s56, 1
        %s342 = smul.addr %s341, 64
        %s343 = scalar_lea.vmem [#allocation6], %s342
        %p344 = pneg %p69
        %p345 = pneg %p66
        %p346 = pneg %p90
        %p347 = pneg %p87
        %p348 = pneg %p111
        %p349 = pneg %p108
        %p350 = pneg %p132
        %p351 = pneg %p129
        %p352 = pneg %p153
        %p353 = pneg %p150
        %p354 = pneg %p174
        %p355 = pneg %p171
        %p356 = pneg %p195
        %p357 = pneg %p192
        %p358 = pneg %p221
        %p359 = pneg %p218
        %s360 = sand.u32 %s208, 1
        %s361 = scalar_lea.sflag [#allocation4], %s360
        %s362 = sand.u32 %s208, 1
        %s363 = smul.addr %s362, 64
        %s364 = scalar_lea.vmem [#allocation10], %s363
        %v365 = vld [vmem:[%s323] sm:$0xff]
        %v366 = vld [vmem:[%s323 + $0x8] sm:$0xff]
        %v367 = vld [vmem:[%s323 + $0x10] sm:$0xff]
        %v368 = vld [vmem:[%s323 + $0x18] sm:$0xff]
        %v369 = vld [vmem:[%s323 + $0x20] sm:$0xff]
        %v370 = vld [vmem:[%s323 + $0x28] sm:$0xff]
        %v371 = vld [vmem:[%s323 + $0x30] sm:$0xff]
        %v372 = vld [vmem:[%s323 + $0x38] sm:$0xff]
        %v373 = vld [vmem:[#allocation7] sm:$0xff]
        %v374 = vld [vmem:[#allocation7 + $0x8] sm:$0xff]
        %v375 = vld [vmem:[%s3] sm:$0x1]
        %s376 = sld [smem:[#allocation2]]
        %v378 = vlaneseq
        %v379 = vshrl.u32 %v378, 7
        %v380 = vsub.s32 0, %v379
        %v381 = vrot.slane %v375, %v380
        %vm383 = vcmask 130048
        %v385 = vsel %vm383, %v365, 0
        %v388 = vsel %vm383, %v366, 0
        %v391 = vsel %vm383, %v367, 0
        %v394 = vsel %vm383, %v368, 0
        %v397 = vsel %vm383, %v369, 0
        %v400 = vsel %vm383, %v370, 0
        %v403 = vsel %vm383, %v371, 0
        %v406 = vsel %vm383, %v372, 0
        %408 = vmatprep.subr.mxu0 0.0
        %409 = vmatpush1.msra.mxu0 %v373
        %410 = vmatprep.subr.mxu0 0.0
        %411 = vmatpush1.msra.mxu0 %v374
        %412 = vmatprep.subr.mxu0 0.0
        %413 = vmatpush1.msra.mxu0 0.0
        %414 = vmatprep.subr.mxu0 0.0
        %415 = vmatpush1.msra.mxu0 0.0
        %416 = vmatprep.subr.mxu0 0.0
        %417 = vmatpush1.msra.mxu0 0.0
        %418 = vmatprep.subr.mxu0 0.0
        %419 = vmatpush1.msra.mxu0 0.0
        %420 = vmatprep.subr.mxu0 0.0
        %421 = vmatpush1.msra.mxu0 0.0
        %422 = vmatprep.subr.mxu0 0.0
        %423 = vmatpush1.msra.mxu0 0.0
        %424 = vmatprep.subr.mxu0 0.0
        %425 = vmatpush1.msra.mxu0 0.0
        %426 = vmatprep.subr.mxu0 0.0
        %427 = vmatpush1.msra.mxu0 0.0
        %428 = vmatprep.subr.mxu0 0.0
        %429 = vmatpush1.msra.mxu0 0.0
        %430 = vmatprep.subr.mxu0 0.0
        %431 = vmatpush1.msra.mxu0 0.0
        %432 = vmatprep.subr.mxu0 0.0
        %433 = vmatpush1.msra.mxu0 0.0
        %434 = vmatprep.subr.mxu0 0.0
        %435 = vmatpush1.msra.mxu0 0.0
        %436 = vmatprep.subr.mxu0 0.0
        %437 = vmatpush1.msra.mxu0 0.0
        %438 = vmatprep.subr.mxu0 0.0
        %439 = vmatpush1.msra.mxu0 0.0
        %440 = vmatprep.subr.mxu0 0.0
        %441 = vmatpush1.msra.mxu0 0.0
        %442 = vmatprep.subr.mxu0 0.0
        %443 = vmatpush1.msra.mxu0 0.0
        %444 = vmatprep.subr.mxu0 0.0
        %445 = vmatpush1.msra.mxu0 0.0
        %446 = vmatprep.subr.mxu0 0.0
        %447 = vmatpush1.msra.mxu0 0.0
        %448 = vmatprep.subr.mxu0 0.0
        %449 = vmatpush1.msra.mxu0 0.0
        %450 = vmatprep.subr.mxu0 0.0
        %451 = vmatpush1.msra.mxu0 0.0
        %452 = vmatprep.subr.mxu0 0.0
        %453 = vmatpush1.msra.mxu0 0.0
        %454 = vmatprep.subr.mxu0 0.0
        %455 = vmatpush1.msra.mxu0 0.0
        %456 = vmatprep.subr.mxu0 0.0
        %457 = vmatpush1.msra.mxu0 0.0
        %458 = vmatprep.subr.mxu0 0.0
        %459 = vmatpush1.msra.mxu0 0.0
        %460 = vmatprep.subr.mxu0 0.0
        %461 = vmatpush1.msra.mxu0 0.0
        %462 = vmatprep.subr.mxu0 0.0
        %463 = vmatpush1.msra.mxu0 0.0
        %464 = vmatprep.subr.mxu0 0.0
        %465 = vmatpush1.msra.mxu0 0.0
        %466 = vmatprep.subr.mxu0 0.0
        %467 = vmatpush1.msra.mxu0 0.0
        %468 = vmatprep.subr.mxu0 0.0
        %469 = vmatpush1.msra.mxu0 0.0
        %470 = vmatprep.subr.mxu0 0.0
        %471 = vmatpush1.msra.mxu0 0.0
        %472 = vmatprep.mubr.f32.mxu0 0.0
        %473 = vmatmul.mubr.f32.gmra.mrb[0].mxu0 %v385
        %v474 = vpop.f32.mrb[0].mxu0
        %v475 = vadd.f32 %v381, %v474
        %v476 = vpop.f32.mrb[0].mxu0
        %477 = vmatprep.mubr.f32.mxu0 0.0
        %478 = vmatmul.mubr.f32.gmra.mrb[0].mxu0 %v388
        %v479 = vpop.f32.mrb[0].mxu0
        %v480 = vadd.f32 %v381, %v479
        %v481 = vpop.f32.mrb[0].mxu0
        %482 = vmatprep.mubr.f32.mxu0 0.0
        %483 = vmatmul.mubr.f32.gmra.mrb[0].mxu0 %v391
        %v484 = vpop.f32.mrb[0].mxu0
        %v485 = vadd.f32 %v381, %v484
        %v486 = vpop.f32.mrb[0].mxu0
        %487 = vmatprep.mubr.f32.mxu0 0.0
        %488 = vmatmul.mubr.f32.gmra.mrb[0].mxu0 %v394
        %v489 = vpop.f32.mrb[0].mxu0
        %v490 = vadd.f32 %v381, %v489
        %v491 = vpop.f32.mrb[0].mxu0
        %492 = vmatprep.mubr.f32.mxu0 0.0
        %493 = vmatmul.mubr.f32.gmra.mrb[0].mxu0 %v397
        %v494 = vpop.f32.mrb[0].mxu0
        %v495 = vadd.f32 %v381, %v494
        %v496 = vpop.f32.mrb[0].mxu0
        %497 = vmatprep.mubr.f32.mxu0 0.0
        %498 = vmatmul.mubr.f32.gmra.mrb[0].mxu0 %v400
        %v499 = vpop.f32.mrb[0].mxu0
        %v500 = vadd.f32 %v381, %v499
        %v501 = vpop.f32.mrb[0].mxu0
        %502 = vmatprep.mubr.f32.mxu0 0.0
        %503 = vmatmul.mubr.f32.gmra.mrb[0].mxu0 %v403
        %v504 = vpop.f32.mrb[0].mxu0
        %v505 = vadd.f32 %v381, %v504
        %v506 = vpop.f32.mrb[0].mxu0
        %507 = vmatprep.mubr.f32.mxu0 0.0
        %508 = vmatmul.mubr.f32.gmra.mrb[0].mxu0 %v406
        %v509 = vpop.f32.mrb[0].mxu0
        %v510 = vadd.f32 %v381, %v509
        %v511 = vpop.f32.mrb[0].mxu0
        %512 = vdwg.mxu0
        %514 = vrot.lane.b32.xlu0 %v475, 126
        %v515 = vpop.permute.xlu0 %514
        %vm516 = vcmask 15360
        %v517 = vsel %vm516, %v475, 0
        %v519 = vsel %vm516, %v515, 0
        %521 = vmatprep.subr.mxu0 0.0
        %522 = vmatpush1.xpose.msra.mxu0 %v519
        %523 = vmatprep.subr.mxu0 0.0
        %524 = vmatpush1.xpose.msra.mxu0 0.0
        %525 = vmatprep.subr.mxu0 0.0
        %526 = vmatpush1.xpose.msra.mxu0 0.0
        %527 = vmatprep.subr.mxu0 0.0
        %528 = vmatpush1.xpose.msra.mxu0 0.0
        %529 = vmatprep.subr.mxu0 0.0
        %530 = vmatpush1.xpose.msra.mxu0 0.0
        %531 = vmatprep.subr.mxu0 0.0
        %532 = vmatpush1.xpose.msra.mxu0 0.0
        %533 = vmatprep.subr.mxu0 0.0
        %534 = vmatpush1.xpose.msra.mxu0 0.0
        %535 = vmatprep.subr.mxu0 0.0
        %536 = vmatpush1.xpose.msra.mxu0 0.0
        %537 = vmatprep.subr.mxu0 0.0
        %538 = vmatpush1.xpose.msra.mxu0 0.0
        %539 = vmatprep.subr.mxu0 0.0
        %540 = vmatpush1.xpose.msra.mxu0 0.0
        %541 = vmatprep.subr.mxu0 0.0
        %542 = vmatpush1.xpose.msra.mxu0 0.0
        %543 = vmatprep.subr.mxu0 0.0
        %544 = vmatpush1.xpose.msra.mxu0 0.0
        %545 = vmatprep.subr.mxu0 0.0
        %546 = vmatpush1.xpose.msra.mxu0 0.0
        %547 = vmatprep.subr.mxu0 0.0
        %548 = vmatpush1.xpose.msra.mxu0 0.0
        %549 = vmatprep.subr.mxu0 0.0
        %550 = vmatpush1.xpose.msra.mxu0 0.0
        %551 = vmatprep.subr.mxu0 0.0
        %552 = vmatpush1.xpose.msra.mxu0 0.0
        %553 = vmatprep.subr.mxu0 0.0
        %554 = vmatpush1.xpose.msra.mxu0 0.0
        %555 = vmatprep.subr.mxu0 0.0
        %556 = vmatpush1.xpose.msra.mxu0 0.0
        %557 = vmatprep.subr.mxu0 0.0
        %558 = vmatpush1.xpose.msra.mxu0 0.0
        %559 = vmatprep.subr.mxu0 0.0
        %560 = vmatpush1.xpose.msra.mxu0 0.0
        %561 = vmatprep.subr.mxu0 0.0
        %562 = vmatpush1.xpose.msra.mxu0 0.0
        %563 = vmatprep.subr.mxu0 0.0
        %564 = vmatpush1.xpose.msra.mxu0 0.0
        %565 = vmatprep.subr.mxu0 0.0
        %566 = vmatpush1.xpose.msra.mxu0 0.0
        %567 = vmatprep.subr.mxu0 0.0
        %568 = vmatpush1.xpose.msra.mxu0 0.0
        %569 = vmatprep.subr.mxu0 0.0
        %570 = vmatpush1.xpose.msra.mxu0 0.0
        %571 = vmatprep.subr.mxu0 0.0
        %572 = vmatpush1.xpose.msra.mxu0 0.0
        %573 = vmatprep.subr.mxu0 0.0
        %574 = vmatpush1.xpose.msra.mxu0 0.0
        %575 = vmatprep.subr.mxu0 0.0
        %576 = vmatpush1.xpose.msra.mxu0 0.0
        %577 = vmatprep.subr.mxu0 0.0
        %578 = vmatpush1.xpose.msra.mxu0 0.0
        %579 = vmatprep.subr.mxu0 0.0
        %580 = vmatpush1.xpose.msra.mxu0 0.0
        %581 = vmatprep.subr.mxu0 0.0
        %582 = vmatpush1.xpose.msra.mxu0 0.0
        %583 = vmatprep.subr.mxu0 0.0
        %584 = vmatpush1.xpose.msra.mxu0 0.0
        %585 = vmatprep.mubr.f32.mxu0 0.0
        %586 = vmatmul.mubr.f32.gmra.mrb[0].mxu0 %v517
        %v587 = vpop.f32.mrb[0].mxu0
        %v588 = vadd.f32 0.0, %v587
        %v589 = vpop.f32.mrb[0].mxu0
        %590 = vdwg.mxu0
        %592 = vrot.lane.b32.xlu0 %v480, 126
        %v593 = vpop.permute.xlu0 %592
        %v594 = vsel %vm516, %v480, 0
        %v596 = vsel %vm516, %v593, 0
        %598 = vmatprep.subr.mxu0 0.0
        %599 = vmatpush1.xpose.msra.mxu0 %v596
        %600 = vmatprep.subr.mxu0 0.0
        %601 = vmatpush1.xpose.msra.mxu0 0.0
        %602 = vmatprep.subr.mxu0 0.0
        %603 = vmatpush1.xpose.msra.mxu0 0.0
        %604 = vmatprep.subr.mxu0 0.0
        %605 = vmatpush1.xpose.msra.mxu0 0.0
        %606 = vmatprep.subr.mxu0 0.0
        %607 = vmatpush1.xpose.msra.mxu0 0.0
        %608 = vmatprep.subr.mxu0 0.0
        %609 = vmatpush1.xpose.msra.mxu0 0.0
        %610 = vmatprep.subr.mxu0 0.0
        %611 = vmatpush1.xpose.msra.mxu0 0.0
        %612 = vmatprep.subr.mxu0 0.0
        %613 = vmatpush1.xpose.msra.mxu0 0.0
        %614 = vmatprep.subr.mxu0 0.0
        %615 = vmatpush1.xpose.msra.mxu0 0.0
        %616 = vmatprep.subr.mxu0 0.0
        %617 = vmatpush1.xpose.msra.mxu0 0.0
        %618 = vmatprep.subr.mxu0 0.0
        %619 = vmatpush1.xpose.msra.mxu0 0.0
        %620 = vmatprep.subr.mxu0 0.0
        %621 = vmatpush1.xpose.msra.mxu0 0.0
        %622 = vmatprep.subr.mxu0 0.0
        %623 = vmatpush1.xpose.msra.mxu0 0.0
        %624 = vmatprep.subr.mxu0 0.0
        %625 = vmatpush1.xpose.msra.mxu0 0.0
        %626 = vmatprep.subr.mxu0 0.0
        %627 = vmatpush1.xpose.msra.mxu0 0.0
        %628 = vmatprep.subr.mxu0 0.0
        %629 = vmatpush1.xpose.msra.mxu0 0.0
        %630 = vmatprep.subr.mxu0 0.0
        %631 = vmatpush1.xpose.msra.mxu0 0.0
        %632 = vmatprep.subr.mxu0 0.0
        %633 = vmatpush1.xpose.msra.mxu0 0.0
        %634 = vmatprep.subr.mxu0 0.0
        %635 = vmatpush1.xpose.msra.mxu0 0.0
        %636 = vmatprep.subr.mxu0 0.0
        %637 = vmatpush1.xpose.msra.mxu0 0.0
        %638 = vmatprep.subr.mxu0 0.0
        %639 = vmatpush1.xpose.msra.mxu0 0.0
        %640 = vmatprep.subr.mxu0 0.0
        %641 = vmatpush1.xpose.msra.mxu0 0.0
        %642 = vmatprep.subr.mxu0 0.0
        %643 = vmatpush1.xpose.msra.mxu0 0.0
        %644 = vmatprep.subr.mxu0 0.0
        %645 = vmatpush1.xpose.msra.mxu0 0.0
        %646 = vmatprep.subr.mxu0 0.0
        %647 = vmatpush1.xpose.msra.mxu0 0.0
        %648 = vmatprep.subr.mxu0 0.0
        %649 = vmatpush1.xpose.msra.mxu0 0.0
        %650 = vmatprep.subr.mxu0 0.0
        %651 = vmatpush1.xpose.msra.mxu0 0.0
        %652 = vmatprep.subr.mxu0 0.0
        %653 = vmatpush1.xpose.msra.mxu0 0.0
        %654 = vmatprep.subr.mxu0 0.0
        %655 = vmatpush1.xpose.msra.mxu0 0.0
        %656 = vmatprep.subr.mxu0 0.0
        %657 = vmatpush1.xpose.msra.mxu0 0.0
        %658 = vmatprep.subr.mxu0 0.0
        %659 = vmatpush1.xpose.msra.mxu0 0.0
        %660 = vmatprep.subr.mxu0 0.0
        %661 = vmatpush1.xpose.msra.mxu0 0.0
        %662 = vmatprep.mubr.f32.mxu0 0.0
        %663 = vmatmul.mubr.f32.gmra.mrb[0].mxu0 %v594
        %v664 = vpop.f32.mrb[0].mxu0
        %v665 = vadd.f32 0.0, %v664
        %v666 = vpop.f32.mrb[0].mxu0
        %667 = vdwg.mxu0
        %669 = vrot.lane.b32.xlu0 %v485, 126
        %v670 = vpop.permute.xlu0 %669
        %v671 = vsel %vm516, %v485, 0
        %v673 = vsel %vm516, %v670, 0
        %675 = vmatprep.subr.mxu0 0.0
        %676 = vmatpush1.xpose.msra.mxu0 %v673
        %677 = vmatprep.subr.mxu0 0.0
        %678 = vmatpush1.xpose.msra.mxu0 0.0
        %679 = vmatprep.subr.mxu0 0.0
        %680 = vmatpush1.xpose.msra.mxu0 0.0
        %681 = vmatprep.subr.mxu0 0.0
        %682 = vmatpush1.xpose.msra.mxu0 0.0
        %683 = vmatprep.subr.mxu0 0.0
        %684 = vmatpush1.xpose.msra.mxu0 0.0
        %685 = vmatprep.subr.mxu0 0.0
        %686 = vmatpush1.xpose.msra.mxu0 0.0
        %687 = vmatprep.subr.mxu0 0.0
        %688 = vmatpush1.xpose.msra.mxu0 0.0
        %689 = vmatprep.subr.mxu0 0.0
        %690 = vmatpush1.xpose.msra.mxu0 0.0
        %691 = vmatprep.subr.mxu0 0.0
        %692 = vmatpush1.xpose.msra.mxu0 0.0
        %693 = vmatprep.subr.mxu0 0.0
        %694 = vmatpush1.xpose.msra.mxu0 0.0
        %695 = vmatprep.subr.mxu0 0.0
        %696 = vmatpush1.xpose.msra.mxu0 0.0
        %697 = vmatprep.subr.mxu0 0.0
        %698 = vmatpush1.xpose.msra.mxu0 0.0
        %699 = vmatprep.subr.mxu0 0.0
        %700 = vmatpush1.xpose.msra.mxu0 0.0
        %701 = vmatprep.subr.mxu0 0.0
        %702 = vmatpush1.xpose.msra.mxu0 0.0
        %703 = vmatprep.subr.mxu0 0.0
        %704 = vmatpush1.xpose.msra.mxu0 0.0
        %705 = vmatprep.subr.mxu0 0.0
        %706 = vmatpush1.xpose.msra.mxu0 0.0
        %707 = vmatprep.subr.mxu0 0.0
        %708 = vmatpush1.xpose.msra.mxu0 0.0
        %709 = vmatprep.subr.mxu0 0.0
        %710 = vmatpush1.xpose.msra.mxu0 0.0
        %711 = vmatprep.subr.mxu0 0.0
        %712 = vmatpush1.xpose.msra.mxu0 0.0
        %713 = vmatprep.subr.mxu0 0.0
        %714 = vmatpush1.xpose.msra.mxu0 0.0
        %715 = vmatprep.subr.mxu0 0.0
        %716 = vmatpush1.xpose.msra.mxu0 0.0
        %717 = vmatprep.subr.mxu0 0.0
        %718 = vmatpush1.xpose.msra.mxu0 0.0
        %719 = vmatprep.subr.mxu0 0.0
        %720 = vmatpush1.xpose.msra.mxu0 0.0
        %721 = vmatprep.subr.mxu0 0.0
        %722 = vmatpush1.xpose.msra.mxu0 0.0
        %723 = vmatprep.subr.mxu0 0.0
        %724 = vmatpush1.xpose.msra.mxu0 0.0
        %725 = vmatprep.subr.mxu0 0.0
        %726 = vmatpush1.xpose.msra.mxu0 0.0
        %727 = vmatprep.subr.mxu0 0.0
        %728 = vmatpush1.xpose.msra.mxu0 0.0
        %729 = vmatprep.subr.mxu0 0.0
        %730 = vmatpush1.xpose.msra.mxu0 0.0
        %731 = vmatprep.subr.mxu0 0.0
        %732 = vmatpush1.xpose.msra.mxu0 0.0
        %733 = vmatprep.subr.mxu0 0.0
        %734 = vmatpush1.xpose.msra.mxu0 0.0
        %735 = vmatprep.subr.mxu0 0.0
        %736 = vmatpush1.xpose.msra.mxu0 0.0
        %737 = vmatprep.subr.mxu0 0.0
        %738 = vmatpush1.xpose.msra.mxu0 0.0
        %739 = vmatprep.mubr.f32.mxu0 0.0
        %740 = vmatmul.mubr.f32.gmra.mrb[0].mxu0 %v671
        %v741 = vpop.f32.mrb[0].mxu0
        %v742 = vadd.f32 0.0, %v741
        %v743 = vpop.f32.mrb[0].mxu0
        %744 = vdwg.mxu0
        %746 = vrot.lane.b32.xlu0 %v490, 126
        %v747 = vpop.permute.xlu0 %746
        %v748 = vsel %vm516, %v490, 0
        %v750 = vsel %vm516, %v747, 0
        %752 = vmatprep.subr.mxu0 0.0
        %753 = vmatpush1.xpose.msra.mxu0 %v750
        %754 = vmatprep.subr.mxu0 0.0
        %755 = vmatpush1.xpose.msra.mxu0 0.0
        %756 = vmatprep.subr.mxu0 0.0
        %757 = vmatpush1.xpose.msra.mxu0 0.0
        %758 = vmatprep.subr.mxu0 0.0
        %759 = vmatpush1.xpose.msra.mxu0 0.0
        %760 = vmatprep.subr.mxu0 0.0
        %761 = vmatpush1.xpose.msra.mxu0 0.0
        %762 = vmatprep.subr.mxu0 0.0
        %763 = vmatpush1.xpose.msra.mxu0 0.0
        %764 = vmatprep.subr.mxu0 0.0
        %765 = vmatpush1.xpose.msra.mxu0 0.0
        %766 = vmatprep.subr.mxu0 0.0
        %767 = vmatpush1.xpose.msra.mxu0 0.0
        %768 = vmatprep.subr.mxu0 0.0
        %769 = vmatpush1.xpose.msra.mxu0 0.0
        %770 = vmatprep.subr.mxu0 0.0
        %771 = vmatpush1.xpose.msra.mxu0 0.0
        %772 = vmatprep.subr.mxu0 0.0
        %773 = vmatpush1.xpose.msra.mxu0 0.0
        %774 = vmatprep.subr.mxu0 0.0
        %775 = vmatpush1.xpose.msra.mxu0 0.0
        %776 = vmatprep.subr.mxu0 0.0
        %777 = vmatpush1.xpose.msra.mxu0 0.0
        %778 = vmatprep.subr.mxu0 0.0
        %779 = vmatpush1.xpose.msra.mxu0 0.0
        %780 = vmatprep.subr.mxu0 0.0
        %781 = vmatpush1.xpose.msra.mxu0 0.0
        %782 = vmatprep.subr.mxu0 0.0
        %783 = vmatpush1.xpose.msra.mxu0 0.0
        %784 = vmatprep.subr.mxu0 0.0
        %785 = vmatpush1.xpose.msra.mxu0 0.0
        %786 = vmatprep.subr.mxu0 0.0
        %787 = vmatpush1.xpose.msra.mxu0 0.0
        %788 = vmatprep.subr.mxu0 0.0
        %789 = vmatpush1.xpose.msra.mxu0 0.0
        %790 = vmatprep.subr.mxu0 0.0
        %791 = vmatpush1.xpose.msra.mxu0 0.0
        %792 = vmatprep.subr.mxu0 0.0
        %793 = vmatpush1.xpose.msra.mxu0 0.0
        %794 = vmatprep.subr.mxu0 0.0
        %795 = vmatpush1.xpose.msra.mxu0 0.0
        %796 = vmatprep.subr.mxu0 0.0
        %797 = vmatpush1.xpose.msra.mxu0 0.0
        %798 = vmatprep.subr.mxu0 0.0
        %799 = vmatpush1.xpose.msra.mxu0 0.0
        %800 = vmatprep.subr.mxu0 0.0
        %801 = vmatpush1.xpose.msra.mxu0 0.0
        %802 = vmatprep.subr.mxu0 0.0
        %803 = vmatpush1.xpose.msra.mxu0 0.0
        %804 = vmatprep.subr.mxu0 0.0
        %805 = vmatpush1.xpose.msra.mxu0 0.0
        %806 = vmatprep.subr.mxu0 0.0
        %807 = vmatpush1.xpose.msra.mxu0 0.0
        %808 = vmatprep.subr.mxu0 0.0
        %809 = vmatpush1.xpose.msra.mxu0 0.0
        %810 = vmatprep.subr.mxu0 0.0
        %811 = vmatpush1.xpose.msra.mxu0 0.0
        %812 = vmatprep.subr.mxu0 0.0
        %813 = vmatpush1.xpose.msra.mxu0 0.0
        %814 = vmatprep.subr.mxu0 0.0
        %815 = vmatpush1.xpose.msra.mxu0 0.0
        %816 = vmatprep.mubr.f32.mxu0 0.0
        %817 = vmatmul.mubr.f32.gmra.mrb[0].mxu0 %v748
        %v818 = vpop.f32.mrb[0].mxu0
        %v819 = vadd.f32 0.0, %v818
        %v820 = vpop.f32.mrb[0].mxu0
        %821 = vdwg.mxu0
        %823 = vrot.lane.b32.xlu0 %v495, 126
        %v824 = vpop.permute.xlu0 %823
        %v825 = vsel %vm516, %v495, 0
        %v827 = vsel %vm516, %v824, 0
        %829 = vmatprep.subr.mxu0 0.0
        %830 = vmatpush1.xpose.msra.mxu0 %v827
        %831 = vmatprep.subr.mxu0 0.0
        %832 = vmatpush1.xpose.msra.mxu0 0.0
        %833 = vmatprep.subr.mxu0 0.0
        %834 = vmatpush1.xpose.msra.mxu0 0.0
        %835 = vmatprep.subr.mxu0 0.0
        %836 = vmatpush1.xpose.msra.mxu0 0.0
        %837 = vmatprep.subr.mxu0 0.0
        %838 = vmatpush1.xpose.msra.mxu0 0.0
        %839 = vmatprep.subr.mxu0 0.0
        %840 = vmatpush1.xpose.msra.mxu0 0.0
        %841 = vmatprep.subr.mxu0 0.0
        %842 = vmatpush1.xpose.msra.mxu0 0.0
        %843 = vmatprep.subr.mxu0 0.0
        %844 = vmatpush1.xpose.msra.mxu0 0.0
        %845 = vmatprep.subr.mxu0 0.0
        %846 = vmatpush1.xpose.msra.mxu0 0.0
        %847 = vmatprep.subr.mxu0 0.0
        %848 = vmatpush1.xpose.msra.mxu0 0.0
        %849 = vmatprep.subr.mxu0 0.0
        %850 = vmatpush1.xpose.msra.mxu0 0.0
        %851 = vmatprep.subr.mxu0 0.0
        %852 = vmatpush1.xpose.msra.mxu0 0.0
        %853 = vmatprep.subr.mxu0 0.0
        %854 = vmatpush1.xpose.msra.mxu0 0.0
        %855 = vmatprep.subr.mxu0 0.0
        %856 = vmatpush1.xpose.msra.mxu0 0.0
        %857 = vmatprep.subr.mxu0 0.0
        %858 = vmatpush1.xpose.msra.mxu0 0.0
        %859 = vmatprep.subr.mxu0 0.0
        %860 = vmatpush1.xpose.msra.mxu0 0.0
        %861 = vmatprep.subr.mxu0 0.0
        %862 = vmatpush1.xpose.msra.mxu0 0.0
        %863 = vmatprep.subr.mxu0 0.0
        %864 = vmatpush1.xpose.msra.mxu0 0.0
        %865 = vmatprep.subr.mxu0 0.0
        %866 = vmatpush1.xpose.msra.mxu0 0.0
        %867 = vmatprep.subr.mxu0 0.0
        %868 = vmatpush1.xpose.msra.mxu0 0.0
        %869 = vmatprep.subr.mxu0 0.0
        %870 = vmatpush1.xpose.msra.mxu0 0.0
        %871 = vmatprep.subr.mxu0 0.0
        %872 = vmatpush1.xpose.msra.mxu0 0.0
        %873 = vmatprep.subr.mxu0 0.0
        %874 = vmatpush1.xpose.msra.mxu0 0.0
        %875 = vmatprep.subr.mxu0 0.0
        %876 = vmatpush1.xpose.msra.mxu0 0.0
        %877 = vmatprep.subr.mxu0 0.0
        %878 = vmatpush1.xpose.msra.mxu0 0.0
        %879 = vmatprep.subr.mxu0 0.0
        %880 = vmatpush1.xpose.msra.mxu0 0.0
        %881 = vmatprep.subr.mxu0 0.0
        %882 = vmatpush1.xpose.msra.mxu0 0.0
        %883 = vmatprep.subr.mxu0 0.0
        %884 = vmatpush1.xpose.msra.mxu0 0.0
        %885 = vmatprep.subr.mxu0 0.0
        %886 = vmatpush1.xpose.msra.mxu0 0.0
        %887 = vmatprep.subr.mxu0 0.0
        %888 = vmatpush1.xpose.msra.mxu0 0.0
        %889 = vmatprep.subr.mxu0 0.0
        %890 = vmatpush1.xpose.msra.mxu0 0.0
        %891 = vmatprep.subr.mxu0 0.0
        %892 = vmatpush1.xpose.msra.mxu0 0.0
        %893 = vmatprep.mubr.f32.mxu0 0.0
        %894 = vmatmul.mubr.f32.gmra.mrb[0].mxu0 %v825
        %v895 = vpop.f32.mrb[0].mxu0
        %v896 = vadd.f32 0.0, %v895
        %v897 = vpop.f32.mrb[0].mxu0
        %898 = vdwg.mxu0
        %900 = vrot.lane.b32.xlu0 %v500, 126
        %v901 = vpop.permute.xlu0 %900
        %v902 = vsel %vm516, %v500, 0
        %v904 = vsel %vm516, %v901, 0
        %906 = vmatprep.subr.mxu0 0.0
        %907 = vmatpush1.xpose.msra.mxu0 %v904
        %908 = vmatprep.subr.mxu0 0.0
        %909 = vmatpush1.xpose.msra.mxu0 0.0
        %910 = vmatprep.subr.mxu0 0.0
        %911 = vmatpush1.xpose.msra.mxu0 0.0
        %912 = vmatprep.subr.mxu0 0.0
        %913 = vmatpush1.xpose.msra.mxu0 0.0
        %914 = vmatprep.subr.mxu0 0.0
        %915 = vmatpush1.xpose.msra.mxu0 0.0
        %916 = vmatprep.subr.mxu0 0.0
        %917 = vmatpush1.xpose.msra.mxu0 0.0
        %918 = vmatprep.subr.mxu0 0.0
        %919 = vmatpush1.xpose.msra.mxu0 0.0
        %920 = vmatprep.subr.mxu0 0.0
        %921 = vmatpush1.xpose.msra.mxu0 0.0
        %922 = vmatprep.subr.mxu0 0.0
        %923 = vmatpush1.xpose.msra.mxu0 0.0
        %924 = vmatprep.subr.mxu0 0.0
        %925 = vmatpush1.xpose.msra.mxu0 0.0
        %926 = vmatprep.subr.mxu0 0.0
        %927 = vmatpush1.xpose.msra.mxu0 0.0
        %928 = vmatprep.subr.mxu0 0.0
        %929 = vmatpush1.xpose.msra.mxu0 0.0
        %930 = vmatprep.subr.mxu0 0.0
        %931 = vmatpush1.xpose.msra.mxu0 0.0
        %932 = vmatprep.subr.mxu0 0.0
        %933 = vmatpush1.xpose.msra.mxu0 0.0
        %934 = vmatprep.subr.mxu0 0.0
        %935 = vmatpush1.xpose.msra.mxu0 0.0
        %936 = vmatprep.subr.mxu0 0.0
        %937 = vmatpush1.xpose.msra.mxu0 0.0
        %938 = vmatprep.subr.mxu0 0.0
        %939 = vmatpush1.xpose.msra.mxu0 0.0
        %940 = vmatprep.subr.mxu0 0.0
        %941 = vmatpush1.xpose.msra.mxu0 0.0
        %942 = vmatprep.subr.mxu0 0.0
        %943 = vmatpush1.xpose.msra.mxu0 0.0
        %944 = vmatprep.subr.mxu0 0.0
        %945 = vmatpush1.xpose.msra.mxu0 0.0
        %946 = vmatprep.subr.mxu0 0.0
        %947 = vmatpush1.xpose.msra.mxu0 0.0
        %948 = vmatprep.subr.mxu0 0.0
        %949 = vmatpush1.xpose.msra.mxu0 0.0
        %950 = vmatprep.subr.mxu0 0.0
        %951 = vmatpush1.xpose.msra.mxu0 0.0
        %952 = vmatprep.subr.mxu0 0.0
        %953 = vmatpush1.xpose.msra.mxu0 0.0
        %954 = vmatprep.subr.mxu0 0.0
        %955 = vmatpush1.xpose.msra.mxu0 0.0
        %956 = vmatprep.subr.mxu0 0.0
        %957 = vmatpush1.xpose.msra.mxu0 0.0
        %958 = vmatprep.subr.mxu0 0.0
        %959 = vmatpush1.xpose.msra.mxu0 0.0
        %960 = vmatprep.subr.mxu0 0.0
        %961 = vmatpush1.xpose.msra.mxu0 0.0
        %962 = vmatprep.subr.mxu0 0.0
        %963 = vmatpush1.xpose.msra.mxu0 0.0
        %964 = vmatprep.subr.mxu0 0.0
        %965 = vmatpush1.xpose.msra.mxu0 0.0
        %966 = vmatprep.subr.mxu0 0.0
        %967 = vmatpush1.xpose.msra.mxu0 0.0
        %968 = vmatprep.subr.mxu0 0.0
        %969 = vmatpush1.xpose.msra.mxu0 0.0
        %970 = vmatprep.mubr.f32.mxu0 0.0
        %971 = vmatmul.mubr.f32.gmra.mrb[0].mxu0 %v902
        %v972 = vpop.f32.mrb[0].mxu0
        %v973 = vadd.f32 0.0, %v972
        %v974 = vpop.f32.mrb[0].mxu0
        %975 = vdwg.mxu0
        %977 = vrot.lane.b32.xlu0 %v505, 126
        %v978 = vpop.permute.xlu0 %977
        %v979 = vsel %vm516, %v505, 0
        %v981 = vsel %vm516, %v978, 0
        %983 = vmatprep.subr.mxu0 0.0
        %984 = vmatpush1.xpose.msra.mxu0 %v981
        %985 = vmatprep.subr.mxu0 0.0
        %986 = vmatpush1.xpose.msra.mxu0 0.0
        %987 = vmatprep.subr.mxu0 0.0
        %988 = vmatpush1.xpose.msra.mxu0 0.0
        %989 = vmatprep.subr.mxu0 0.0
        %990 = vmatpush1.xpose.msra.mxu0 0.0
        %991 = vmatprep.subr.mxu0 0.0
        %992 = vmatpush1.xpose.msra.mxu0 0.0
        %993 = vmatprep.subr.mxu0 0.0
        %994 = vmatpush1.xpose.msra.mxu0 0.0
        %995 = vmatprep.subr.mxu0 0.0
        %996 = vmatpush1.xpose.msra.mxu0 0.0
        %997 = vmatprep.subr.mxu0 0.0
        %998 = vmatpush1.xpose.msra.mxu0 0.0
        %999 = vmatprep.subr.mxu0 0.0
        %1000 = vmatpush1.xpose.msra.mxu0 0.0
        %1001 = vmatprep.subr.mxu0 0.0
        %1002 = vmatpush1.xpose.msra.mxu0 0.0
        %1003 = vmatprep.subr.mxu0 0.0
        %1004 = vmatpush1.xpose.msra.mxu0 0.0
        %1005 = vmatprep.subr.mxu0 0.0
        %1006 = vmatpush1.xpose.msra.mxu0 0.0
        %1007 = vmatprep.subr.mxu0 0.0
        %1008 = vmatpush1.xpose.msra.mxu0 0.0
        %1009 = vmatprep.subr.mxu0 0.0
        %1010 = vmatpush1.xpose.msra.mxu0 0.0
        %1011 = vmatprep.subr.mxu0 0.0
        %1012 = vmatpush1.xpose.msra.mxu0 0.0
        %1013 = vmatprep.subr.mxu0 0.0
        %1014 = vmatpush1.xpose.msra.mxu0 0.0
        %1015 = vmatprep.subr.mxu0 0.0
        %1016 = vmatpush1.xpose.msra.mxu0 0.0
        %1017 = vmatprep.subr.mxu0 0.0
        %1018 = vmatpush1.xpose.msra.mxu0 0.0
        %1019 = vmatprep.subr.mxu0 0.0
        %1020 = vmatpush1.xpose.msra.mxu0 0.0
        %1021 = vmatprep.subr.mxu0 0.0
        %1022 = vmatpush1.xpose.msra.mxu0 0.0
        %1023 = vmatprep.subr.mxu0 0.0
        %1024 = vmatpush1.xpose.msra.mxu0 0.0
        %1025 = vmatprep.subr.mxu0 0.0
        %1026 = vmatpush1.xpose.msra.mxu0 0.0
        %1027 = vmatprep.subr.mxu0 0.0
        %1028 = vmatpush1.xpose.msra.mxu0 0.0
        %1029 = vmatprep.subr.mxu0 0.0
        %1030 = vmatpush1.xpose.msra.mxu0 0.0
        %1031 = vmatprep.subr.mxu0 0.0
        %1032 = vmatpush1.xpose.msra.mxu0 0.0
        %1033 = vmatprep.subr.mxu0 0.0
        %1034 = vmatpush1.xpose.msra.mxu0 0.0
        %1035 = vmatprep.subr.mxu0 0.0
        %1036 = vmatpush1.xpose.msra.mxu0 0.0
        %1037 = vmatprep.subr.mxu0 0.0
        %1038 = vmatpush1.xpose.msra.mxu0 0.0
        %1039 = vmatprep.subr.mxu0 0.0
        %1040 = vmatpush1.xpose.msra.mxu0 0.0
        %1041 = vmatprep.subr.mxu0 0.0
        %1042 = vmatpush1.xpose.msra.mxu0 0.0
        %1043 = vmatprep.subr.mxu0 0.0
        %1044 = vmatpush1.xpose.msra.mxu0 0.0
        %1045 = vmatprep.subr.mxu0 0.0
        %1046 = vmatpush1.xpose.msra.mxu0 0.0
        %1047 = vmatprep.mubr.f32.mxu0 0.0
        %1048 = vmatmul.mubr.f32.gmra.mrb[0].mxu0 %v979
        %v1049 = vpop.f32.mrb[0].mxu0
        %v1050 = vadd.f32 0.0, %v1049
        %v1051 = vpop.f32.mrb[0].mxu0
        %1052 = vdwg.mxu0
        %1054 = vrot.lane.b32.xlu0 %v510, 126
        %v1055 = vpop.permute.xlu0 %1054
        %v1056 = vsel %vm516, %v510, 0
        %v1058 = vsel %vm516, %v1055, 0
        %1060 = vmatprep.subr.mxu0 0.0
        %1061 = vmatpush1.xpose.msra.mxu0 %v1058
        %1062 = vmatprep.subr.mxu0 0.0
        %1063 = vmatpush1.xpose.msra.mxu0 0.0
        %1064 = vmatprep.subr.mxu0 0.0
        %1065 = vmatpush1.xpose.msra.mxu0 0.0
        %1066 = vmatprep.subr.mxu0 0.0
        %1067 = vmatpush1.xpose.msra.mxu0 0.0
        %1068 = vmatprep.subr.mxu0 0.0
        %1069 = vmatpush1.xpose.msra.mxu0 0.0
        %1070 = vmatprep.subr.mxu0 0.0
        %1071 = vmatpush1.xpose.msra.mxu0 0.0
        %1072 = vmatprep.subr.mxu0 0.0
        %1073 = vmatpush1.xpose.msra.mxu0 0.0
        %1074 = vmatprep.subr.mxu0 0.0
        %1075 = vmatpush1.xpose.msra.mxu0 0.0
        %1076 = vmatprep.subr.mxu0 0.0
        %1077 = vmatpush1.xpose.msra.mxu0 0.0
        %1078 = vmatprep.subr.mxu0 0.0
        %1079 = vmatpush1.xpose.msra.mxu0 0.0
        %1080 = vmatprep.subr.mxu0 0.0
        %1081 = vmatpush1.xpose.msra.mxu0 0.0
        %1082 = vmatprep.subr.mxu0 0.0
        %1083 = vmatpush1.xpose.msra.mxu0 0.0
        %1084 = vmatprep.subr.mxu0 0.0
        %1085 = vmatpush1.xpose.msra.mxu0 0.0
        %1086 = vmatprep.subr.mxu0 0.0
        %1087 = vmatpush1.xpose.msra.mxu0 0.0
        %1088 = vmatprep.subr.mxu0 0.0
        %1089 = vmatpush1.xpose.msra.mxu0 0.0
        %1090 = vmatprep.subr.mxu0 0.0
        %1091 = vmatpush1.xpose.msra.mxu0 0.0
        %1092 = vmatprep.subr.mxu0 0.0
        %1093 = vmatpush1.xpose.msra.mxu0 0.0
        %1094 = vmatprep.subr.mxu0 0.0
        %1095 = vmatpush1.xpose.msra.mxu0 0.0
        %1096 = vmatprep.subr.mxu0 0.0
        %1097 = vmatpush1.xpose.msra.mxu0 0.0
        %1098 = vmatprep.subr.mxu0 0.0
        %1099 = vmatpush1.xpose.msra.mxu0 0.0
        %1100 = vmatprep.subr.mxu0 0.0
        %1101 = vmatpush1.xpose.msra.mxu0 0.0
        %1102 = vmatprep.subr.mxu0 0.0
        %1103 = vmatpush1.xpose.msra.mxu0 0.0
        %1104 = vmatprep.subr.mxu0 0.0
        %1105 = vmatpush1.xpose.msra.mxu0 0.0
        %1106 = vmatprep.subr.mxu0 0.0
        %1107 = vmatpush1.xpose.msra.mxu0 0.0
        %1108 = vmatprep.subr.mxu0 0.0
        %1109 = vmatpush1.xpose.msra.mxu0 0.0
        %1110 = vmatprep.subr.mxu0 0.0
        %1111 = vmatpush1.xpose.msra.mxu0 0.0
        %1112 = vmatprep.subr.mxu0 0.0
        %1113 = vmatpush1.xpose.msra.mxu0 0.0
        %1114 = vmatprep.subr.mxu0 0.0
        %1115 = vmatpush1.xpose.msra.mxu0 0.0
        %1116 = vmatprep.subr.mxu0 0.0
        %1117 = vmatpush1.xpose.msra.mxu0 0.0
        %1118 = vmatprep.subr.mxu0 0.0
        %1119 = vmatpush1.xpose.msra.mxu0 0.0
        %1120 = vmatprep.subr.mxu0 0.0
        %1121 = vmatpush1.xpose.msra.mxu0 0.0
        %1122 = vmatprep.subr.mxu0 0.0
        %1123 = vmatpush1.xpose.msra.mxu0 0.0
        %1124 = vmatprep.mubr.f32.mxu0 0.0
        %1125 = vmatmul.mubr.f32.gmra.mrb[0].mxu0 %v1056
        %v1126 = vpop.f32.mrb[0].mxu0
        %v1127 = vadd.f32 0.0, %v1126
        %v1128 = vpop.f32.mrb[0].mxu0
        %1129 = vdwg.mxu0
        %vm1130 = vcmask 64512
        %v1131 = vsel %vm1130, %v588, -inf
        %1132 = vmax.xlane.f32.xlu0 %v1131
        %v1133 = vpop.xlane.xlu0 %1132
        %v1134 = vsel %vm1130, %v665, -inf
        %1135 = vmax.xlane.f32.xlu0 %v1134
        %v1136 = vpop.xlane.xlu0 %1135
        %v1137 = vsel %vm1130, %v742, -inf
        %1138 = vmax.xlane.f32.xlu0 %v1137
        %v1139 = vpop.xlane.xlu0 %1138
        %v1140 = vsel %vm1130, %v819, -inf
        %1141 = vmax.xlane.f32.xlu0 %v1140
        %v1142 = vpop.xlane.xlu0 %1141
        %v1143 = vsel %vm1130, %v896, -inf
        %1144 = vmax.xlane.f32.xlu0 %v1143
        %v1145 = vpop.xlane.xlu0 %1144
        %v1146 = vsel %vm1130, %v973, -inf
        %1147 = vmax.xlane.f32.xlu0 %v1146
        %v1148 = vpop.xlane.xlu0 %1147
        %v1149 = vsel %vm1130, %v1050, -inf
        %1150 = vmax.xlane.f32.xlu0 %v1149
        %v1151 = vpop.xlane.xlu0 %1150
        %v1152 = vsel %vm1130, %v1127, -inf
        %1153 = vmax.xlane.f32.xlu0 %v1152
        %v1154 = vpop.xlane.xlu0 %1153
        %v1155 = vsub.f32 %v588, %v1133
        %v1156 = vsub.f32 %v665, %v1136
        %v1157 = vsub.f32 %v742, %v1139
        %v1158 = vsub.f32 %v819, %v1142
        %v1159 = vsub.f32 %v896, %v1145
        %v1160 = vsub.f32 %v973, %v1148
        %v1161 = vsub.f32 %v1050, %v1151
        %v1162 = vsub.f32 %v1127, %v1154
        %v1163 = vmul.f32 %v1155, 1.442695
        %v1164 = vpow.pop %v1163
        %v1165 = vmul.f32 %v1156, 1.442695
        %v1166 = vpow.pop %v1165
        %v1167 = vmul.f32 %v1157, 1.442695
        %v1168 = vpow.pop %v1167
        %v1169 = vmul.f32 %v1158, 1.442695
        %v1170 = vpow.pop %v1169
        %v1171 = vmul.f32 %v1159, 1.442695
        %v1172 = vpow.pop %v1171
        %v1173 = vmul.f32 %v1160, 1.442695
        %v1174 = vpow.pop %v1173
        %v1175 = vmul.f32 %v1161, 1.442695
        %v1176 = vpow.pop %v1175
        %v1177 = vmul.f32 %v1162, 1.442695
        %v1178 = vpow.pop %v1177
        %v1179 = vsel %vm1130, %v1164, 0.0
        %1180 = vadd.xlane.f32.xlu0 %v1179
        %v1181 = vpop.xlane.xlu0 %1180
        %v1182 = vsel %vm1130, %v1166, 0.0
        %1183 = vadd.xlane.f32.xlu0 %v1182
        %v1184 = vpop.xlane.xlu0 %1183
        %v1185 = vsel %vm1130, %v1168, 0.0
        %1186 = vadd.xlane.f32.xlu0 %v1185
        %v1187 = vpop.xlane.xlu0 %1186
        %v1188 = vsel %vm1130, %v1170, 0.0
        %1189 = vadd.xlane.f32.xlu0 %v1188
        %v1190 = vpop.xlane.xlu0 %1189
        %v1191 = vsel %vm1130, %v1172, 0.0
        %1192 = vadd.xlane.f32.xlu0 %v1191
        %v1193 = vpop.xlane.xlu0 %1192
        %v1194 = vsel %vm1130, %v1174, 0.0
        %1195 = vadd.xlane.f32.xlu0 %v1194
        %v1196 = vpop.xlane.xlu0 %1195
        %v1197 = vsel %vm1130, %v1176, 0.0
        %1198 = vadd.xlane.f32.xlu0 %v1197
        %v1199 = vpop.xlane.xlu0 %1198
        %v1200 = vsel %vm1130, %v1178, 0.0
        %1201 = vadd.xlane.f32.xlu0 %v1200
        %v1202 = vpop.xlane.xlu0 %1201
        %v1203 = vrcp.pop %v1181
        %v1204 = vrcp.pop %v1184
        %v1205 = vrcp.pop %v1187
        %v1206 = vrcp.pop %v1190
        %v1207 = vrcp.pop %v1193
        %v1208 = vrcp.pop %v1196
        %v1209 = vrcp.pop %v1199
        %v1210 = vrcp.pop %v1202
        %v1211 = vmul.f32 %v1164, %v1203
        %v1212 = vmul.f32 %v1166, %v1204
        %v1213 = vmul.f32 %v1168, %v1205
        %v1214 = vmul.f32 %v1170, %v1206
        %v1215 = vmul.f32 %v1172, %v1207
        %v1216 = vmul.f32 %v1174, %v1208
        %v1217 = vmul.f32 %v1176, %v1209
        %v1218 = vmul.f32 %v1178, %v1210
        %1219 = vrot.lane.b32.xlu0 %v475, 124
        %v1220 = vpop.permute.xlu0 %1219
        %v1223 = vsel %vm1130, %v1211, 0
        %1225 = vmatprep.subr.mxu0 0.0
        %1226 = vmatpush1.msra.mxu0 %v1220
        %1227 = vmatprep.subr.mxu0 0.0
        %1228 = vmatpush1.msra.mxu0 0.0
        %1229 = vmatprep.subr.mxu0 0.0
        %1230 = vmatpush1.msra.mxu0 0.0
        %1231 = vmatprep.subr.mxu0 0.0
        %1232 = vmatpush1.msra.mxu0 0.0
        %1233 = vmatprep.subr.mxu0 0.0
        %1234 = vmatpush1.msra.mxu0 0.0
        %1235 = vmatprep.subr.mxu0 0.0
        %1236 = vmatpush1.msra.mxu0 0.0
        %1237 = vmatprep.subr.mxu0 0.0
        %1238 = vmatpush1.msra.mxu0 0.0
        %1239 = vmatprep.subr.mxu0 0.0
        %1240 = vmatpush1.msra.mxu0 0.0
        %1241 = vmatprep.subr.mxu0 0.0
        %1242 = vmatpush1.msra.mxu0 0.0
        %1243 = vmatprep.subr.mxu0 0.0
        %1244 = vmatpush1.msra.mxu0 0.0
        %1245 = vmatprep.subr.mxu0 0.0
        %1246 = vmatpush1.msra.mxu0 0.0
        %1247 = vmatprep.subr.mxu0 0.0
        %1248 = vmatpush1.msra.mxu0 0.0
        %1249 = vmatprep.subr.mxu0 0.0
        %1250 = vmatpush1.msra.mxu0 0.0
        %1251 = vmatprep.subr.mxu0 0.0
        %1252 = vmatpush1.msra.mxu0 0.0
        %1253 = vmatprep.subr.mxu0 0.0
        %1254 = vmatpush1.msra.mxu0 0.0
        %1255 = vmatprep.subr.mxu0 0.0
        %1256 = vmatpush1.msra.mxu0 0.0
        %1257 = vmatprep.subr.mxu0 0.0
        %1258 = vmatpush1.msra.mxu0 0.0
        %1259 = vmatprep.subr.mxu0 0.0
        %1260 = vmatpush1.msra.mxu0 0.0
        %1261 = vmatprep.subr.mxu0 0.0
        %1262 = vmatpush1.msra.mxu0 0.0
        %1263 = vmatprep.subr.mxu0 0.0
        %1264 = vmatpush1.msra.mxu0 0.0
        %1265 = vmatprep.subr.mxu0 0.0
        %1266 = vmatpush1.msra.mxu0 0.0
        %1267 = vmatprep.subr.mxu0 0.0
        %1268 = vmatpush1.msra.mxu0 0.0
        %1269 = vmatprep.subr.mxu0 0.0
        %1270 = vmatpush1.msra.mxu0 0.0
        %1271 = vmatprep.subr.mxu0 0.0
        %1272 = vmatpush1.msra.mxu0 0.0
        %1273 = vmatprep.subr.mxu0 0.0
        %1274 = vmatpush1.msra.mxu0 0.0
        %1275 = vmatprep.subr.mxu0 0.0
        %1276 = vmatpush1.msra.mxu0 0.0
        %1277 = vmatprep.subr.mxu0 0.0
        %1278 = vmatpush1.msra.mxu0 0.0
        %1279 = vmatprep.subr.mxu0 0.0
        %1280 = vmatpush1.msra.mxu0 0.0
        %1281 = vmatprep.subr.mxu0 0.0
        %1282 = vmatpush1.msra.mxu0 0.0
        %1283 = vmatprep.subr.mxu0 0.0
        %1284 = vmatpush1.msra.mxu0 0.0
        %1285 = vmatprep.subr.mxu0 0.0
        %1286 = vmatpush1.msra.mxu0 0.0
        %1287 = vmatprep.subr.mxu0 0.0
        %1288 = vmatpush1.msra.mxu0 0.0
        %1289 = vmatprep.mubr.f32.mxu0 0.0
        %1290 = vmatmul.mubr.f32.gmra.mrb[0].mxu0 %v1223
        %v1291 = vpop.f32.mrb[0].mxu0
        %v1292 = vadd.f32 0.0, %v1291
        %v1293 = vpop.f32.mrb[0].mxu0
        %1294 = vdwg.mxu0
        %1295 = vrot.lane.b32.xlu0 %v480, 124
        %v1296 = vpop.permute.xlu0 %1295
        %v1299 = vsel %vm1130, %v1212, 0
        %1301 = vmatprep.subr.mxu0 0.0
        %1302 = vmatpush1.msra.mxu0 %v1296
        %1303 = vmatprep.subr.mxu0 0.0
        %1304 = vmatpush1.msra.mxu0 0.0
        %1305 = vmatprep.subr.mxu0 0.0
        %1306 = vmatpush1.msra.mxu0 0.0
        %1307 = vmatprep.subr.mxu0 0.0
        %1308 = vmatpush1.msra.mxu0 0.0
        %1309 = vmatprep.subr.mxu0 0.0
        %1310 = vmatpush1.msra.mxu0 0.0
        %1311 = vmatprep.subr.mxu0 0.0
        %1312 = vmatpush1.msra.mxu0 0.0
        %1313 = vmatprep.subr.mxu0 0.0
        %1314 = vmatpush1.msra.mxu0 0.0
        %1315 = vmatprep.subr.mxu0 0.0
        %1316 = vmatpush1.msra.mxu0 0.0
        %1317 = vmatprep.subr.mxu0 0.0
        %1318 = vmatpush1.msra.mxu0 0.0
        %1319 = vmatprep.subr.mxu0 0.0
        %1320 = vmatpush1.msra.mxu0 0.0
        %1321 = vmatprep.subr.mxu0 0.0
        %1322 = vmatpush1.msra.mxu0 0.0
        %1323 = vmatprep.subr.mxu0 0.0
        %1324 = vmatpush1.msra.mxu0 0.0
        %1325 = vmatprep.subr.mxu0 0.0
        %1326 = vmatpush1.msra.mxu0 0.0
        %1327 = vmatprep.subr.mxu0 0.0
        %1328 = vmatpush1.msra.mxu0 0.0
        %1329 = vmatprep.subr.mxu0 0.0
        %1330 = vmatpush1.msra.mxu0 0.0
        %1331 = vmatprep.subr.mxu0 0.0
        %1332 = vmatpush1.msra.mxu0 0.0
        %1333 = vmatprep.subr.mxu0 0.0
        %1334 = vmatpush1.msra.mxu0 0.0
        %1335 = vmatprep.subr.mxu0 0.0
        %1336 = vmatpush1.msra.mxu0 0.0
        %1337 = vmatprep.subr.mxu0 0.0
        %1338 = vmatpush1.msra.mxu0 0.0
        %1339 = vmatprep.subr.mxu0 0.0
        %1340 = vmatpush1.msra.mxu0 0.0
        %1341 = vmatprep.subr.mxu0 0.0
        %1342 = vmatpush1.msra.mxu0 0.0
        %1343 = vmatprep.subr.mxu0 0.0
        %1344 = vmatpush1.msra.mxu0 0.0
        %1345 = vmatprep.subr.mxu0 0.0
        %1346 = vmatpush1.msra.mxu0 0.0
        %1347 = vmatprep.subr.mxu0 0.0
        %1348 = vmatpush1.msra.mxu0 0.0
        %1349 = vmatprep.subr.mxu0 0.0
        %1350 = vmatpush1.msra.mxu0 0.0
        %1351 = vmatprep.subr.mxu0 0.0
        %1352 = vmatpush1.msra.mxu0 0.0
        %1353 = vmatprep.subr.mxu0 0.0
        %1354 = vmatpush1.msra.mxu0 0.0
        %1355 = vmatprep.subr.mxu0 0.0
        %1356 = vmatpush1.msra.mxu0 0.0
        %1357 = vmatprep.subr.mxu0 0.0
        %1358 = vmatpush1.msra.mxu0 0.0
        %1359 = vmatprep.subr.mxu0 0.0
        %1360 = vmatpush1.msra.mxu0 0.0
        %1361 = vmatprep.subr.mxu0 0.0
        %1362 = vmatpush1.msra.mxu0 0.0
        %1363 = vmatprep.subr.mxu0 0.0
        %1364 = vmatpush1.msra.mxu0 0.0
        %1365 = vmatprep.mubr.f32.mxu0 0.0
        %1366 = vmatmul.mubr.f32.gmra.mrb[0].mxu0 %v1299
        %v1367 = vpop.f32.mrb[0].mxu0
        %v1368 = vadd.f32 0.0, %v1367
        %v1369 = vpop.f32.mrb[0].mxu0
        %1370 = vdwg.mxu0
        %1371 = vrot.lane.b32.xlu0 %v485, 124
        %v1372 = vpop.permute.xlu0 %1371
        %v1375 = vsel %vm1130, %v1213, 0
        %1377 = vmatprep.subr.mxu0 0.0
        %1378 = vmatpush1.msra.mxu0 %v1372
        %1379 = vmatprep.subr.mxu0 0.0
        %1380 = vmatpush1.msra.mxu0 0.0
        %1381 = vmatprep.subr.mxu0 0.0
        %1382 = vmatpush1.msra.mxu0 0.0
        %1383 = vmatprep.subr.mxu0 0.0
        %1384 = vmatpush1.msra.mxu0 0.0
        %1385 = vmatprep.subr.mxu0 0.0
        %1386 = vmatpush1.msra.mxu0 0.0
        %1387 = vmatprep.subr.mxu0 0.0
        %1388 = vmatpush1.msra.mxu0 0.0
        %1389 = vmatprep.subr.mxu0 0.0
        %1390 = vmatpush1.msra.mxu0 0.0
        %1391 = vmatprep.subr.mxu0 0.0
        %1392 = vmatpush1.msra.mxu0 0.0
        %1393 = vmatprep.subr.mxu0 0.0
        %1394 = vmatpush1.msra.mxu0 0.0
        %1395 = vmatprep.subr.mxu0 0.0
        %1396 = vmatpush1.msra.mxu0 0.0
        %1397 = vmatprep.subr.mxu0 0.0
        %1398 = vmatpush1.msra.mxu0 0.0
        %1399 = vmatprep.subr.mxu0 0.0
        %1400 = vmatpush1.msra.mxu0 0.0
        %1401 = vmatprep.subr.mxu0 0.0
        %1402 = vmatpush1.msra.mxu0 0.0
        %1403 = vmatprep.subr.mxu0 0.0
        %1404 = vmatpush1.msra.mxu0 0.0
        %1405 = vmatprep.subr.mxu0 0.0
        %1406 = vmatpush1.msra.mxu0 0.0
        %1407 = vmatprep.subr.mxu0 0.0
        %1408 = vmatpush1.msra.mxu0 0.0
        %1409 = vmatprep.subr.mxu0 0.0
        %1410 = vmatpush1.msra.mxu0 0.0
        %1411 = vmatprep.subr.mxu0 0.0
        %1412 = vmatpush1.msra.mxu0 0.0
        %1413 = vmatprep.subr.mxu0 0.0
        %1414 = vmatpush1.msra.mxu0 0.0
        %1415 = vmatprep.subr.mxu0 0.0
        %1416 = vmatpush1.msra.mxu0 0.0
        %1417 = vmatprep.subr.mxu0 0.0
        %1418 = vmatpush1.msra.mxu0 0.0
        %1419 = vmatprep.subr.mxu0 0.0
        %1420 = vmatpush1.msra.mxu0 0.0
        %1421 = vmatprep.subr.mxu0 0.0
        %1422 = vmatpush1.msra.mxu0 0.0
        %1423 = vmatprep.subr.mxu0 0.0
        %1424 = vmatpush1.msra.mxu0 0.0
        %1425 = vmatprep.subr.mxu0 0.0
        %1426 = vmatpush1.msra.mxu0 0.0
        %1427 = vmatprep.subr.mxu0 0.0
        %1428 = vmatpush1.msra.mxu0 0.0
        %1429 = vmatprep.subr.mxu0 0.0
        %1430 = vmatpush1.msra.mxu0 0.0
        %1431 = vmatprep.subr.mxu0 0.0
        %1432 = vmatpush1.msra.mxu0 0.0
        %1433 = vmatprep.subr.mxu0 0.0
        %1434 = vmatpush1.msra.mxu0 0.0
        %1435 = vmatprep.subr.mxu0 0.0
        %1436 = vmatpush1.msra.mxu0 0.0
        %1437 = vmatprep.subr.mxu0 0.0
        %1438 = vmatpush1.msra.mxu0 0.0
        %1439 = vmatprep.subr.mxu0 0.0
        %1440 = vmatpush1.msra.mxu0 0.0
        %1441 = vmatprep.mubr.f32.mxu0 0.0
        %1442 = vmatmul.mubr.f32.gmra.mrb[0].mxu0 %v1375
        %v1443 = vpop.f32.mrb[0].mxu0
        %v1444 = vadd.f32 0.0, %v1443
        %v1445 = vpop.f32.mrb[0].mxu0
        %1446 = vdwg.mxu0
        %1447 = vrot.lane.b32.xlu0 %v490, 124
        %v1448 = vpop.permute.xlu0 %1447
        %v1451 = vsel %vm1130, %v1214, 0
        %1453 = vmatprep.subr.mxu0 0.0
        %1454 = vmatpush1.msra.mxu0 %v1448
        %1455 = vmatprep.subr.mxu0 0.0
        %1456 = vmatpush1.msra.mxu0 0.0
        %1457 = vmatprep.subr.mxu0 0.0
        %1458 = vmatpush1.msra.mxu0 0.0
        %1459 = vmatprep.subr.mxu0 0.0
        %1460 = vmatpush1.msra.mxu0 0.0
        %1461 = vmatprep.subr.mxu0 0.0
        %1462 = vmatpush1.msra.mxu0 0.0
        %1463 = vmatprep.subr.mxu0 0.0
        %1464 = vmatpush1.msra.mxu0 0.0
        %1465 = vmatprep.subr.mxu0 0.0
        %1466 = vmatpush1.msra.mxu0 0.0
        %1467 = vmatprep.subr.mxu0 0.0
        %1468 = vmatpush1.msra.mxu0 0.0
        %1469 = vmatprep.subr.mxu0 0.0
        %1470 = vmatpush1.msra.mxu0 0.0
        %1471 = vmatprep.subr.mxu0 0.0
        %1472 = vmatpush1.msra.mxu0 0.0
        %1473 = vmatprep.subr.mxu0 0.0
        %1474 = vmatpush1.msra.mxu0 0.0
        %1475 = vmatprep.subr.mxu0 0.0
        %1476 = vmatpush1.msra.mxu0 0.0
        %1477 = vmatprep.subr.mxu0 0.0
        %1478 = vmatpush1.msra.mxu0 0.0
        %1479 = vmatprep.subr.mxu0 0.0
        %1480 = vmatpush1.msra.mxu0 0.0
        %1481 = vmatprep.subr.mxu0 0.0
        %1482 = vmatpush1.msra.mxu0 0.0
        %1483 = vmatprep.subr.mxu0 0.0
        %1484 = vmatpush1.msra.mxu0 0.0
        %1485 = vmatprep.subr.mxu0 0.0
        %1486 = vmatpush1.msra.mxu0 0.0
        %1487 = vmatprep.subr.mxu0 0.0
        %1488 = vmatpush1.msra.mxu0 0.0
        %1489 = vmatprep.subr.mxu0 0.0
        %1490 = vmatpush1.msra.mxu0 0.0
        %1491 = vmatprep.subr.mxu0 0.0
        %1492 = vmatpush1.msra.mxu0 0.0
        %1493 = vmatprep.subr.mxu0 0.0
        %1494 = vmatpush1.msra.mxu0 0.0
        %1495 = vmatprep.subr.mxu0 0.0
        %1496 = vmatpush1.msra.mxu0 0.0
        %1497 = vmatprep.subr.mxu0 0.0
        %1498 = vmatpush1.msra.mxu0 0.0
        %1499 = vmatprep.subr.mxu0 0.0
        %1500 = vmatpush1.msra.mxu0 0.0
        %1501 = vmatprep.subr.mxu0 0.0
        %1502 = vmatpush1.msra.mxu0 0.0
        %1503 = vmatprep.subr.mxu0 0.0
        %1504 = vmatpush1.msra.mxu0 0.0
        %1505 = vmatprep.subr.mxu0 0.0
        %1506 = vmatpush1.msra.mxu0 0.0
        %1507 = vmatprep.subr.mxu0 0.0
        %1508 = vmatpush1.msra.mxu0 0.0
        %1509 = vmatprep.subr.mxu0 0.0
        %1510 = vmatpush1.msra.mxu0 0.0
        %1511 = vmatprep.subr.mxu0 0.0
        %1512 = vmatpush1.msra.mxu0 0.0
        %1513 = vmatprep.subr.mxu0 0.0
        %1514 = vmatpush1.msra.mxu0 0.0
        %1515 = vmatprep.subr.mxu0 0.0
        %1516 = vmatpush1.msra.mxu0 0.0
        %1517 = vmatprep.mubr.f32.mxu0 0.0
        %1518 = vmatmul.mubr.f32.gmra.mrb[0].mxu0 %v1451
        %v1519 = vpop.f32.mrb[0].mxu0
        %v1520 = vadd.f32 0.0, %v1519
        %v1521 = vpop.f32.mrb[0].mxu0
        %1522 = vdwg.mxu0
        %1523 = vrot.lane.b32.xlu0 %v495, 124
        %v1524 = vpop.permute.xlu0 %1523
        %v1527 = vsel %vm1130, %v1215, 0
        %1529 = vmatprep.subr.mxu0 0.0
        %1530 = vmatpush1.msra.mxu0 %v1524
        %1531 = vmatprep.subr.mxu0 0.0
        %1532 = vmatpush1.msra.mxu0 0.0
        %1533 = vmatprep.subr.mxu0 0.0
        %1534 = vmatpush1.msra.mxu0 0.0
        %1535 = vmatprep.subr.mxu0 0.0
        %1536 = vmatpush1.msra.mxu0 0.0
        %1537 = vmatprep.subr.mxu0 0.0
        %1538 = vmatpush1.msra.mxu0 0.0
        %1539 = vmatprep.subr.mxu0 0.0
        %1540 = vmatpush1.msra.mxu0 0.0
        %1541 = vmatprep.subr.mxu0 0.0
        %1542 = vmatpush1.msra.mxu0 0.0
        %1543 = vmatprep.subr.mxu0 0.0
        %1544 = vmatpush1.msra.mxu0 0.0
        %1545 = vmatprep.subr.mxu0 0.0
        %1546 = vmatpush1.msra.mxu0 0.0
        %1547 = vmatprep.subr.mxu0 0.0
        %1548 = vmatpush1.msra.mxu0 0.0
        %1549 = vmatprep.subr.mxu0 0.0
        %1550 = vmatpush1.msra.mxu0 0.0
        %1551 = vmatprep.subr.mxu0 0.0
        %1552 = vmatpush1.msra.mxu0 0.0
        %1553 = vmatprep.subr.mxu0 0.0
        %1554 = vmatpush1.msra.mxu0 0.0
        %1555 = vmatprep.subr.mxu0 0.0
        %1556 = vmatpush1.msra.mxu0 0.0
        %1557 = vmatprep.subr.mxu0 0.0
        %1558 = vmatpush1.msra.mxu0 0.0
        %1559 = vmatprep.subr.mxu0 0.0
        %1560 = vmatpush1.msra.mxu0 0.0
        %1561 = vmatprep.subr.mxu0 0.0
        %1562 = vmatpush1.msra.mxu0 0.0
        %1563 = vmatprep.subr.mxu0 0.0
        %1564 = vmatpush1.msra.mxu0 0.0
        %1565 = vmatprep.subr.mxu0 0.0
        %1566 = vmatpush1.msra.mxu0 0.0
        %1567 = vmatprep.subr.mxu0 0.0
        %1568 = vmatpush1.msra.mxu0 0.0
        %1569 = vmatprep.subr.mxu0 0.0
        %1570 = vmatpush1.msra.mxu0 0.0
        %1571 = vmatprep.subr.mxu0 0.0
        %1572 = vmatpush1.msra.mxu0 0.0
        %1573 = vmatprep.subr.mxu0 0.0
        %1574 = vmatpush1.msra.mxu0 0.0
        %1575 = vmatprep.subr.mxu0 0.0
        %1576 = vmatpush1.msra.mxu0 0.0
        %1577 = vmatprep.subr.mxu0 0.0
        %1578 = vmatpush1.msra.mxu0 0.0
        %1579 = vmatprep.subr.mxu0 0.0
        %1580 = vmatpush1.msra.mxu0 0.0
        %1581 = vmatprep.subr.mxu0 0.0
        %1582 = vmatpush1.msra.mxu0 0.0
        %1583 = vmatprep.subr.mxu0 0.0
        %1584 = vmatpush1.msra.mxu0 0.0
        %1585 = vmatprep.subr.mxu0 0.0
        %1586 = vmatpush1.msra.mxu0 0.0
        %1587 = vmatprep.subr.mxu0 0.0
        %1588 = vmatpush1.msra.mxu0 0.0
        %1589 = vmatprep.subr.mxu0 0.0
        %1590 = vmatpush1.msra.mxu0 0.0
        %1591 = vmatprep.subr.mxu0 0.0
        %1592 = vmatpush1.msra.mxu0 0.0
        %1593 = vmatprep.mubr.f32.mxu0 0.0
        %1594 = vmatmul.mubr.f32.gmra.mrb[0].mxu0 %v1527
        %v1595 = vpop.f32.mrb[0].mxu0
        %v1596 = vadd.f32 0.0, %v1595
        %v1597 = vpop.f32.mrb[0].mxu0
        %1598 = vdwg.mxu0
        %1599 = vrot.lane.b32.xlu0 %v500, 124
        %v1600 = vpop.permute.xlu0 %1599
        %v1603 = vsel %vm1130, %v1216, 0
        %1605 = vmatprep.subr.mxu0 0.0
        %1606 = vmatpush1.msra.mxu0 %v1600
        %1607 = vmatprep.subr.mxu0 0.0
        %1608 = vmatpush1.msra.mxu0 0.0
        %1609 = vmatprep.subr.mxu0 0.0
        %1610 = vmatpush1.msra.mxu0 0.0
        %1611 = vmatprep.subr.mxu0 0.0
        %1612 = vmatpush1.msra.mxu0 0.0
        %1613 = vmatprep.subr.mxu0 0.0
        %1614 = vmatpush1.msra.mxu0 0.0
        %1615 = vmatprep.subr.mxu0 0.0
        %1616 = vmatpush1.msra.mxu0 0.0
        %1617 = vmatprep.subr.mxu0 0.0
        %1618 = vmatpush1.msra.mxu0 0.0
        %1619 = vmatprep.subr.mxu0 0.0
        %1620 = vmatpush1.msra.mxu0 0.0
        %1621 = vmatprep.subr.mxu0 0.0
        %1622 = vmatpush1.msra.mxu0 0.0
        %1623 = vmatprep.subr.mxu0 0.0
        %1624 = vmatpush1.msra.mxu0 0.0
        %1625 = vmatprep.subr.mxu0 0.0
        %1626 = vmatpush1.msra.mxu0 0.0
        %1627 = vmatprep.subr.mxu0 0.0
        %1628 = vmatpush1.msra.mxu0 0.0
        %1629 = vmatprep.subr.mxu0 0.0
        %1630 = vmatpush1.msra.mxu0 0.0
        %1631 = vmatprep.subr.mxu0 0.0
        %1632 = vmatpush1.msra.mxu0 0.0
        %1633 = vmatprep.subr.mxu0 0.0
        %1634 = vmatpush1.msra.mxu0 0.0
        %1635 = vmatprep.subr.mxu0 0.0
        %1636 = vmatpush1.msra.mxu0 0.0
        %1637 = vmatprep.subr.mxu0 0.0
        %1638 = vmatpush1.msra.mxu0 0.0
        %1639 = vmatprep.subr.mxu0 0.0
        %1640 = vmatpush1.msra.mxu0 0.0
        %1641 = vmatprep.subr.mxu0 0.0
        %1642 = vmatpush1.msra.mxu0 0.0
        %1643 = vmatprep.subr.mxu0 0.0
        %1644 = vmatpush1.msra.mxu0 0.0
        %1645 = vmatprep.subr.mxu0 0.0
        %1646 = vmatpush1.msra.mxu0 0.0
        %1647 = vmatprep.subr.mxu0 0.0
        %1648 = vmatpush1.msra.mxu0 0.0
        %1649 = vmatprep.subr.mxu0 0.0
        %1650 = vmatpush1.msra.mxu0 0.0
        %1651 = vmatprep.subr.mxu0 0.0
        %1652 = vmatpush1.msra.mxu0 0.0
        %1653 = vmatprep.subr.mxu0 0.0
        %1654 = vmatpush1.msra.mxu0 0.0
        %1655 = vmatprep.subr.mxu0 0.0
        %1656 = vmatpush1.msra.mxu0 0.0
        %1657 = vmatprep.subr.mxu0 0.0
        %1658 = vmatpush1.msra.mxu0 0.0
        %1659 = vmatprep.subr.mxu0 0.0
        %1660 = vmatpush1.msra.mxu0 0.0
        %1661 = vmatprep.subr.mxu0 0.0
        %1662 = vmatpush1.msra.mxu0 0.0
        %1663 = vmatprep.subr.mxu0 0.0
        %1664 = vmatpush1.msra.mxu0 0.0
        %1665 = vmatprep.subr.mxu0 0.0
        %1666 = vmatpush1.msra.mxu0 0.0
        %1667 = vmatprep.subr.mxu0 0.0
        %1668 = vmatpush1.msra.mxu0 0.0
        %1669 = vmatprep.mubr.f32.mxu0 0.0
        %1670 = vmatmul.mubr.f32.gmra.mrb[0].mxu0 %v1603
        %v1671 = vpop.f32.mrb[0].mxu0
        %v1672 = vadd.f32 0.0, %v1671
        %v1673 = vpop.f32.mrb[0].mxu0
        %1674 = vdwg.mxu0
        %1675 = vrot.lane.b32.xlu0 %v505, 124
        %v1676 = vpop.permute.xlu0 %1675
        %v1679 = vsel %vm1130, %v1217, 0
        %1681 = vmatprep.subr.mxu0 0.0
        %1682 = vmatpush1.msra.mxu0 %v1676
        %1683 = vmatprep.subr.mxu0 0.0
        %1684 = vmatpush1.msra.mxu0 0.0
        %1685 = vmatprep.subr.mxu0 0.0
        %1686 = vmatpush1.msra.mxu0 0.0
        %1687 = vmatprep.subr.mxu0 0.0
        %1688 = vmatpush1.msra.mxu0 0.0
        %1689 = vmatprep.subr.mxu0 0.0
        %1690 = vmatpush1.msra.mxu0 0.0
        %1691 = vmatprep.subr.mxu0 0.0
        %1692 = vmatpush1.msra.mxu0 0.0
        %1693 = vmatprep.subr.mxu0 0.0
        %1694 = vmatpush1.msra.mxu0 0.0
        %1695 = vmatprep.subr.mxu0 0.0
        %1696 = vmatpush1.msra.mxu0 0.0
        %1697 = vmatprep.subr.mxu0 0.0
        %1698 = vmatpush1.msra.mxu0 0.0
        %1699 = vmatprep.subr.mxu0 0.0
        %1700 = vmatpush1.msra.mxu0 0.0
        %1701 = vmatprep.subr.mxu0 0.0
        %1702 = vmatpush1.msra.mxu0 0.0
        %1703 = vmatprep.subr.mxu0 0.0
        %1704 = vmatpush1.msra.mxu0 0.0
        %1705 = vmatprep.subr.mxu0 0.0
        %1706 = vmatpush1.msra.mxu0 0.0
        %1707 = vmatprep.subr.mxu0 0.0
        %1708 = vmatpush1.msra.mxu0 0.0
        %1709 = vmatprep.subr.mxu0 0.0
        %1710 = vmatpush1.msra.mxu0 0.0
        %1711 = vmatprep.subr.mxu0 0.0
        %1712 = vmatpush1.msra.mxu0 0.0
        %1713 = vmatprep.subr.mxu0 0.0
        %1714 = vmatpush1.msra.mxu0 0.0
        %1715 = vmatprep.subr.mxu0 0.0
        %1716 = vmatpush1.msra.mxu0 0.0
        %1717 = vmatprep.subr.mxu0 0.0
        %1718 = vmatpush1.msra.mxu0 0.0
        %1719 = vmatprep.subr.mxu0 0.0
        %1720 = vmatpush1.msra.mxu0 0.0
        %1721 = vmatprep.subr.mxu0 0.0
        %1722 = vmatpush1.msra.mxu0 0.0
        %1723 = vmatprep.subr.mxu0 0.0
        %1724 = vmatpush1.msra.mxu0 0.0
        %1725 = vmatprep.subr.mxu0 0.0
        %1726 = vmatpush1.msra.mxu0 0.0
        %1727 = vmatprep.subr.mxu0 0.0
        %1728 = vmatpush1.msra.mxu0 0.0
        %1729 = vmatprep.subr.mxu0 0.0
        %1730 = vmatpush1.msra.mxu0 0.0
        %1731 = vmatprep.subr.mxu0 0.0
        %1732 = vmatpush1.msra.mxu0 0.0
        %1733 = vmatprep.subr.mxu0 0.0
        %1734 = vmatpush1.msra.mxu0 0.0
        %1735 = vmatprep.subr.mxu0 0.0
        %1736 = vmatpush1.msra.mxu0 0.0
        %1737 = vmatprep.subr.mxu0 0.0
        %1738 = vmatpush1.msra.mxu0 0.0
        %1739 = vmatprep.subr.mxu0 0.0
        %1740 = vmatpush1.msra.mxu0 0.0
        %1741 = vmatprep.subr.mxu0 0.0
        %1742 = vmatpush1.msra.mxu0 0.0
        %1743 = vmatprep.subr.mxu0 0.0
        %1744 = vmatpush1.msra.mxu0 0.0
        %1745 = vmatprep.mubr.f32.mxu0 0.0
        %1746 = vmatmul.mubr.f32.gmra.mrb[0].mxu0 %v1679
        %v1747 = vpop.f32.mrb[0].mxu0
        %v1748 = vadd.f32 0.0, %v1747
        %v1749 = vpop.f32.mrb[0].mxu0
        %1750 = vdwg.mxu0
        %1751 = vrot.lane.b32.xlu0 %v510, 124
        %v1752 = vpop.permute.xlu0 %1751
        %v1755 = vsel %vm1130, %v1218, 0
        %1757 = vmatprep.subr.mxu0 0.0
        %1758 = vmatpush1.msra.mxu0 %v1752
        %1759 = vmatprep.subr.mxu0 0.0
        %1760 = vmatpush1.msra.mxu0 0.0
        %1761 = vmatprep.subr.mxu0 0.0
        %1762 = vmatpush1.msra.mxu0 0.0
        %1763 = vmatprep.subr.mxu0 0.0
        %1764 = vmatpush1.msra.mxu0 0.0
        %1765 = vmatprep.subr.mxu0 0.0
        %1766 = vmatpush1.msra.mxu0 0.0
        %1767 = vmatprep.subr.mxu0 0.0
        %1768 = vmatpush1.msra.mxu0 0.0
        %1769 = vmatprep.subr.mxu0 0.0
        %1770 = vmatpush1.msra.mxu0 0.0
        %1771 = vmatprep.subr.mxu0 0.0
        %1772 = vmatpush1.msra.mxu0 0.0
        %1773 = vmatprep.subr.mxu0 0.0
        %1774 = vmatpush1.msra.mxu0 0.0
        %1775 = vmatprep.subr.mxu0 0.0
        %1776 = vmatpush1.msra.mxu0 0.0
        %1777 = vmatprep.subr.mxu0 0.0
        %1778 = vmatpush1.msra.mxu0 0.0
        %1779 = vmatprep.subr.mxu0 0.0
        %1780 = vmatpush1.msra.mxu0 0.0
        %1781 = vmatprep.subr.mxu0 0.0
        %1782 = vmatpush1.msra.mxu0 0.0
        %1783 = vmatprep.subr.mxu0 0.0
        %1784 = vmatpush1.msra.mxu0 0.0
        %1785 = vmatprep.subr.mxu0 0.0
        %1786 = vmatpush1.msra.mxu0 0.0
        %1787 = vmatprep.subr.mxu0 0.0
        %1788 = vmatpush1.msra.mxu0 0.0
        %1789 = vmatprep.subr.mxu0 0.0
        %1790 = vmatpush1.msra.mxu0 0.0
        %1791 = vmatprep.subr.mxu0 0.0
        %1792 = vmatpush1.msra.mxu0 0.0
        %1793 = vmatprep.subr.mxu0 0.0
        %1794 = vmatpush1.msra.mxu0 0.0
        %1795 = vmatprep.subr.mxu0 0.0
        %1796 = vmatpush1.msra.mxu0 0.0
        %1797 = vmatprep.subr.mxu0 0.0
        %1798 = vmatpush1.msra.mxu0 0.0
        %1799 = vmatprep.subr.mxu0 0.0
        %1800 = vmatpush1.msra.mxu0 0.0
        %1801 = vmatprep.subr.mxu0 0.0
        %1802 = vmatpush1.msra.mxu0 0.0
        %1803 = vmatprep.subr.mxu0 0.0
        %1804 = vmatpush1.msra.mxu0 0.0
        %1805 = vmatprep.subr.mxu0 0.0
        %1806 = vmatpush1.msra.mxu0 0.0
        %1807 = vmatprep.subr.mxu0 0.0
        %1808 = vmatpush1.msra.mxu0 0.0
        %1809 = vmatprep.subr.mxu0 0.0
        %1810 = vmatpush1.msra.mxu0 0.0
        %1811 = vmatprep.subr.mxu0 0.0
        %1812 = vmatpush1.msra.mxu0 0.0
        %1813 = vmatprep.subr.mxu0 0.0
        %1814 = vmatpush1.msra.mxu0 0.0
        %1815 = vmatprep.subr.mxu0 0.0
        %1816 = vmatpush1.msra.mxu0 0.0
        %1817 = vmatprep.subr.mxu0 0.0
        %1818 = vmatpush1.msra.mxu0 0.0
        %1819 = vmatprep.subr.mxu0 0.0
        %1820 = vmatpush1.msra.mxu0 0.0
        %1821 = vmatprep.mubr.f32.mxu0 0.0
        %1822 = vmatmul.mubr.f32.gmra.mrb[0].mxu0 %v1755
        %v1823 = vpop.f32.mrb[0].mxu0
        %v1824 = vadd.f32 0.0, %v1823
        %v1825 = vpop.f32.mrb[0].mxu0
        %1826 = vdwg.mxu0
        %v1827 = vstv %s376
        %v1828 = vmul.f32 %v1827, %v1292
        %v1829 = vmul.f32 %v1827, %v1368
        %v1830 = vmul.f32 %v1827, %v1444
        %v1831 = vmul.f32 %v1827, %v1520
        %v1832 = vmul.f32 %v1827, %v1596
        %v1833 = vmul.f32 %v1827, %v1672
        %v1834 = vmul.f32 %v1827, %v1748
        %v1835 = vmul.f32 %v1827, %v1824
        %v1836 = vadd.f32 %v1828, %v365
        %v1837 = vadd.f32 %v1829, %v366
        %v1838 = vadd.f32 %v1830, %v367
        %v1839 = vadd.f32 %v1831, %v368
        %v1840 = vadd.f32 %v1832, %v369
        %v1841 = vadd.f32 %v1833, %v370
        %v1842 = vadd.f32 %v1834, %v371
        %v1843 = vadd.f32 %v1835, %v372
        %v1844 = vcombine.low %v1836, %v1838
        %v1845 = vcombine.high %v1836, %v1838
        %v1847 = vunpack.c.l.s4 1983009808
        %v1848 = vunpack.c.0.s8 %v1847
        %v1849 = vlaneseq
        %v1850 = vshrl.u32 %v1849, 7
        %v1851 = vsub.s32 %v1848, %v1850
        %v1852 = vrot.slane %v1844, %v1851
        %v1854 = vunpack.c.l.s4 1983009808
        %v1855 = vunpack.c.0.s8 %v1854
        %v1856 = vlaneseq
        %v1857 = vshrl.u32 %v1856, 7
        %v1858 = vsub.s32 %v1855, %v1857
        %v1859 = vrot.slane %v1845, %v1858
        %v1860 = vcombine.low %v1837, %v1839
        %v1861 = vcombine.high %v1837, %v1839
        %v1863 = vunpack.c.l.s4 1983009808
        %v1864 = vunpack.c.0.s8 %v1863
        %v1865 = vlaneseq
        %v1866 = vshrl.u32 %v1865, 7
        %v1867 = vsub.s32 %v1864, %v1866
        %v1868 = vrot.slane %v1860, %v1867
        %v1870 = vunpack.c.l.s4 1983009808
        %v1871 = vunpack.c.0.s8 %v1870
        %v1872 = vlaneseq
        %v1873 = vshrl.u32 %v1872, 7
        %v1874 = vsub.s32 %v1871, %v1873
        %v1875 = vrot.slane %v1861, %v1874
        %v1876 = vcombine.low %v1840, %v1842
        %v1877 = vcombine.high %v1840, %v1842
        %v1879 = vunpack.c.l.s4 1983009808
        %v1880 = vunpack.c.0.s8 %v1879
        %v1881 = vlaneseq
        %v1882 = vshrl.u32 %v1881, 7
        %v1883 = vsub.s32 %v1880, %v1882
        %v1884 = vrot.slane %v1876, %v1883
        %v1886 = vunpack.c.l.s4 1983009808
        %v1887 = vunpack.c.0.s8 %v1886
        %v1888 = vlaneseq
        %v1889 = vshrl.u32 %v1888, 7
        %v1890 = vsub.s32 %v1887, %v1889
        %v1891 = vrot.slane %v1877, %v1890
        %v1892 = vcombine.low %v1841, %v1843
        %v1893 = vcombine.high %v1841, %v1843
        %v1895 = vunpack.c.l.s4 1983009808
        %v1896 = vunpack.c.0.s8 %v1895
        %v1897 = vlaneseq
        %v1898 = vshrl.u32 %v1897, 7
        %v1899 = vsub.s32 %v1896, %v1898
        %v1900 = vrot.slane %v1892, %v1899
        %v1902 = vunpack.c.l.s4 1983009808
        %v1903 = vunpack.c.0.s8 %v1902
        %v1904 = vlaneseq
        %v1905 = vshrl.u32 %v1904, 7
        %v1906 = vsub.s32 %v1903, %v1905
        %v1907 = vrot.slane %v1893, %v1906
        %v1908 = vcombine.low %v1852, %v1868
        %v1909 = vcombine.high %v1852, %v1868
        %v1911 = vunpack.c.l.s4 1934713408
        %v1912 = vunpack.c.0.s8 %v1911
        %v1913 = vlaneseq
        %v1914 = vshrl.u32 %v1913, 7
        %v1915 = vsub.s32 %v1912, %v1914
        %v1916 = vrot.slane %v1908, %v1915
        %v1918 = vunpack.c.l.s4 1934713408
        %v1919 = vunpack.c.0.s8 %v1918
        %v1920 = vlaneseq
        %v1921 = vshrl.u32 %v1920, 7
        %v1922 = vsub.s32 %v1919, %v1921
        %v1923 = vrot.slane %v1909, %v1922
        %v1924 = vcombine.low %v1859, %v1875
        %v1925 = vcombine.high %v1859, %v1875
        %v1927 = vunpack.c.l.s4 1934713408
        %v1928 = vunpack.c.0.s8 %v1927
        %v1929 = vlaneseq
        %v1930 = vshrl.u32 %v1929, 7
        %v1931 = vsub.s32 %v1928, %v1930
        %v1932 = vrot.slane %v1924, %v1931
        %v1934 = vunpack.c.l.s4 1934713408
        %v1935 = vunpack.c.0.s8 %v1934
        %v1936 = vlaneseq
        %v1937 = vshrl.u32 %v1936, 7
        %v1938 = vsub.s32 %v1935, %v1937
        %v1939 = vrot.slane %v1925, %v1938
        %v1940 = vcombine.low %v1884, %v1900
        %v1941 = vcombine.high %v1884, %v1900
        %v1943 = vunpack.c.l.s4 1934713408
        %v1944 = vunpack.c.0.s8 %v1943
        %v1945 = vlaneseq
        %v1946 = vshrl.u32 %v1945, 7
        %v1947 = vsub.s32 %v1944, %v1946
        %v1948 = vrot.slane %v1940, %v1947
        %v1950 = vunpack.c.l.s4 1934713408
        %v1951 = vunpack.c.0.s8 %v1950
        %v1952 = vlaneseq
        %v1953 = vshrl.u32 %v1952, 7
        %v1954 = vsub.s32 %v1951, %v1953
        %v1955 = vrot.slane %v1941, %v1954
        %v1956 = vcombine.low %v1891, %v1907
        %v1957 = vcombine.high %v1891, %v1907
        %v1959 = vunpack.c.l.s4 1934713408
        %v1960 = vunpack.c.0.s8 %v1959
        %v1961 = vlaneseq
        %v1962 = vshrl.u32 %v1961, 7
        %v1963 = vsub.s32 %v1960, %v1962
        %v1964 = vrot.slane %v1956, %v1963
        %v1966 = vunpack.c.l.s4 1934713408
        %v1967 = vunpack.c.0.s8 %v1966
        %v1968 = vlaneseq
        %v1969 = vshrl.u32 %v1968, 7
        %v1970 = vsub.s32 %v1967, %v1969
        %v1971 = vrot.slane %v1957, %v1970
        %v1972 = vcombine.low %v1916, %v1948
        %v1973 = vcombine.high %v1916, %v1948
        %v1974 = vcombine.low %v1923, %v1955
        %v1975 = vcombine.high %v1923, %v1955
        %v1976 = vcombine.low %v1932, %v1964
        %v1977 = vcombine.high %v1932, %v1964
        %v1978 = vcombine.low %v1939, %v1971
        %v1979 = vcombine.high %v1939, %v1971
        %v1980 = vld [vmem:[#allocation9] sm:$0xff]
        %v1981 = vld [vmem:[#allocation9 + $0x8] sm:$0xff]
        %v1982 = vld [vmem:[%s5] sm:$0x1]
        %s1983 = sld [smem:[#allocation2 + $0x1]]
        %v1985 = vlaneseq
        %v1986 = vshrl.u32 %v1985, 7
        %v1987 = vsub.s32 0, %v1986
        %v1988 = vrot.slane %v1982, %v1987
        %v1991 = vsel %vm383, %v1972, 0
        %v1994 = vsel %vm383, %v1973, 0
        %v1997 = vsel %vm383, %v1974, 0
        %v2000 = vsel %vm383, %v1975, 0
        %v2003 = vsel %vm383, %v1976, 0
        %v2006 = vsel %vm383, %v1977, 0
        %v2009 = vsel %vm383, %v1978, 0
        %v2012 = vsel %vm383, %v1979, 0
        %2014 = vmatprep.subr.mxu0 0.0
        %2015 = vmatpush1.msra.mxu0 %v1980
        %2016 = vmatprep.subr.mxu0 0.0
        %2017 = vmatpush1.msra.mxu0 %v1981
        %2018 = vmatprep.subr.mxu0 0.0
        %2019 = vmatpush1.msra.mxu0 0.0
        %2020 = vmatprep.subr.mxu0 0.0
        %2021 = vmatpush1.msra.mxu0 0.0
        %2022 = vmatprep.subr.mxu0 0.0
        %2023 = vmatpush1.msra.mxu0 0.0
        %2024 = vmatprep.subr.mxu0 0.0
        %2025 = vmatpush1.msra.mxu0 0.0
        %2026 = vmatprep.subr.mxu0 0.0
        %2027 = vmatpush1.msra.mxu0 0.0
        %2028 = vmatprep.subr.mxu0 0.0
        %2029 = vmatpush1.msra.mxu0 0.0
        %2030 = vmatprep.subr.mxu0 0.0
        %2031 = vmatpush1.msra.mxu0 0.0
        %2032 = vmatprep.subr.mxu0 0.0
        %2033 = vmatpush1.msra.mxu0 0.0
        %2034 = vmatprep.subr.mxu0 0.0
        %2035 = vmatpush1.msra.mxu0 0.0
        %2036 = vmatprep.subr.mxu0 0.0
        %2037 = vmatpush1.msra.mxu0 0.0
        %2038 = vmatprep.subr.mxu0 0.0
        %2039 = vmatpush1.msra.mxu0 0.0
        %2040 = vmatprep.subr.mxu0 0.0
        %2041 = vmatpush1.msra.mxu0 0.0
        %2042 = vmatprep.subr.mxu0 0.0
        %2043 = vmatpush1.msra.mxu0 0.0
        %2044 = vmatprep.subr.mxu0 0.0
        %2045 = vmatpush1.msra.mxu0 0.0
        %2046 = vmatprep.subr.mxu0 0.0
        %2047 = vmatpush1.msra.mxu0 0.0
        %2048 = vmatprep.subr.mxu0 0.0
        %2049 = vmatpush1.msra.mxu0 0.0
        %2050 = vmatprep.subr.mxu0 0.0
        %2051 = vmatpush1.msra.mxu0 0.0
        %2052 = vmatprep.subr.mxu0 0.0
        %2053 = vmatpush1.msra.mxu0 0.0
        %2054 = vmatprep.subr.mxu0 0.0
        %2055 = vmatpush1.msra.mxu0 0.0
        %2056 = vmatprep.subr.mxu0 0.0
        %2057 = vmatpush1.msra.mxu0 0.0
        %2058 = vmatprep.subr.mxu0 0.0
        %2059 = vmatpush1.msra.mxu0 0.0
        %2060 = vmatprep.subr.mxu0 0.0
        %2061 = vmatpush1.msra.mxu0 0.0
        %2062 = vmatprep.subr.mxu0 0.0
        %2063 = vmatpush1.msra.mxu0 0.0
        %2064 = vmatprep.subr.mxu0 0.0
        %2065 = vmatpush1.msra.mxu0 0.0
        %2066 = vmatprep.subr.mxu0 0.0
        %2067 = vmatpush1.msra.mxu0 0.0
        %2068 = vmatprep.subr.mxu0 0.0
        %2069 = vmatpush1.msra.mxu0 0.0
        %2070 = vmatprep.subr.mxu0 0.0
        %2071 = vmatpush1.msra.mxu0 0.0
        %2072 = vmatprep.subr.mxu0 0.0
        %2073 = vmatpush1.msra.mxu0 0.0
        %2074 = vmatprep.subr.mxu0 0.0
        %2075 = vmatpush1.msra.mxu0 0.0
        %2076 = vmatprep.subr.mxu0 0.0
        %2077 = vmatpush1.msra.mxu0 0.0
        %2078 = vmatprep.mubr.f32.mxu0 0.0
        %2079 = vmatmul.mubr.f32.gmra.mrb[0].mxu0 %v1991
        %v2080 = vpop.f32.mrb[0].mxu0
        %v2081 = vadd.f32 %v1988, %v2080
        %v2082 = vpop.f32.mrb[0].mxu0
        %2083 = vmatprep.mubr.f32.mxu0 0.0
        %2084 = vmatmul.mubr.f32.gmra.mrb[0].mxu0 %v1994
        %v2085 = vpop.f32.mrb[0].mxu0
        %v2086 = vadd.f32 %v1988, %v2085
        %v2087 = vpop.f32.mrb[0].mxu0
        %2088 = vmatprep.mubr.f32.mxu0 0.0
        %2089 = vmatmul.mubr.f32.gmra.mrb[0].mxu0 %v1997
        %v2090 = vpop.f32.mrb[0].mxu0
        %v2091 = vadd.f32 %v1988, %v2090
        %v2092 = vpop.f32.mrb[0].mxu0
        %2093 = vmatprep.mubr.f32.mxu0 0.0
        %2094 = vmatmul.mubr.f32.gmra.mrb[0].mxu0 %v2000
        %v2095 = vpop.f32.mrb[0].mxu0
        %v2096 = vadd.f32 %v1988, %v2095
        %v2097 = vpop.f32.mrb[0].mxu0
        %2098 = vmatprep.mubr.f32.mxu0 0.0
        %2099 = vmatmul.mubr.f32.gmra.mrb[0].mxu0 %v2003
        %v2100 = vpop.f32.mrb[0].mxu0
        %v2101 = vadd.f32 %v1988, %v2100
        %v2102 = vpop.f32.mrb[0].mxu0
        %2103 = vmatprep.mubr.f32.mxu0 0.0
        %2104 = vmatmul.mubr.f32.gmra.mrb[0].mxu0 %v2006
        %v2105 = vpop.f32.mrb[0].mxu0
        %v2106 = vadd.f32 %v1988, %v2105
        %v2107 = vpop.f32.mrb[0].mxu0
        %2108 = vmatprep.mubr.f32.mxu0 0.0
        %2109 = vmatmul.mubr.f32.gmra.mrb[0].mxu0 %v2009
        %v2110 = vpop.f32.mrb[0].mxu0
        %v2111 = vadd.f32 %v1988, %v2110
        %v2112 = vpop.f32.mrb[0].mxu0
        %2113 = vmatprep.mubr.f32.mxu0 0.0
        %2114 = vmatmul.mubr.f32.gmra.mrb[0].mxu0 %v2012
        %v2115 = vpop.f32.mrb[0].mxu0
        %v2116 = vadd.f32 %v1988, %v2115
        %v2117 = vpop.f32.mrb[0].mxu0
        %2118 = vdwg.mxu0
        %2120 = vrot.lane.b32.xlu0 %v2081, 126
        %v2121 = vpop.permute.xlu0 %2120
        %v2122 = vsel %vm516, %v2081, 0
        %v2124 = vsel %vm516, %v2121, 0
        %2126 = vmatprep.subr.mxu0 0.0
        %2127 = vmatpush1.xpose.msra.mxu0 %v2124
        %2128 = vmatprep.subr.mxu0 0.0
        %2129 = vmatpush1.xpose.msra.mxu0 0.0
        %2130 = vmatprep.subr.mxu0 0.0
        %2131 = vmatpush1.xpose.msra.mxu0 0.0
        %2132 = vmatprep.subr.mxu0 0.0
        %2133 = vmatpush1.xpose.msra.mxu0 0.0
        %2134 = vmatprep.subr.mxu0 0.0
        %2135 = vmatpush1.xpose.msra.mxu0 0.0
        %2136 = vmatprep.subr.mxu0 0.0
        %2137 = vmatpush1.xpose.msra.mxu0 0.0
        %2138 = vmatprep.subr.mxu0 0.0
        %2139 = vmatpush1.xpose.msra.mxu0 0.0
        %2140 = vmatprep.subr.mxu0 0.0
        %2141 = vmatpush1.xpose.msra.mxu0 0.0
        %2142 = vmatprep.subr.mxu0 0.0
        %2143 = vmatpush1.xpose.msra.mxu0 0.0
        %2144 = vmatprep.subr.mxu0 0.0
        %2145 = vmatpush1.xpose.msra.mxu0 0.0
        %2146 = vmatprep.subr.mxu0 0.0
        %2147 = vmatpush1.xpose.msra.mxu0 0.0
        %2148 = vmatprep.subr.mxu0 0.0
        %2149 = vmatpush1.xpose.msra.mxu0 0.0
        %2150 = vmatprep.subr.mxu0 0.0
        %2151 = vmatpush1.xpose.msra.mxu0 0.0
        %2152 = vmatprep.subr.mxu0 0.0
        %2153 = vmatpush1.xpose.msra.mxu0 0.0
        %2154 = vmatprep.subr.mxu0 0.0
        %2155 = vmatpush1.xpose.msra.mxu0 0.0
        %2156 = vmatprep.subr.mxu0 0.0
        %2157 = vmatpush1.xpose.msra.mxu0 0.0
        %2158 = vmatprep.subr.mxu0 0.0
        %2159 = vmatpush1.xpose.msra.mxu0 0.0
        %2160 = vmatprep.subr.mxu0 0.0
        %2161 = vmatpush1.xpose.msra.mxu0 0.0
        %2162 = vmatprep.subr.mxu0 0.0
        %2163 = vmatpush1.xpose.msra.mxu0 0.0
        %2164 = vmatprep.subr.mxu0 0.0
        %2165 = vmatpush1.xpose.msra.mxu0 0.0
        %2166 = vmatprep.subr.mxu0 0.0
        %2167 = vmatpush1.xpose.msra.mxu0 0.0
        %2168 = vmatprep.subr.mxu0 0.0
        %2169 = vmatpush1.xpose.msra.mxu0 0.0
        %2170 = vmatprep.subr.mxu0 0.0
        %2171 = vmatpush1.xpose.msra.mxu0 0.0
        %2172 = vmatprep.subr.mxu0 0.0
        %2173 = vmatpush1.xpose.msra.mxu0 0.0
        %2174 = vmatprep.subr.mxu0 0.0
        %2175 = vmatpush1.xpose.msra.mxu0 0.0
        %2176 = vmatprep.subr.mxu0 0.0
        %2177 = vmatpush1.xpose.msra.mxu0 0.0
        %2178 = vmatprep.subr.mxu0 0.0
        %2179 = vmatpush1.xpose.msra.mxu0 0.0
        %2180 = vmatprep.subr.mxu0 0.0
        %2181 = vmatpush1.xpose.msra.mxu0 0.0
        %2182 = vmatprep.subr.mxu0 0.0
        %2183 = vmatpush1.xpose.msra.mxu0 0.0
        %2184 = vmatprep.subr.mxu0 0.0
        %2185 = vmatpush1.xpose.msra.mxu0 0.0
        %2186 = vmatprep.subr.mxu0 0.0
        %2187 = vmatpush1.xpose.msra.mxu0 0.0
        %2188 = vmatprep.subr.mxu0 0.0
        %2189 = vmatpush1.xpose.msra.mxu0 0.0
        %2190 = vmatprep.mubr.f32.mxu0 0.0
        %2191 = vmatmul.mubr.f32.gmra.mrb[0].mxu0 %v2122
        %v2192 = vpop.f32.mrb[0].mxu0
        %v2193 = vadd.f32 0.0, %v2192
        %v2194 = vpop.f32.mrb[0].mxu0
        %2195 = vdwg.mxu0
        %2197 = vrot.lane.b32.xlu0 %v2086, 126
        %v2198 = vpop.permute.xlu0 %2197
        %v2199 = vsel %vm516, %v2086, 0
        %v2201 = vsel %vm516, %v2198, 0
        %2203 = vmatprep.subr.mxu0 0.0
        %2204 = vmatpush1.xpose.msra.mxu0 %v2201
        %2205 = vmatprep.subr.mxu0 0.0
        %2206 = vmatpush1.xpose.msra.mxu0 0.0
        %2207 = vmatprep.subr.mxu0 0.0
        %2208 = vmatpush1.xpose.msra.mxu0 0.0
        %2209 = vmatprep.subr.mxu0 0.0
        %2210 = vmatpush1.xpose.msra.mxu0 0.0
        %2211 = vmatprep.subr.mxu0 0.0
        %2212 = vmatpush1.xpose.msra.mxu0 0.0
        %2213 = vmatprep.subr.mxu0 0.0
        %2214 = vmatpush1.xpose.msra.mxu0 0.0
        %2215 = vmatprep.subr.mxu0 0.0
        %2216 = vmatpush1.xpose.msra.mxu0 0.0
        %2217 = vmatprep.subr.mxu0 0.0
        %2218 = vmatpush1.xpose.msra.mxu0 0.0
        %2219 = vmatprep.subr.mxu0 0.0
        %2220 = vmatpush1.xpose.msra.mxu0 0.0
        %2221 = vmatprep.subr.mxu0 0.0
        %2222 = vmatpush1.xpose.msra.mxu0 0.0
        %2223 = vmatprep.subr.mxu0 0.0
        %2224 = vmatpush1.xpose.msra.mxu0 0.0
        %2225 = vmatprep.subr.mxu0 0.0
        %2226 = vmatpush1.xpose.msra.mxu0 0.0
        %2227 = vmatprep.subr.mxu0 0.0
        %2228 = vmatpush1.xpose.msra.mxu0 0.0
        %2229 = vmatprep.subr.mxu0 0.0
        %2230 = vmatpush1.xpose.msra.mxu0 0.0
        %2231 = vmatprep.subr.mxu0 0.0
        %2232 = vmatpush1.xpose.msra.mxu0 0.0
        %2233 = vmatprep.subr.mxu0 0.0
        %2234 = vmatpush1.xpose.msra.mxu0 0.0
        %2235 = vmatprep.subr.mxu0 0.0
        %2236 = vmatpush1.xpose.msra.mxu0 0.0
        %2237 = vmatprep.subr.mxu0 0.0
        %2238 = vmatpush1.xpose.msra.mxu0 0.0
        %2239 = vmatprep.subr.mxu0 0.0
        %2240 = vmatpush1.xpose.msra.mxu0 0.0
        %2241 = vmatprep.subr.mxu0 0.0
        %2242 = vmatpush1.xpose.msra.mxu0 0.0
        %2243 = vmatprep.subr.mxu0 0.0
        %2244 = vmatpush1.xpose.msra.mxu0 0.0
        %2245 = vmatprep.subr.mxu0 0.0
        %2246 = vmatpush1.xpose.msra.mxu0 0.0
        %2247 = vmatprep.subr.mxu0 0.0
        %2248 = vmatpush1.xpose.msra.mxu0 0.0
        %2249 = vmatprep.subr.mxu0 0.0
        %2250 = vmatpush1.xpose.msra.mxu0 0.0
        %2251 = vmatprep.subr.mxu0 0.0
        %2252 = vmatpush1.xpose.msra.mxu0 0.0
        %2253 = vmatprep.subr.mxu0 0.0
        %2254 = vmatpush1.xpose.msra.mxu0 0.0
        %2255 = vmatprep.subr.mxu0 0.0
        %2256 = vmatpush1.xpose.msra.mxu0 0.0
        %2257 = vmatprep.subr.mxu0 0.0
        %2258 = vmatpush1.xpose.msra.mxu0 0.0
        %2259 = vmatprep.subr.mxu0 0.0
        %2260 = vmatpush1.xpose.msra.mxu0 0.0
        %2261 = vmatprep.subr.mxu0 0.0
        %2262 = vmatpush1.xpose.msra.mxu0 0.0
        %2263 = vmatprep.subr.mxu0 0.0
        %2264 = vmatpush1.xpose.msra.mxu0 0.0
        %2265 = vmatprep.subr.mxu0 0.0
        %2266 = vmatpush1.xpose.msra.mxu0 0.0
        %2267 = vmatprep.mubr.f32.mxu0 0.0
        %2268 = vmatmul.mubr.f32.gmra.mrb[0].mxu0 %v2199
        %v2269 = vpop.f32.mrb[0].mxu0
        %v2270 = vadd.f32 0.0, %v2269
        %v2271 = vpop.f32.mrb[0].mxu0
        %2272 = vdwg.mxu0
        %2274 = vrot.lane.b32.xlu0 %v2091, 126
        %v2275 = vpop.permute.xlu0 %2274
        %v2276 = vsel %vm516, %v2091, 0
        %v2278 = vsel %vm516, %v2275, 0
        %2280 = vmatprep.subr.mxu0 0.0
        %2281 = vmatpush1.xpose.msra.mxu0 %v2278
        %2282 = vmatprep.subr.mxu0 0.0
        %2283 = vmatpush1.xpose.msra.mxu0 0.0
        %2284 = vmatprep.subr.mxu0 0.0
        %2285 = vmatpush1.xpose.msra.mxu0 0.0
        %2286 = vmatprep.subr.mxu0 0.0
        %2287 = vmatpush1.xpose.msra.mxu0 0.0
        %2288 = vmatprep.subr.mxu0 0.0
        %2289 = vmatpush1.xpose.msra.mxu0 0.0
        %2290 = vmatprep.subr.mxu0 0.0
        %2291 = vmatpush1.xpose.msra.mxu0 0.0
        %2292 = vmatprep.subr.mxu0 0.0
        %2293 = vmatpush1.xpose.msra.mxu0 0.0
        %2294 = vmatprep.subr.mxu0 0.0
        %2295 = vmatpush1.xpose.msra.mxu0 0.0
        %2296 = vmatprep.subr.mxu0 0.0
        %2297 = vmatpush1.xpose.msra.mxu0 0.0
        %2298 = vmatprep.subr.mxu0 0.0
        %2299 = vmatpush1.xpose.msra.mxu0 0.0
        %2300 = vmatprep.subr.mxu0 0.0
        %2301 = vmatpush1.xpose.msra.mxu0 0.0
        %2302 = vmatprep.subr.mxu0 0.0
        %2303 = vmatpush1.xpose.msra.mxu0 0.0
        %2304 = vmatprep.subr.mxu0 0.0
        %2305 = vmatpush1.xpose.msra.mxu0 0.0
        %2306 = vmatprep.subr.mxu0 0.0
        %2307 = vmatpush1.xpose.msra.mxu0 0.0
        %2308 = vmatprep.subr.mxu0 0.0
        %2309 = vmatpush1.xpose.msra.mxu0 0.0
        %2310 = vmatprep.subr.mxu0 0.0
        %2311 = vmatpush1.xpose.msra.mxu0 0.0
        %2312 = vmatprep.subr.mxu0 0.0
        %2313 = vmatpush1.xpose.msra.mxu0 0.0
        %2314 = vmatprep.subr.mxu0 0.0
        %2315 = vmatpush1.xpose.msra.mxu0 0.0
        %2316 = vmatprep.subr.mxu0 0.0
        %2317 = vmatpush1.xpose.msra.mxu0 0.0
        %2318 = vmatprep.subr.mxu0 0.0
        %2319 = vmatpush1.xpose.msra.mxu0 0.0
        %2320 = vmatprep.subr.mxu0 0.0
        %2321 = vmatpush1.xpose.msra.mxu0 0.0
        %2322 = vmatprep.subr.mxu0 0.0
        %2323 = vmatpush1.xpose.msra.mxu0 0.0
        %2324 = vmatprep.subr.mxu0 0.0
        %2325 = vmatpush1.xpose.msra.mxu0 0.0
        %2326 = vmatprep.subr.mxu0 0.0
        %2327 = vmatpush1.xpose.msra.mxu0 0.0
        %2328 = vmatprep.subr.mxu0 0.0
        %2329 = vmatpush1.xpose.msra.mxu0 0.0
        %2330 = vmatprep.subr.mxu0 0.0
        %2331 = vmatpush1.xpose.msra.mxu0 0.0
        %2332 = vmatprep.subr.mxu0 0.0
        %2333 = vmatpush1.xpose.msra.mxu0 0.0
        %2334 = vmatprep.subr.mxu0 0.0
        %2335 = vmatpush1.xpose.msra.mxu0 0.0
        %2336 = vmatprep.subr.mxu0 0.0
        %2337 = vmatpush1.xpose.msra.mxu0 0.0
        %2338 = vmatprep.subr.mxu0 0.0
        %2339 = vmatpush1.xpose.msra.mxu0 0.0
        %2340 = vmatprep.subr.mxu0 0.0
        %2341 = vmatpush1.xpose.msra.mxu0 0.0
        %2342 = vmatprep.subr.mxu0 0.0
        %2343 = vmatpush1.xpose.msra.mxu0 0.0
        %2344 = vmatprep.mubr.f32.mxu0 0.0
        %2345 = vmatmul.mubr.f32.gmra.mrb[0].mxu0 %v2276
        %v2346 = vpop.f32.mrb[0].mxu0
        %v2347 = vadd.f32 0.0, %v2346
        %v2348 = vpop.f32.mrb[0].mxu0
        %2349 = vdwg.mxu0
        %2351 = vrot.lane.b32.xlu0 %v2096, 126
        %v2352 = vpop.permute.xlu0 %2351
        %v2353 = vsel %vm516, %v2096, 0
        %v2355 = vsel %vm516, %v2352, 0
        %2357 = vmatprep.subr.mxu0 0.0
        %2358 = vmatpush1.xpose.msra.mxu0 %v2355
        %2359 = vmatprep.subr.mxu0 0.0
        %2360 = vmatpush1.xpose.msra.mxu0 0.0
        %2361 = vmatprep.subr.mxu0 0.0
        %2362 = vmatpush1.xpose.msra.mxu0 0.0
        %2363 = vmatprep.subr.mxu0 0.0
        %2364 = vmatpush1.xpose.msra.mxu0 0.0
        %2365 = vmatprep.subr.mxu0 0.0
        %2366 = vmatpush1.xpose.msra.mxu0 0.0
        %2367 = vmatprep.subr.mxu0 0.0
        %2368 = vmatpush1.xpose.msra.mxu0 0.0
        %2369 = vmatprep.subr.mxu0 0.0
        %2370 = vmatpush1.xpose.msra.mxu0 0.0
        %2371 = vmatprep.subr.mxu0 0.0
        %2372 = vmatpush1.xpose.msra.mxu0 0.0
        %2373 = vmatprep.subr.mxu0 0.0
        %2374 = vmatpush1.xpose.msra.mxu0 0.0
        %2375 = vmatprep.subr.mxu0 0.0
        %2376 = vmatpush1.xpose.msra.mxu0 0.0
        %2377 = vmatprep.subr.mxu0 0.0
        %2378 = vmatpush1.xpose.msra.mxu0 0.0
        %2379 = vmatprep.subr.mxu0 0.0
        %2380 = vmatpush1.xpose.msra.mxu0 0.0
        %2381 = vmatprep.subr.mxu0 0.0
        %2382 = vmatpush1.xpose.msra.mxu0 0.0
        %2383 = vmatprep.subr.mxu0 0.0
        %2384 = vmatpush1.xpose.msra.mxu0 0.0
        %2385 = vmatprep.subr.mxu0 0.0
        %2386 = vmatpush1.xpose.msra.mxu0 0.0
        %2387 = vmatprep.subr.mxu0 0.0
        %2388 = vmatpush1.xpose.msra.mxu0 0.0
        %2389 = vmatprep.subr.mxu0 0.0
        %2390 = vmatpush1.xpose.msra.mxu0 0.0
        %2391 = vmatprep.subr.mxu0 0.0
        %2392 = vmatpush1.xpose.msra.mxu0 0.0
        %2393 = vmatprep.subr.mxu0 0.0
        %2394 = vmatpush1.xpose.msra.mxu0 0.0
        %2395 = vmatprep.subr.mxu0 0.0
        %2396 = vmatpush1.xpose.msra.mxu0 0.0
        %2397 = vmatprep.subr.mxu0 0.0
        %2398 = vmatpush1.xpose.msra.mxu0 0.0
        %2399 = vmatprep.subr.mxu0 0.0
        %2400 = vmatpush1.xpose.msra.mxu0 0.0
        %2401 = vmatprep.subr.mxu0 0.0
        %2402 = vmatpush1.xpose.msra.mxu0 0.0
        %2403 = vmatprep.subr.mxu0 0.0
        %2404 = vmatpush1.xpose.msra.mxu0 0.0
        %2405 = vmatprep.subr.mxu0 0.0
        %2406 = vmatpush1.xpose.msra.mxu0 0.0
        %2407 = vmatprep.subr.mxu0 0.0
        %2408 = vmatpush1.xpose.msra.mxu0 0.0
        %2409 = vmatprep.subr.mxu0 0.0
        %2410 = vmatpush1.xpose.msra.mxu0 0.0
        %2411 = vmatprep.subr.mxu0 0.0
        %2412 = vmatpush1.xpose.msra.mxu0 0.0
        %2413 = vmatprep.subr.mxu0 0.0
        %2414 = vmatpush1.xpose.msra.mxu0 0.0
        %2415 = vmatprep.subr.mxu0 0.0
        %2416 = vmatpush1.xpose.msra.mxu0 0.0
        %2417 = vmatprep.subr.mxu0 0.0
        %2418 = vmatpush1.xpose.msra.mxu0 0.0
        %2419 = vmatprep.subr.mxu0 0.0
        %2420 = vmatpush1.xpose.msra.mxu0 0.0
        %2421 = vmatprep.mubr.f32.mxu0 0.0
        %2422 = vmatmul.mubr.f32.gmra.mrb[0].mxu0 %v2353
        %v2423 = vpop.f32.mrb[0].mxu0
        %v2424 = vadd.f32 0.0, %v2423
        %v2425 = vpop.f32.mrb[0].mxu0
        %2426 = vdwg.mxu0
        %2428 = vrot.lane.b32.xlu0 %v2101, 126
        %v2429 = vpop.permute.xlu0 %2428
        %v2430 = vsel %vm516, %v2101, 0
        %v2432 = vsel %vm516, %v2429, 0
        %2434 = vmatprep.subr.mxu0 0.0
        %2435 = vmatpush1.xpose.msra.mxu0 %v2432
        %2436 = vmatprep.subr.mxu0 0.0
        %2437 = vmatpush1.xpose.msra.mxu0 0.0
        %2438 = vmatprep.subr.mxu0 0.0
        %2439 = vmatpush1.xpose.msra.mxu0 0.0
        %2440 = vmatprep.subr.mxu0 0.0
        %2441 = vmatpush1.xpose.msra.mxu0 0.0
        %2442 = vmatprep.subr.mxu0 0.0
        %2443 = vmatpush1.xpose.msra.mxu0 0.0
        %2444 = vmatprep.subr.mxu0 0.0
        %2445 = vmatpush1.xpose.msra.mxu0 0.0
        %2446 = vmatprep.subr.mxu0 0.0
        %2447 = vmatpush1.xpose.msra.mxu0 0.0
        %2448 = vmatprep.subr.mxu0 0.0
        %2449 = vmatpush1.xpose.msra.mxu0 0.0
        %2450 = vmatprep.subr.mxu0 0.0
        %2451 = vmatpush1.xpose.msra.mxu0 0.0
        %2452 = vmatprep.subr.mxu0 0.0
        %2453 = vmatpush1.xpose.msra.mxu0 0.0
        %2454 = vmatprep.subr.mxu0 0.0
        %2455 = vmatpush1.xpose.msra.mxu0 0.0
        %2456 = vmatprep.subr.mxu0 0.0
        %2457 = vmatpush1.xpose.msra.mxu0 0.0
        %2458 = vmatprep.subr.mxu0 0.0
        %2459 = vmatpush1.xpose.msra.mxu0 0.0
        %2460 = vmatprep.subr.mxu0 0.0
        %2461 = vmatpush1.xpose.msra.mxu0 0.0
        %2462 = vmatprep.subr.mxu0 0.0
        %2463 = vmatpush1.xpose.msra.mxu0 0.0
        %2464 = vmatprep.subr.mxu0 0.0
        %2465 = vmatpush1.xpose.msra.mxu0 0.0
        %2466 = vmatprep.subr.mxu0 0.0
        %2467 = vmatpush1.xpose.msra.mxu0 0.0
        %2468 = vmatprep.subr.mxu0 0.0
        %2469 = vmatpush1.xpose.msra.mxu0 0.0
        %2470 = vmatprep.subr.mxu0 0.0
        %2471 = vmatpush1.xpose.msra.mxu0 0.0
        %2472 = vmatprep.subr.mxu0 0.0
        %2473 = vmatpush1.xpose.msra.mxu0 0.0
        %2474 = vmatprep.subr.mxu0 0.0
        %2475 = vmatpush1.xpose.msra.mxu0 0.0
        %2476 = vmatprep.subr.mxu0 0.0
        %2477 = vmatpush1.xpose.msra.mxu0 0.0
        %2478 = vmatprep.subr.mxu0 0.0
        %2479 = vmatpush1.xpose.msra.mxu0 0.0
        %2480 = vmatprep.subr.mxu0 0.0
        %2481 = vmatpush1.xpose.msra.mxu0 0.0
        %2482 = vmatprep.subr.mxu0 0.0
        %2483 = vmatpush1.xpose.msra.mxu0 0.0
        %2484 = vmatprep.subr.mxu0 0.0
        %2485 = vmatpush1.xpose.msra.mxu0 0.0
        %2486 = vmatprep.subr.mxu0 0.0
        %2487 = vmatpush1.xpose.msra.mxu0 0.0
        %2488 = vmatprep.subr.mxu0 0.0
        %2489 = vmatpush1.xpose.msra.mxu0 0.0
        %2490 = vmatprep.subr.mxu0 0.0
        %2491 = vmatpush1.xpose.msra.mxu0 0.0
        %2492 = vmatprep.subr.mxu0 0.0
        %2493 = vmatpush1.xpose.msra.mxu0 0.0
        %2494 = vmatprep.subr.mxu0 0.0
        %2495 = vmatpush1.xpose.msra.mxu0 0.0
        %2496 = vmatprep.subr.mxu0 0.0
        %2497 = vmatpush1.xpose.msra.mxu0 0.0
        %2498 = vmatprep.mubr.f32.mxu0 0.0
        %2499 = vmatmul.mubr.f32.gmra.mrb[0].mxu0 %v2430
        %v2500 = vpop.f32.mrb[0].mxu0
        %v2501 = vadd.f32 0.0, %v2500
        %v2502 = vpop.f32.mrb[0].mxu0
        %2503 = vdwg.mxu0
        %2505 = vrot.lane.b32.xlu0 %v2106, 126
        %v2506 = vpop.permute.xlu0 %2505
        %v2507 = vsel %vm516, %v2106, 0
        %v2509 = vsel %vm516, %v2506, 0
        %2511 = vmatprep.subr.mxu0 0.0
        %2512 = vmatpush1.xpose.msra.mxu0 %v2509
        %2513 = vmatprep.subr.mxu0 0.0
        %2514 = vmatpush1.xpose.msra.mxu0 0.0
        %2515 = vmatprep.subr.mxu0 0.0
        %2516 = vmatpush1.xpose.msra.mxu0 0.0
        %2517 = vmatprep.subr.mxu0 0.0
        %2518 = vmatpush1.xpose.msra.mxu0 0.0
        %2519 = vmatprep.subr.mxu0 0.0
        %2520 = vmatpush1.xpose.msra.mxu0 0.0
        %2521 = vmatprep.subr.mxu0 0.0
        %2522 = vmatpush1.xpose.msra.mxu0 0.0
        %2523 = vmatprep.subr.mxu0 0.0
        %2524 = vmatpush1.xpose.msra.mxu0 0.0
        %2525 = vmatprep.subr.mxu0 0.0
        %2526 = vmatpush1.xpose.msra.mxu0 0.0
        %2527 = vmatprep.subr.mxu0 0.0
        %2528 = vmatpush1.xpose.msra.mxu0 0.0
        %2529 = vmatprep.subr.mxu0 0.0
        %2530 = vmatpush1.xpose.msra.mxu0 0.0
        %2531 = vmatprep.subr.mxu0 0.0
        %2532 = vmatpush1.xpose.msra.mxu0 0.0
        %2533 = vmatprep.subr.mxu0 0.0
        %2534 = vmatpush1.xpose.msra.mxu0 0.0
        %2535 = vmatprep.subr.mxu0 0.0
        %2536 = vmatpush1.xpose.msra.mxu0 0.0
        %2537 = vmatprep.subr.mxu0 0.0
        %2538 = vmatpush1.xpose.msra.mxu0 0.0
        %2539 = vmatprep.subr.mxu0 0.0
        %2540 = vmatpush1.xpose.msra.mxu0 0.0
        %2541 = vmatprep.subr.mxu0 0.0
        %2542 = vmatpush1.xpose.msra.mxu0 0.0
        %2543 = vmatprep.subr.mxu0 0.0
        %2544 = vmatpush1.xpose.msra.mxu0 0.0
        %2545 = vmatprep.subr.mxu0 0.0
        %2546 = vmatpush1.xpose.msra.mxu0 0.0
        %2547 = vmatprep.subr.mxu0 0.0
        %2548 = vmatpush1.xpose.msra.mxu0 0.0
        %2549 = vmatprep.subr.mxu0 0.0
        %2550 = vmatpush1.xpose.msra.mxu0 0.0
        %2551 = vmatprep.subr.mxu0 0.0
        %2552 = vmatpush1.xpose.msra.mxu0 0.0
        %2553 = vmatprep.subr.mxu0 0.0
        %2554 = vmatpush1.xpose.msra.mxu0 0.0
        %2555 = vmatprep.subr.mxu0 0.0
        %2556 = vmatpush1.xpose.msra.mxu0 0.0
        %2557 = vmatprep.subr.mxu0 0.0
        %2558 = vmatpush1.xpose.msra.mxu0 0.0
        %2559 = vmatprep.subr.mxu0 0.0
        %2560 = vmatpush1.xpose.msra.mxu0 0.0
        %2561 = vmatprep.subr.mxu0 0.0
        %2562 = vmatpush1.xpose.msra.mxu0 0.0
        %2563 = vmatprep.subr.mxu0 0.0
        %2564 = vmatpush1.xpose.msra.mxu0 0.0
        %2565 = vmatprep.subr.mxu0 0.0
        %2566 = vmatpush1.xpose.msra.mxu0 0.0
        %2567 = vmatprep.subr.mxu0 0.0
        %2568 = vmatpush1.xpose.msra.mxu0 0.0
        %2569 = vmatprep.subr.mxu0 0.0
        %2570 = vmatpush1.xpose.msra.mxu0 0.0
        %2571 = vmatprep.subr.mxu0 0.0
        %2572 = vmatpush1.xpose.msra.mxu0 0.0
        %2573 = vmatprep.subr.mxu0 0.0
        %2574 = vmatpush1.xpose.msra.mxu0 0.0
        %2575 = vmatprep.mubr.f32.mxu0 0.0
        %2576 = vmatmul.mubr.f32.gmra.mrb[0].mxu0 %v2507
        %v2577 = vpop.f32.mrb[0].mxu0
        %v2578 = vadd.f32 0.0, %v2577
        %v2579 = vpop.f32.mrb[0].mxu0
        %2580 = vdwg.mxu0
        %2582 = vrot.lane.b32.xlu0 %v2111, 126
        %v2583 = vpop.permute.xlu0 %2582
        %v2584 = vsel %vm516, %v2111, 0
        %v2586 = vsel %vm516, %v2583, 0
        %2588 = vmatprep.subr.mxu0 0.0
        %2589 = vmatpush1.xpose.msra.mxu0 %v2586
        %2590 = vmatprep.subr.mxu0 0.0
        %2591 = vmatpush1.xpose.msra.mxu0 0.0
        %2592 = vmatprep.subr.mxu0 0.0
        %2593 = vmatpush1.xpose.msra.mxu0 0.0
        %2594 = vmatprep.subr.mxu0 0.0
        %2595 = vmatpush1.xpose.msra.mxu0 0.0
        %2596 = vmatprep.subr.mxu0 0.0
        %2597 = vmatpush1.xpose.msra.mxu0 0.0
        %2598 = vmatprep.subr.mxu0 0.0
        %2599 = vmatpush1.xpose.msra.mxu0 0.0
        %2600 = vmatprep.subr.mxu0 0.0
        %2601 = vmatpush1.xpose.msra.mxu0 0.0
        %2602 = vmatprep.subr.mxu0 0.0
        %2603 = vmatpush1.xpose.msra.mxu0 0.0
        %2604 = vmatprep.subr.mxu0 0.0
        %2605 = vmatpush1.xpose.msra.mxu0 0.0
        %2606 = vmatprep.subr.mxu0 0.0
        %2607 = vmatpush1.xpose.msra.mxu0 0.0
        %2608 = vmatprep.subr.mxu0 0.0
        %2609 = vmatpush1.xpose.msra.mxu0 0.0
        %2610 = vmatprep.subr.mxu0 0.0
        %2611 = vmatpush1.xpose.msra.mxu0 0.0
        %2612 = vmatprep.subr.mxu0 0.0
        %2613 = vmatpush1.xpose.msra.mxu0 0.0
        %2614 = vmatprep.subr.mxu0 0.0
        %2615 = vmatpush1.xpose.msra.mxu0 0.0
        %2616 = vmatprep.subr.mxu0 0.0
        %2617 = vmatpush1.xpose.msra.mxu0 0.0
        %2618 = vmatprep.subr.mxu0 0.0
        %2619 = vmatpush1.xpose.msra.mxu0 0.0
        %2620 = vmatprep.subr.mxu0 0.0
        %2621 = vmatpush1.xpose.msra.mxu0 0.0
        %2622 = vmatprep.subr.mxu0 0.0
        %2623 = vmatpush1.xpose.msra.mxu0 0.0
        %2624 = vmatprep.subr.mxu0 0.0
        %2625 = vmatpush1.xpose.msra.mxu0 0.0
        %2626 = vmatprep.subr.mxu0 0.0
        %2627 = vmatpush1.xpose.msra.mxu0 0.0
        %2628 = vmatprep.subr.mxu0 0.0
        %2629 = vmatpush1.xpose.msra.mxu0 0.0
        %2630 = vmatprep.subr.mxu0 0.0
        %2631 = vmatpush1.xpose.msra.mxu0 0.0
        %2632 = vmatprep.subr.mxu0 0.0
        %2633 = vmatpush1.xpose.msra.mxu0 0.0
        %2634 = vmatprep.subr.mxu0 0.0
        %2635 = vmatpush1.xpose.msra.mxu0 0.0
        %2636 = vmatprep.subr.mxu0 0.0
        %2637 = vmatpush1.xpose.msra.mxu0 0.0
        %2638 = vmatprep.subr.mxu0 0.0
        %2639 = vmatpush1.xpose.msra.mxu0 0.0
        %2640 = vmatprep.subr.mxu0 0.0
        %2641 = vmatpush1.xpose.msra.mxu0 0.0
        %2642 = vmatprep.subr.mxu0 0.0
        %2643 = vmatpush1.xpose.msra.mxu0 0.0
        %2644 = vmatprep.subr.mxu0 0.0
        %2645 = vmatpush1.xpose.msra.mxu0 0.0
        %2646 = vmatprep.subr.mxu0 0.0
        %2647 = vmatpush1.xpose.msra.mxu0 0.0
        %2648 = vmatprep.subr.mxu0 0.0
        %2649 = vmatpush1.xpose.msra.mxu0 0.0
        %2650 = vmatprep.subr.mxu0 0.0
        %2651 = vmatpush1.xpose.msra.mxu0 0.0
        %2652 = vmatprep.mubr.f32.mxu0 0.0
        %2653 = vmatmul.mubr.f32.gmra.mrb[0].mxu0 %v2584
        %v2654 = vpop.f32.mrb[0].mxu0
        %v2655 = vadd.f32 0.0, %v2654
        %v2656 = vpop.f32.mrb[0].mxu0
        %2657 = vdwg.mxu0
        %2659 = vrot.lane.b32.xlu0 %v2116, 126
        %v2660 = vpop.permute.xlu0 %2659
        %v2661 = vsel %vm516, %v2116, 0
        %v2663 = vsel %vm516, %v2660, 0
        %2665 = vmatprep.subr.mxu0 0.0
        %2666 = vmatpush1.xpose.msra.mxu0 %v2663
        %2667 = vmatprep.subr.mxu0 0.0
        %2668 = vmatpush1.xpose.msra.mxu0 0.0
        %2669 = vmatprep.subr.mxu0 0.0
        %2670 = vmatpush1.xpose.msra.mxu0 0.0
        %2671 = vmatprep.subr.mxu0 0.0
        %2672 = vmatpush1.xpose.msra.mxu0 0.0
        %2673 = vmatprep.subr.mxu0 0.0
        %2674 = vmatpush1.xpose.msra.mxu0 0.0
        %2675 = vmatprep.subr.mxu0 0.0
        %2676 = vmatpush1.xpose.msra.mxu0 0.0
        %2677 = vmatprep.subr.mxu0 0.0
        %2678 = vmatpush1.xpose.msra.mxu0 0.0
        %2679 = vmatprep.subr.mxu0 0.0
        %2680 = vmatpush1.xpose.msra.mxu0 0.0
        %2681 = vmatprep.subr.mxu0 0.0
        %2682 = vmatpush1.xpose.msra.mxu0 0.0
        %2683 = vmatprep.subr.mxu0 0.0
        %2684 = vmatpush1.xpose.msra.mxu0 0.0
        %2685 = vmatprep.subr.mxu0 0.0
        %2686 = vmatpush1.xpose.msra.mxu0 0.0
        %2687 = vmatprep.subr.mxu0 0.0
        %2688 = vmatpush1.xpose.msra.mxu0 0.0
        %2689 = vmatprep.subr.mxu0 0.0
        %2690 = vmatpush1.xpose.msra.mxu0 0.0
        %2691 = vmatprep.subr.mxu0 0.0
        %2692 = vmatpush1.xpose.msra.mxu0 0.0
        %2693 = vmatprep.subr.mxu0 0.0
        %2694 = vmatpush1.xpose.msra.mxu0 0.0
        %2695 = vmatprep.subr.mxu0 0.0
        %2696 = vmatpush1.xpose.msra.mxu0 0.0
        %2697 = vmatprep.subr.mxu0 0.0
        %2698 = vmatpush1.xpose.msra.mxu0 0.0
        %2699 = vmatprep.subr.mxu0 0.0
        %2700 = vmatpush1.xpose.msra.mxu0 0.0
        %2701 = vmatprep.subr.mxu0 0.0
        %2702 = vmatpush1.xpose.msra.mxu0 0.0
        %2703 = vmatprep.subr.mxu0 0.0
        %2704 = vmatpush1.xpose.msra.mxu0 0.0
        %2705 = vmatprep.subr.mxu0 0.0
        %2706 = vmatpush1.xpose.msra.mxu0 0.0
        %2707 = vmatprep.subr.mxu0 0.0
        %2708 = vmatpush1.xpose.msra.mxu0 0.0
        %2709 = vmatprep.subr.mxu0 0.0
        %2710 = vmatpush1.xpose.msra.mxu0 0.0
        %2711 = vmatprep.subr.mxu0 0.0
        %2712 = vmatpush1.xpose.msra.mxu0 0.0
        %2713 = vmatprep.subr.mxu0 0.0
        %2714 = vmatpush1.xpose.msra.mxu0 0.0
        %2715 = vmatprep.subr.mxu0 0.0
        %2716 = vmatpush1.xpose.msra.mxu0 0.0
        %2717 = vmatprep.subr.mxu0 0.0
        %2718 = vmatpush1.xpose.msra.mxu0 0.0
        %2719 = vmatprep.subr.mxu0 0.0
        %2720 = vmatpush1.xpose.msra.mxu0 0.0
        %2721 = vmatprep.subr.mxu0 0.0
        %2722 = vmatpush1.xpose.msra.mxu0 0.0
        %2723 = vmatprep.subr.mxu0 0.0
        %2724 = vmatpush1.xpose.msra.mxu0 0.0
        %2725 = vmatprep.subr.mxu0 0.0
        %2726 = vmatpush1.xpose.msra.mxu0 0.0
        %2727 = vmatprep.subr.mxu0 0.0
        %2728 = vmatpush1.xpose.msra.mxu0 0.0
        %2729 = vmatprep.mubr.f32.mxu0 0.0
        %2730 = vmatmul.mubr.f32.gmra.mrb[0].mxu0 %v2661
        %v2731 = vpop.f32.mrb[0].mxu0
        %v2732 = vadd.f32 0.0, %v2731
        %v2733 = vpop.f32.mrb[0].mxu0
        %2734 = vdwg.mxu0
        %v2735 = vsel %vm1130, %v2193, -inf
        %2736 = vmax.xlane.f32.xlu0 %v2735
        %v2737 = vpop.xlane.xlu0 %2736
        %v2738 = vsel %vm1130, %v2270, -inf
        %2739 = vmax.xlane.f32.xlu0 %v2738
        %v2740 = vpop.xlane.xlu0 %2739
        %v2741 = vsel %vm1130, %v2347, -inf
        %2742 = vmax.xlane.f32.xlu0 %v2741
        %v2743 = vpop.xlane.xlu0 %2742
        %v2744 = vsel %vm1130, %v2424, -inf
        %2745 = vmax.xlane.f32.xlu0 %v2744
        %v2746 = vpop.xlane.xlu0 %2745
        %v2747 = vsel %vm1130, %v2501, -inf
        %2748 = vmax.xlane.f32.xlu0 %v2747
        %v2749 = vpop.xlane.xlu0 %2748
        %v2750 = vsel %vm1130, %v2578, -inf
        %2751 = vmax.xlane.f32.xlu0 %v2750
        %v2752 = vpop.xlane.xlu0 %2751
        %v2753 = vsel %vm1130, %v2655, -inf
        %2754 = vmax.xlane.f32.xlu0 %v2753
        %v2755 = vpop.xlane.xlu0 %2754
        %v2756 = vsel %vm1130, %v2732, -inf
        %2757 = vmax.xlane.f32.xlu0 %v2756
        %v2758 = vpop.xlane.xlu0 %2757
        %v2759 = vsub.f32 %v2193, %v2737
        %v2760 = vsub.f32 %v2270, %v2740
        %v2761 = vsub.f32 %v2347, %v2743
        %v2762 = vsub.f32 %v2424, %v2746
        %v2763 = vsub.f32 %v2501, %v2749
        %v2764 = vsub.f32 %v2578, %v2752
        %v2765 = vsub.f32 %v2655, %v2755
        %v2766 = vsub.f32 %v2732, %v2758
        %v2767 = vmul.f32 %v2759, 1.442695
        %v2768 = vpow.pop %v2767
        %v2769 = vmul.f32 %v2760, 1.442695
        %v2770 = vpow.pop %v2769
        %v2771 = vmul.f32 %v2761, 1.442695
        %v2772 = vpow.pop %v2771
        %v2773 = vmul.f32 %v2762, 1.442695
        %v2774 = vpow.pop %v2773
        %v2775 = vmul.f32 %v2763, 1.442695
        %v2776 = vpow.pop %v2775
        %v2777 = vmul.f32 %v2764, 1.442695
        %v2778 = vpow.pop %v2777
        %v2779 = vmul.f32 %v2765, 1.442695
        %v2780 = vpow.pop %v2779
        %v2781 = vmul.f32 %v2766, 1.442695
        %v2782 = vpow.pop %v2781
        %v2783 = vsel %vm1130, %v2768, 0.0
        %2784 = vadd.xlane.f32.xlu0 %v2783
        %v2785 = vpop.xlane.xlu0 %2784
        %v2786 = vsel %vm1130, %v2770, 0.0
        %2787 = vadd.xlane.f32.xlu0 %v2786
        %v2788 = vpop.xlane.xlu0 %2787
        %v2789 = vsel %vm1130, %v2772, 0.0
        %2790 = vadd.xlane.f32.xlu0 %v2789
        %v2791 = vpop.xlane.xlu0 %2790
        %v2792 = vsel %vm1130, %v2774, 0.0
        %2793 = vadd.xlane.f32.xlu0 %v2792
        %v2794 = vpop.xlane.xlu0 %2793
        %v2795 = vsel %vm1130, %v2776, 0.0
        %2796 = vadd.xlane.f32.xlu0 %v2795
        %v2797 = vpop.xlane.xlu0 %2796
        %v2798 = vsel %vm1130, %v2778, 0.0
        %2799 = vadd.xlane.f32.xlu0 %v2798
        %v2800 = vpop.xlane.xlu0 %2799
        %v2801 = vsel %vm1130, %v2780, 0.0
        %2802 = vadd.xlane.f32.xlu0 %v2801
        %v2803 = vpop.xlane.xlu0 %2802
        %v2804 = vsel %vm1130, %v2782, 0.0
        %2805 = vadd.xlane.f32.xlu0 %v2804
        %v2806 = vpop.xlane.xlu0 %2805
        %v2807 = vrcp.pop %v2785
        %v2808 = vrcp.pop %v2788
        %v2809 = vrcp.pop %v2791
        %v2810 = vrcp.pop %v2794
        %v2811 = vrcp.pop %v2797
        %v2812 = vrcp.pop %v2800
        %v2813 = vrcp.pop %v2803
        %v2814 = vrcp.pop %v2806
        %v2815 = vmul.f32 %v2768, %v2807
        %v2816 = vmul.f32 %v2770, %v2808
        %v2817 = vmul.f32 %v2772, %v2809
        %v2818 = vmul.f32 %v2774, %v2810
        %v2819 = vmul.f32 %v2776, %v2811
        %v2820 = vmul.f32 %v2778, %v2812
        %v2821 = vmul.f32 %v2780, %v2813
        %v2822 = vmul.f32 %v2782, %v2814
        %2823 = vrot.lane.b32.xlu0 %v2081, 124
        %v2824 = vpop.permute.xlu0 %2823
        %v2827 = vsel %vm1130, %v2815, 0
        %2829 = vmatprep.subr.mxu0 0.0
        %2830 = vmatpush1.msra.mxu0 %v2824
        %2831 = vmatprep.subr.mxu0 0.0
        %2832 = vmatpush1.msra.mxu0 0.0
        %2833 = vmatprep.subr.mxu0 0.0
        %2834 = vmatpush1.msra.mxu0 0.0
        %2835 = vmatprep.subr.mxu0 0.0
        %2836 = vmatpush1.msra.mxu0 0.0
        %2837 = vmatprep.subr.mxu0 0.0
        %2838 = vmatpush1.msra.mxu0 0.0
        %2839 = vmatprep.subr.mxu0 0.0
        %2840 = vmatpush1.msra.mxu0 0.0
        %2841 = vmatprep.subr.mxu0 0.0
        %2842 = vmatpush1.msra.mxu0 0.0
        %2843 = vmatprep.subr.mxu0 0.0
        %2844 = vmatpush1.msra.mxu0 0.0
        %2845 = vmatprep.subr.mxu0 0.0
        %2846 = vmatpush1.msra.mxu0 0.0
        %2847 = vmatprep.subr.mxu0 0.0
        %2848 = vmatpush1.msra.mxu0 0.0
        %2849 = vmatprep.subr.mxu0 0.0
        %2850 = vmatpush1.msra.mxu0 0.0
        %2851 = vmatprep.subr.mxu0 0.0
        %2852 = vmatpush1.msra.mxu0 0.0
        %2853 = vmatprep.subr.mxu0 0.0
        %2854 = vmatpush1.msra.mxu0 0.0
        %2855 = vmatprep.subr.mxu0 0.0
        %2856 = vmatpush1.msra.mxu0 0.0
        %2857 = vmatprep.subr.mxu0 0.0
        %2858 = vmatpush1.msra.mxu0 0.0
        %2859 = vmatprep.subr.mxu0 0.0
        %2860 = vmatpush1.msra.mxu0 0.0
        %2861 = vmatprep.subr.mxu0 0.0
        %2862 = vmatpush1.msra.mxu0 0.0
        %2863 = vmatprep.subr.mxu0 0.0
        %2864 = vmatpush1.msra.mxu0 0.0
        %2865 = vmatprep.subr.mxu0 0.0
        %2866 = vmatpush1.msra.mxu0 0.0
        %2867 = vmatprep.subr.mxu0 0.0
        %2868 = vmatpush1.msra.mxu0 0.0
        %2869 = vmatprep.subr.mxu0 0.0
        %2870 = vmatpush1.msra.mxu0 0.0
        %2871 = vmatprep.subr.mxu0 0.0
        %2872 = vmatpush1.msra.mxu0 0.0
        %2873 = vmatprep.subr.mxu0 0.0
        %2874 = vmatpush1.msra.mxu0 0.0
        %2875 = vmatprep.subr.mxu0 0.0
        %2876 = vmatpush1.msra.mxu0 0.0
        %2877 = vmatprep.subr.mxu0 0.0
        %2878 = vmatpush1.msra.mxu0 0.0
        %2879 = vmatprep.subr.mxu0 0.0
        %2880 = vmatpush1.msra.mxu0 0.0
        %2881 = vmatprep.subr.mxu0 0.0
        %2882 = vmatpush1.msra.mxu0 0.0
        %2883 = vmatprep.subr.mxu0 0.0
        %2884 = vmatpush1.msra.mxu0 0.0
        %2885 = vmatprep.subr.mxu0 0.0
        %2886 = vmatpush1.msra.mxu0 0.0
        %2887 = vmatprep.subr.mxu0 0.0
        %2888 = vmatpush1.msra.mxu0 0.0
        %2889 = vmatprep.subr.mxu0 0.0
        %2890 = vmatpush1.msra.mxu0 0.0
        %2891 = vmatprep.subr.mxu0 0.0
        %2892 = vmatpush1.msra.mxu0 0.0
        %2893 = vmatprep.mubr.f32.mxu0 0.0
        %2894 = vmatmul.mubr.f32.gmra.mrb[0].mxu0 %v2827
        %v2895 = vpop.f32.mrb[0].mxu0
        %v2896 = vadd.f32 0.0, %v2895
        %v2897 = vpop.f32.mrb[0].mxu0
        %2898 = vdwg.mxu0
        %2899 = vrot.lane.b32.xlu0 %v2086, 124
        %v2900 = vpop.permute.xlu0 %2899
        %v2903 = vsel %vm1130, %v2816, 0
        %2905 = vmatprep.subr.mxu0 0.0
        %2906 = vmatpush1.msra.mxu0 %v2900
        %2907 = vmatprep.subr.mxu0 0.0
        %2908 = vmatpush1.msra.mxu0 0.0
        %2909 = vmatprep.subr.mxu0 0.0
        %2910 = vmatpush1.msra.mxu0 0.0
        %2911 = vmatprep.subr.mxu0 0.0
        %2912 = vmatpush1.msra.mxu0 0.0
        %2913 = vmatprep.subr.mxu0 0.0
        %2914 = vmatpush1.msra.mxu0 0.0
        %2915 = vmatprep.subr.mxu0 0.0
        %2916 = vmatpush1.msra.mxu0 0.0
        %2917 = vmatprep.subr.mxu0 0.0
        %2918 = vmatpush1.msra.mxu0 0.0
        %2919 = vmatprep.subr.mxu0 0.0
        %2920 = vmatpush1.msra.mxu0 0.0
        %2921 = vmatprep.subr.mxu0 0.0
        %2922 = vmatpush1.msra.mxu0 0.0
        %2923 = vmatprep.subr.mxu0 0.0
        %2924 = vmatpush1.msra.mxu0 0.0
        %2925 = vmatprep.subr.mxu0 0.0
        %2926 = vmatpush1.msra.mxu0 0.0
        %2927 = vmatprep.subr.mxu0 0.0
        %2928 = vmatpush1.msra.mxu0 0.0
        %2929 = vmatprep.subr.mxu0 0.0
        %2930 = vmatpush1.msra.mxu0 0.0
        %2931 = vmatprep.subr.mxu0 0.0
        %2932 = vmatpush1.msra.mxu0 0.0
        %2933 = vmatprep.subr.mxu0 0.0
        %2934 = vmatpush1.msra.mxu0 0.0
        %2935 = vmatprep.subr.mxu0 0.0
        %2936 = vmatpush1.msra.mxu0 0.0
        %2937 = vmatprep.subr.mxu0 0.0
        %2938 = vmatpush1.msra.mxu0 0.0
        %2939 = vmatprep.subr.mxu0 0.0
        %2940 = vmatpush1.msra.mxu0 0.0
        %2941 = vmatprep.subr.mxu0 0.0
        %2942 = vmatpush1.msra.mxu0 0.0
        %2943 = vmatprep.subr.mxu0 0.0
        %2944 = vmatpush1.msra.mxu0 0.0
        %2945 = vmatprep.subr.mxu0 0.0
        %2946 = vmatpush1.msra.mxu0 0.0
        %2947 = vmatprep.subr.mxu0 0.0
        %2948 = vmatpush1.msra.mxu0 0.0
        %2949 = vmatprep.subr.mxu0 0.0
        %2950 = vmatpush1.msra.mxu0 0.0
        %2951 = vmatprep.subr.mxu0 0.0
        %2952 = vmatpush1.msra.mxu0 0.0
        %2953 = vmatprep.subr.mxu0 0.0
        %2954 = vmatpush1.msra.mxu0 0.0
        %2955 = vmatprep.subr.mxu0 0.0
        %2956 = vmatpush1.msra.mxu0 0.0
        %2957 = vmatprep.subr.mxu0 0.0
        %2958 = vmatpush1.msra.mxu0 0.0
        %2959 = vmatprep.subr.mxu0 0.0
        %2960 = vmatpush1.msra.mxu0 0.0
        %2961 = vmatprep.subr.mxu0 0.0
        %2962 = vmatpush1.msra.mxu0 0.0
        %2963 = vmatprep.subr.mxu0 0.0
        %2964 = vmatpush1.msra.mxu0 0.0
        %2965 = vmatprep.subr.mxu0 0.0
        %2966 = vmatpush1.msra.mxu0 0.0
        %2967 = vmatprep.subr.mxu0 0.0
        %2968 = vmatpush1.msra.mxu0 0.0
        %2969 = vmatprep.mubr.f32.mxu0 0.0
        %2970 = vmatmul.mubr.f32.gmra.mrb[0].mxu0 %v2903
        %v2971 = vpop.f32.mrb[0].mxu0
        %v2972 = vadd.f32 0.0, %v2971
        %v2973 = vpop.f32.mrb[0].mxu0
        %2974 = vdwg.mxu0
        %2975 = vrot.lane.b32.xlu0 %v2091, 124
        %v2976 = vpop.permute.xlu0 %2975
        %v2979 = vsel %vm1130, %v2817, 0
        %2981 = vmatprep.subr.mxu0 0.0
        %2982 = vmatpush1.msra.mxu0 %v2976
        %2983 = vmatprep.subr.mxu0 0.0
        %2984 = vmatpush1.msra.mxu0 0.0
        %2985 = vmatprep.subr.mxu0 0.0
        %2986 = vmatpush1.msra.mxu0 0.0
        %2987 = vmatprep.subr.mxu0 0.0
        %2988 = vmatpush1.msra.mxu0 0.0
        %2989 = vmatprep.subr.mxu0 0.0
        %2990 = vmatpush1.msra.mxu0 0.0
        %2991 = vmatprep.subr.mxu0 0.0
        %2992 = vmatpush1.msra.mxu0 0.0
        %2993 = vmatprep.subr.mxu0 0.0
        %2994 = vmatpush1.msra.mxu0 0.0
        %2995 = vmatprep.subr.mxu0 0.0
        %2996 = vmatpush1.msra.mxu0 0.0
        %2997 = vmatprep.subr.mxu0 0.0
        %2998 = vmatpush1.msra.mxu0 0.0
        %2999 = vmatprep.subr.mxu0 0.0
        %3000 = vmatpush1.msra.mxu0 0.0
        %3001 = vmatprep.subr.mxu0 0.0
        %3002 = vmatpush1.msra.mxu0 0.0
        %3003 = vmatprep.subr.mxu0 0.0
        %3004 = vmatpush1.msra.mxu0 0.0
        %3005 = vmatprep.subr.mxu0 0.0
        %3006 = vmatpush1.msra.mxu0 0.0
        %3007 = vmatprep.subr.mxu0 0.0
        %3008 = vmatpush1.msra.mxu0 0.0
        %3009 = vmatprep.subr.mxu0 0.0
        %3010 = vmatpush1.msra.mxu0 0.0
        %3011 = vmatprep.subr.mxu0 0.0
        %3012 = vmatpush1.msra.mxu0 0.0
        %3013 = vmatprep.subr.mxu0 0.0
        %3014 = vmatpush1.msra.mxu0 0.0
        %3015 = vmatprep.subr.mxu0 0.0
        %3016 = vmatpush1.msra.mxu0 0.0
        %3017 = vmatprep.subr.mxu0 0.0
        %3018 = vmatpush1.msra.mxu0 0.0
        %3019 = vmatprep.subr.mxu0 0.0
        %3020 = vmatpush1.msra.mxu0 0.0
        %3021 = vmatprep.subr.mxu0 0.0
        %3022 = vmatpush1.msra.mxu0 0.0
        %3023 = vmatprep.subr.mxu0 0.0
        %3024 = vmatpush1.msra.mxu0 0.0
        %3025 = vmatprep.subr.mxu0 0.0
        %3026 = vmatpush1.msra.mxu0 0.0
        %3027 = vmatprep.subr.mxu0 0.0
        %3028 = vmatpush1.msra.mxu0 0.0
        %3029 = vmatprep.subr.mxu0 0.0
        %3030 = vmatpush1.msra.mxu0 0.0
        %3031 = vmatprep.subr.mxu0 0.0
        %3032 = vmatpush1.msra.mxu0 0.0
        %3033 = vmatprep.subr.mxu0 0.0
        %3034 = vmatpush1.msra.mxu0 0.0
        %3035 = vmatprep.subr.mxu0 0.0
        %3036 = vmatpush1.msra.mxu0 0.0
        %3037 = vmatprep.subr.mxu0 0.0
        %3038 = vmatpush1.msra.mxu0 0.0
        %3039 = vmatprep.subr.mxu0 0.0
        %3040 = vmatpush1.msra.mxu0 0.0
        %3041 = vmatprep.subr.mxu0 0.0
        %3042 = vmatpush1.msra.mxu0 0.0
        %3043 = vmatprep.subr.mxu0 0.0
        %3044 = vmatpush1.msra.mxu0 0.0
        %3045 = vmatprep.mubr.f32.mxu0 0.0
        %3046 = vmatmul.mubr.f32.gmra.mrb[0].mxu0 %v2979
        %v3047 = vpop.f32.mrb[0].mxu0
        %v3048 = vadd.f32 0.0, %v3047
        %v3049 = vpop.f32.mrb[0].mxu0
        %3050 = vdwg.mxu0
        %3051 = vrot.lane.b32.xlu0 %v2096, 124
        %v3052 = vpop.permute.xlu0 %3051
        %v3055 = vsel %vm1130, %v2818, 0
        %3057 = vmatprep.subr.mxu0 0.0
        %3058 = vmatpush1.msra.mxu0 %v3052
        %3059 = vmatprep.subr.mxu0 0.0
        %3060 = vmatpush1.msra.mxu0 0.0
        %3061 = vmatprep.subr.mxu0 0.0
        %3062 = vmatpush1.msra.mxu0 0.0
        %3063 = vmatprep.subr.mxu0 0.0
        %3064 = vmatpush1.msra.mxu0 0.0
        %3065 = vmatprep.subr.mxu0 0.0
        %3066 = vmatpush1.msra.mxu0 0.0
        %3067 = vmatprep.subr.mxu0 0.0
        %3068 = vmatpush1.msra.mxu0 0.0
        %3069 = vmatprep.subr.mxu0 0.0
        %3070 = vmatpush1.msra.mxu0 0.0
        %3071 = vmatprep.subr.mxu0 0.0
        %3072 = vmatpush1.msra.mxu0 0.0
        %3073 = vmatprep.subr.mxu0 0.0
        %3074 = vmatpush1.msra.mxu0 0.0
        %3075 = vmatprep.subr.mxu0 0.0
        %3076 = vmatpush1.msra.mxu0 0.0
        %3077 = vmatprep.subr.mxu0 0.0
        %3078 = vmatpush1.msra.mxu0 0.0
        %3079 = vmatprep.subr.mxu0 0.0
        %3080 = vmatpush1.msra.mxu0 0.0
        %3081 = vmatprep.subr.mxu0 0.0
        %3082 = vmatpush1.msra.mxu0 0.0
        %3083 = vmatprep.subr.mxu0 0.0
        %3084 = vmatpush1.msra.mxu0 0.0
        %3085 = vmatprep.subr.mxu0 0.0
        %3086 = vmatpush1.msra.mxu0 0.0
        %3087 = vmatprep.subr.mxu0 0.0
        %3088 = vmatpush1.msra.mxu0 0.0
        %3089 = vmatprep.subr.mxu0 0.0
        %3090 = vmatpush1.msra.mxu0 0.0
        %3091 = vmatprep.subr.mxu0 0.0
        %3092 = vmatpush1.msra.mxu0 0.0
        %3093 = vmatprep.subr.mxu0 0.0
        %3094 = vmatpush1.msra.mxu0 0.0
        %3095 = vmatprep.subr.mxu0 0.0
        %3096 = vmatpush1.msra.mxu0 0.0
        %3097 = vmatprep.subr.mxu0 0.0
        %3098 = vmatpush1.msra.mxu0 0.0
        %3099 = vmatprep.subr.mxu0 0.0
        %3100 = vmatpush1.msra.mxu0 0.0
        %3101 = vmatprep.subr.mxu0 0.0
        %3102 = vmatpush1.msra.mxu0 0.0
        %3103 = vmatprep.subr.mxu0 0.0
        %3104 = vmatpush1.msra.mxu0 0.0
        %3105 = vmatprep.subr.mxu0 0.0
        %3106 = vmatpush1.msra.mxu0 0.0
        %3107 = vmatprep.subr.mxu0 0.0
        %3108 = vmatpush1.msra.mxu0 0.0
        %3109 = vmatprep.subr.mxu0 0.0
        %3110 = vmatpush1.msra.mxu0 0.0
        %3111 = vmatprep.subr.mxu0 0.0
        %3112 = vmatpush1.msra.mxu0 0.0
        %3113 = vmatprep.subr.mxu0 0.0
        %3114 = vmatpush1.msra.mxu0 0.0
        %3115 = vmatprep.subr.mxu0 0.0
        %3116 = vmatpush1.msra.mxu0 0.0
        %3117 = vmatprep.subr.mxu0 0.0
        %3118 = vmatpush1.msra.mxu0 0.0
        %3119 = vmatprep.subr.mxu0 0.0
        %3120 = vmatpush1.msra.mxu0 0.0
        %3121 = vmatprep.mubr.f32.mxu0 0.0
        %3122 = vmatmul.mubr.f32.gmra.mrb[0].mxu0 %v3055
        %v3123 = vpop.f32.mrb[0].mxu0
        %v3124 = vadd.f32 0.0, %v3123
        %v3125 = vpop.f32.mrb[0].mxu0
        %3126 = vdwg.mxu0
        %3127 = vrot.lane.b32.xlu0 %v2101, 124
        %v3128 = vpop.permute.xlu0 %3127
        %v3131 = vsel %vm1130, %v2819, 0
        %3133 = vmatprep.subr.mxu0 0.0
        %3134 = vmatpush1.msra.mxu0 %v3128
        %3135 = vmatprep.subr.mxu0 0.0
        %3136 = vmatpush1.msra.mxu0 0.0
        %3137 = vmatprep.subr.mxu0 0.0
        %3138 = vmatpush1.msra.mxu0 0.0
        %3139 = vmatprep.subr.mxu0 0.0
        %3140 = vmatpush1.msra.mxu0 0.0
        %3141 = vmatprep.subr.mxu0 0.0
        %3142 = vmatpush1.msra.mxu0 0.0
        %3143 = vmatprep.subr.mxu0 0.0
        %3144 = vmatpush1.msra.mxu0 0.0
        %3145 = vmatprep.subr.mxu0 0.0
        %3146 = vmatpush1.msra.mxu0 0.0
        %3147 = vmatprep.subr.mxu0 0.0
        %3148 = vmatpush1.msra.mxu0 0.0
        %3149 = vmatprep.subr.mxu0 0.0
        %3150 = vmatpush1.msra.mxu0 0.0
        %3151 = vmatprep.subr.mxu0 0.0
        %3152 = vmatpush1.msra.mxu0 0.0
        %3153 = vmatprep.subr.mxu0 0.0
        %3154 = vmatpush1.msra.mxu0 0.0
        %3155 = vmatprep.subr.mxu0 0.0
        %3156 = vmatpush1.msra.mxu0 0.0
        %3157 = vmatprep.subr.mxu0 0.0
        %3158 = vmatpush1.msra.mxu0 0.0
        %3159 = vmatprep.subr.mxu0 0.0
        %3160 = vmatpush1.msra.mxu0 0.0
        %3161 = vmatprep.subr.mxu0 0.0
        %3162 = vmatpush1.msra.mxu0 0.0
        %3163 = vmatprep.subr.mxu0 0.0
        %3164 = vmatpush1.msra.mxu0 0.0
        %3165 = vmatprep.subr.mxu0 0.0
        %3166 = vmatpush1.msra.mxu0 0.0
        %3167 = vmatprep.subr.mxu0 0.0
        %3168 = vmatpush1.msra.mxu0 0.0
        %3169 = vmatprep.subr.mxu0 0.0
        %3170 = vmatpush1.msra.mxu0 0.0
        %3171 = vmatprep.subr.mxu0 0.0
        %3172 = vmatpush1.msra.mxu0 0.0
        %3173 = vmatprep.subr.mxu0 0.0
        %3174 = vmatpush1.msra.mxu0 0.0
        %3175 = vmatprep.subr.mxu0 0.0
        %3176 = vmatpush1.msra.mxu0 0.0
        %3177 = vmatprep.subr.mxu0 0.0
        %3178 = vmatpush1.msra.mxu0 0.0
        %3179 = vmatprep.subr.mxu0 0.0
        %3180 = vmatpush1.msra.mxu0 0.0
        %3181 = vmatprep.subr.mxu0 0.0
        %3182 = vmatpush1.msra.mxu0 0.0
        %3183 = vmatprep.subr.mxu0 0.0
        %3184 = vmatpush1.msra.mxu0 0.0
        %3185 = vmatprep.subr.mxu0 0.0
        %3186 = vmatpush1.msra.mxu0 0.0
        %3187 = vmatprep.subr.mxu0 0.0
        %3188 = vmatpush1.msra.mxu0 0.0
        %3189 = vmatprep.subr.mxu0 0.0
        %3190 = vmatpush1.msra.mxu0 0.0
        %3191 = vmatprep.subr.mxu0 0.0
        %3192 = vmatpush1.msra.mxu0 0.0
        %3193 = vmatprep.subr.mxu0 0.0
        %3194 = vmatpush1.msra.mxu0 0.0
        %3195 = vmatprep.subr.mxu0 0.0
        %3196 = vmatpush1.msra.mxu0 0.0
        %3197 = vmatprep.mubr.f32.mxu0 0.0
        %3198 = vmatmul.mubr.f32.gmra.mrb[0].mxu0 %v3131
        %v3199 = vpop.f32.mrb[0].mxu0
        %v3200 = vadd.f32 0.0, %v3199
        %v3201 = vpop.f32.mrb[0].mxu0
        %3202 = vdwg.mxu0
        %3203 = vrot.lane.b32.xlu0 %v2106, 124
        %v3204 = vpop.permute.xlu0 %3203
        %v3207 = vsel %vm1130, %v2820, 0
        %3209 = vmatprep.subr.mxu0 0.0
        %3210 = vmatpush1.msra.mxu0 %v3204
        %3211 = vmatprep.subr.mxu0 0.0
        %3212 = vmatpush1.msra.mxu0 0.0
        %3213 = vmatprep.subr.mxu0 0.0
        %3214 = vmatpush1.msra.mxu0 0.0
        %3215 = vmatprep.subr.mxu0 0.0
        %3216 = vmatpush1.msra.mxu0 0.0
        %3217 = vmatprep.subr.mxu0 0.0
        %3218 = vmatpush1.msra.mxu0 0.0
        %3219 = vmatprep.subr.mxu0 0.0
        %3220 = vmatpush1.msra.mxu0 0.0
        %3221 = vmatprep.subr.mxu0 0.0
        %3222 = vmatpush1.msra.mxu0 0.0
        %3223 = vmatprep.subr.mxu0 0.0
        %3224 = vmatpush1.msra.mxu0 0.0
        %3225 = vmatprep.subr.mxu0 0.0
        %3226 = vmatpush1.msra.mxu0 0.0
        %3227 = vmatprep.subr.mxu0 0.0
        %3228 = vmatpush1.msra.mxu0 0.0
        %3229 = vmatprep.subr.mxu0 0.0
        %3230 = vmatpush1.msra.mxu0 0.0
        %3231 = vmatprep.subr.mxu0 0.0
        %3232 = vmatpush1.msra.mxu0 0.0
        %3233 = vmatprep.subr.mxu0 0.0
        %3234 = vmatpush1.msra.mxu0 0.0
        %3235 = vmatprep.subr.mxu0 0.0
        %3236 = vmatpush1.msra.mxu0 0.0
        %3237 = vmatprep.subr.mxu0 0.0
        %3238 = vmatpush1.msra.mxu0 0.0
        %3239 = vmatprep.subr.mxu0 0.0
        %3240 = vmatpush1.msra.mxu0 0.0
        %3241 = vmatprep.subr.mxu0 0.0
        %3242 = vmatpush1.msra.mxu0 0.0
        %3243 = vmatprep.subr.mxu0 0.0
        %3244 = vmatpush1.msra.mxu0 0.0
        %3245 = vmatprep.subr.mxu0 0.0
        %3246 = vmatpush1.msra.mxu0 0.0
        %3247 = vmatprep.subr.mxu0 0.0
        %3248 = vmatpush1.msra.mxu0 0.0
        %3249 = vmatprep.subr.mxu0 0.0
        %3250 = vmatpush1.msra.mxu0 0.0
        %3251 = vmatprep.subr.mxu0 0.0
        %3252 = vmatpush1.msra.mxu0 0.0
        %3253 = vmatprep.subr.mxu0 0.0
        %3254 = vmatpush1.msra.mxu0 0.0
        %3255 = vmatprep.subr.mxu0 0.0
        %3256 = vmatpush1.msra.mxu0 0.0
        %3257 = vmatprep.subr.mxu0 0.0
        %3258 = vmatpush1.msra.mxu0 0.0
        %3259 = vmatprep.subr.mxu0 0.0
        %3260 = vmatpush1.msra.mxu0 0.0
        %3261 = vmatprep.subr.mxu0 0.0
        %3262 = vmatpush1.msra.mxu0 0.0
        %3263 = vmatprep.subr.mxu0 0.0
        %3264 = vmatpush1.msra.mxu0 0.0
        %3265 = vmatprep.subr.mxu0 0.0
        %3266 = vmatpush1.msra.mxu0 0.0
        %3267 = vmatprep.subr.mxu0 0.0
        %3268 = vmatpush1.msra.mxu0 0.0
        %3269 = vmatprep.subr.mxu0 0.0
        %3270 = vmatpush1.msra.mxu0 0.0
        %3271 = vmatprep.subr.mxu0 0.0
        %3272 = vmatpush1.msra.mxu0 0.0
        %3273 = vmatprep.mubr.f32.mxu0 0.0
        %3274 = vmatmul.mubr.f32.gmra.mrb[0].mxu0 %v3207
        %v3275 = vpop.f32.mrb[0].mxu0
        %v3276 = vadd.f32 0.0, %v3275
        %v3277 = vpop.f32.mrb[0].mxu0
        %3278 = vdwg.mxu0
        %3279 = vrot.lane.b32.xlu0 %v2111, 124
        %v3280 = vpop.permute.xlu0 %3279
        %v3283 = vsel %vm1130, %v2821, 0
        %3285 = vmatprep.subr.mxu0 0.0
        %3286 = vmatpush1.msra.mxu0 %v3280
        %3287 = vmatprep.subr.mxu0 0.0
        %3288 = vmatpush1.msra.mxu0 0.0
        %3289 = vmatprep.subr.mxu0 0.0
        %3290 = vmatpush1.msra.mxu0 0.0
        %3291 = vmatprep.subr.mxu0 0.0
        %3292 = vmatpush1.msra.mxu0 0.0
        %3293 = vmatprep.subr.mxu0 0.0
        %3294 = vmatpush1.msra.mxu0 0.0
        %3295 = vmatprep.subr.mxu0 0.0
        %3296 = vmatpush1.msra.mxu0 0.0
        %3297 = vmatprep.subr.mxu0 0.0
        %3298 = vmatpush1.msra.mxu0 0.0
        %3299 = vmatprep.subr.mxu0 0.0
        %3300 = vmatpush1.msra.mxu0 0.0
        %3301 = vmatprep.subr.mxu0 0.0
        %3302 = vmatpush1.msra.mxu0 0.0
        %3303 = vmatprep.subr.mxu0 0.0
        %3304 = vmatpush1.msra.mxu0 0.0
        %3305 = vmatprep.subr.mxu0 0.0
        %3306 = vmatpush1.msra.mxu0 0.0
        %3307 = vmatprep.subr.mxu0 0.0
        %3308 = vmatpush1.msra.mxu0 0.0
        %3309 = vmatprep.subr.mxu0 0.0
        %3310 = vmatpush1.msra.mxu0 0.0
        %3311 = vmatprep.subr.mxu0 0.0
        %3312 = vmatpush1.msra.mxu0 0.0
        %3313 = vmatprep.subr.mxu0 0.0
        %3314 = vmatpush1.msra.mxu0 0.0
        %3315 = vmatprep.subr.mxu0 0.0
        %3316 = vmatpush1.msra.mxu0 0.0
        %3317 = vmatprep.subr.mxu0 0.0
        %3318 = vmatpush1.msra.mxu0 0.0
        %3319 = vmatprep.subr.mxu0 0.0
        %3320 = vmatpush1.msra.mxu0 0.0
        %3321 = vmatprep.subr.mxu0 0.0
        %3322 = vmatpush1.msra.mxu0 0.0
        %3323 = vmatprep.subr.mxu0 0.0
        %3324 = vmatpush1.msra.mxu0 0.0
        %3325 = vmatprep.subr.mxu0 0.0
        %3326 = vmatpush1.msra.mxu0 0.0
        %3327 = vmatprep.subr.mxu0 0.0
        %3328 = vmatpush1.msra.mxu0 0.0
        %3329 = vmatprep.subr.mxu0 0.0
        %3330 = vmatpush1.msra.mxu0 0.0
        %3331 = vmatprep.subr.mxu0 0.0
        %3332 = vmatpush1.msra.mxu0 0.0
        %3333 = vmatprep.subr.mxu0 0.0
        %3334 = vmatpush1.msra.mxu0 0.0
        %3335 = vmatprep.subr.mxu0 0.0
        %3336 = vmatpush1.msra.mxu0 0.0
        %3337 = vmatprep.subr.mxu0 0.0
        %3338 = vmatpush1.msra.mxu0 0.0
        %3339 = vmatprep.subr.mxu0 0.0
        %3340 = vmatpush1.msra.mxu0 0.0
        %3341 = vmatprep.subr.mxu0 0.0
        %3342 = vmatpush1.msra.mxu0 0.0
        %3343 = vmatprep.subr.mxu0 0.0
        %3344 = vmatpush1.msra.mxu0 0.0
        %3345 = vmatprep.subr.mxu0 0.0
        %3346 = vmatpush1.msra.mxu0 0.0
        %3347 = vmatprep.subr.mxu0 0.0
        %3348 = vmatpush1.msra.mxu0 0.0
        %3349 = vmatprep.mubr.f32.mxu0 0.0
        %3350 = vmatmul.mubr.f32.gmra.mrb[0].mxu0 %v3283
        %v3351 = vpop.f32.mrb[0].mxu0
        %v3352 = vadd.f32 0.0, %v3351
        %v3353 = vpop.f32.mrb[0].mxu0
        %3354 = vdwg.mxu0
        %3355 = vrot.lane.b32.xlu0 %v2116, 124
        %v3356 = vpop.permute.xlu0 %3355
        %v3359 = vsel %vm1130, %v2822, 0
        %3361 = vmatprep.subr.mxu0 0.0
        %3362 = vmatpush1.msra.mxu0 %v3356
        %3363 = vmatprep.subr.mxu0 0.0
        %3364 = vmatpush1.msra.mxu0 0.0
        %3365 = vmatprep.subr.mxu0 0.0
        %3366 = vmatpush1.msra.mxu0 0.0
        %3367 = vmatprep.subr.mxu0 0.0
        %3368 = vmatpush1.msra.mxu0 0.0
        %3369 = vmatprep.subr.mxu0 0.0
        %3370 = vmatpush1.msra.mxu0 0.0
        %3371 = vmatprep.subr.mxu0 0.0
        %3372 = vmatpush1.msra.mxu0 0.0
        %3373 = vmatprep.subr.mxu0 0.0
        %3374 = vmatpush1.msra.mxu0 0.0
        %3375 = vmatprep.subr.mxu0 0.0
        %3376 = vmatpush1.msra.mxu0 0.0
        %3377 = vmatprep.subr.mxu0 0.0
        %3378 = vmatpush1.msra.mxu0 0.0
        %3379 = vmatprep.subr.mxu0 0.0
        %3380 = vmatpush1.msra.mxu0 0.0
        %3381 = vmatprep.subr.mxu0 0.0
        %3382 = vmatpush1.msra.mxu0 0.0
        %3383 = vmatprep.subr.mxu0 0.0
        %3384 = vmatpush1.msra.mxu0 0.0
        %3385 = vmatprep.subr.mxu0 0.0
        %3386 = vmatpush1.msra.mxu0 0.0
        %3387 = vmatprep.subr.mxu0 0.0
        %3388 = vmatpush1.msra.mxu0 0.0
        %3389 = vmatprep.subr.mxu0 0.0
        %3390 = vmatpush1.msra.mxu0 0.0
        %3391 = vmatprep.subr.mxu0 0.0
        %3392 = vmatpush1.msra.mxu0 0.0
        %3393 = vmatprep.subr.mxu0 0.0
        %3394 = vmatpush1.msra.mxu0 0.0
        %3395 = vmatprep.subr.mxu0 0.0
        %3396 = vmatpush1.msra.mxu0 0.0
        %3397 = vmatprep.subr.mxu0 0.0
        %3398 = vmatpush1.msra.mxu0 0.0
        %3399 = vmatprep.subr.mxu0 0.0
        %3400 = vmatpush1.msra.mxu0 0.0
        %3401 = vmatprep.subr.mxu0 0.0
        %3402 = vmatpush1.msra.mxu0 0.0
        %3403 = vmatprep.subr.mxu0 0.0
        %3404 = vmatpush1.msra.mxu0 0.0
        %3405 = vmatprep.subr.mxu0 0.0
        %3406 = vmatpush1.msra.mxu0 0.0
        %3407 = vmatprep.subr.mxu0 0.0
        %3408 = vmatpush1.msra.mxu0 0.0
        %3409 = vmatprep.subr.mxu0 0.0
        %3410 = vmatpush1.msra.mxu0 0.0
        %3411 = vmatprep.subr.mxu0 0.0
        %3412 = vmatpush1.msra.mxu0 0.0
        %3413 = vmatprep.subr.mxu0 0.0
        %3414 = vmatpush1.msra.mxu0 0.0
        %3415 = vmatprep.subr.mxu0 0.0
        %3416 = vmatpush1.msra.mxu0 0.0
        %3417 = vmatprep.subr.mxu0 0.0
        %3418 = vmatpush1.msra.mxu0 0.0
        %3419 = vmatprep.subr.mxu0 0.0
        %3420 = vmatpush1.msra.mxu0 0.0
        %3421 = vmatprep.subr.mxu0 0.0
        %3422 = vmatpush1.msra.mxu0 0.0
        %3423 = vmatprep.subr.mxu0 0.0
        %3424 = vmatpush1.msra.mxu0 0.0
        %3425 = vmatprep.mubr.f32.mxu0 0.0
        %3426 = vmatmul.mubr.f32.gmra.mrb[0].mxu0 %v3359
        %v3427 = vpop.f32.mrb[0].mxu0
        %v3428 = vadd.f32 0.0, %v3427
        %v3429 = vpop.f32.mrb[0].mxu0
        %3430 = vdwg.mxu0
        %v3431 = vstv %s1983
        %v3432 = vmul.f32 %v3431, %v2896
        %v3433 = vmul.f32 %v3431, %v2972
        %v3434 = vmul.f32 %v3431, %v3048
        %v3435 = vmul.f32 %v3431, %v3124
        %v3436 = vmul.f32 %v3431, %v3200
        %v3437 = vmul.f32 %v3431, %v3276
        %v3438 = vmul.f32 %v3431, %v3352
        %v3439 = vmul.f32 %v3431, %v3428
        %v3440 = vadd.f32 %v3432, %v1972
        %v3441 = vadd.f32 %v3433, %v1973
        %v3442 = vadd.f32 %v3434, %v1974
        %v3443 = vadd.f32 %v3435, %v1975
        %v3444 = vadd.f32 %v3436, %v1976
        %v3445 = vadd.f32 %v3437, %v1977
        %v3446 = vadd.f32 %v3438, %v1978
        %v3447 = vadd.f32 %v3439, %v1979
        %v3448 = vcombine.low %v3440, %v3442
        %v3449 = vcombine.high %v3440, %v3442
        %v3451 = vunpack.c.l.s4 1983009808
        %v3452 = vunpack.c.0.s8 %v3451
        %v3453 = vlaneseq
        %v3454 = vshrl.u32 %v3453, 7
        %v3455 = vsub.s32 %v3452, %v3454
        %v3456 = vrot.slane %v3448, %v3455
        %v3458 = vunpack.c.l.s4 1983009808
        %v3459 = vunpack.c.0.s8 %v3458
        %v3460 = vlaneseq
        %v3461 = vshrl.u32 %v3460, 7
        %v3462 = vsub.s32 %v3459, %v3461
        %v3463 = vrot.slane %v3449, %v3462
        %v3464 = vcombine.low %v3441, %v3443
        %v3465 = vcombine.high %v3441, %v3443
        %v3467 = vunpack.c.l.s4 1983009808
        %v3468 = vunpack.c.0.s8 %v3467
        %v3469 = vlaneseq
        %v3470 = vshrl.u32 %v3469, 7
        %v3471 = vsub.s32 %v3468, %v3470
        %v3472 = vrot.slane %v3464, %v3471
        %v3474 = vunpack.c.l.s4 1983009808
        %v3475 = vunpack.c.0.s8 %v3474
        %v3476 = vlaneseq
        %v3477 = vshrl.u32 %v3476, 7
        %v3478 = vsub.s32 %v3475, %v3477
        %v3479 = vrot.slane %v3465, %v3478
        %v3480 = vcombine.low %v3444, %v3446
        %v3481 = vcombine.high %v3444, %v3446
        %v3483 = vunpack.c.l.s4 1983009808
        %v3484 = vunpack.c.0.s8 %v3483
        %v3485 = vlaneseq
        %v3486 = vshrl.u32 %v3485, 7
        %v3487 = vsub.s32 %v3484, %v3486
        %v3488 = vrot.slane %v3480, %v3487
        %v3490 = vunpack.c.l.s4 1983009808
        %v3491 = vunpack.c.0.s8 %v3490
        %v3492 = vlaneseq
        %v3493 = vshrl.u32 %v3492, 7
        %v3494 = vsub.s32 %v3491, %v3493
        %v3495 = vrot.slane %v3481, %v3494
        %v3496 = vcombine.low %v3445, %v3447
        %v3497 = vcombine.high %v3445, %v3447
        %v3499 = vunpack.c.l.s4 1983009808
        %v3500 = vunpack.c.0.s8 %v3499
        %v3501 = vlaneseq
        %v3502 = vshrl.u32 %v3501, 7
        %v3503 = vsub.s32 %v3500, %v3502
        %v3504 = vrot.slane %v3496, %v3503
        %v3506 = vunpack.c.l.s4 1983009808
        %v3507 = vunpack.c.0.s8 %v3506
        %v3508 = vlaneseq
        %v3509 = vshrl.u32 %v3508, 7
        %v3510 = vsub.s32 %v3507, %v3509
        %v3511 = vrot.slane %v3497, %v3510
        %v3512 = vcombine.low %v3456, %v3472
        %v3513 = vcombine.high %v3456, %v3472
        %v3515 = vunpack.c.l.s4 1934713408
        %v3516 = vunpack.c.0.s8 %v3515
        %v3517 = vlaneseq
        %v3518 = vshrl.u32 %v3517, 7
        %v3519 = vsub.s32 %v3516, %v3518
        %v3520 = vrot.slane %v3512, %v3519
        %v3522 = vunpack.c.l.s4 1934713408
        %v3523 = vunpack.c.0.s8 %v3522
        %v3524 = vlaneseq
        %v3525 = vshrl.u32 %v3524, 7
        %v3526 = vsub.s32 %v3523, %v3525
        %v3527 = vrot.slane %v3513, %v3526
        %v3528 = vcombine.low %v3463, %v3479
        %v3529 = vcombine.high %v3463, %v3479
        %v3531 = vunpack.c.l.s4 1934713408
        %v3532 = vunpack.c.0.s8 %v3531
        %v3533 = vlaneseq
        %v3534 = vshrl.u32 %v3533, 7
        %v3535 = vsub.s32 %v3532, %v3534
        %v3536 = vrot.slane %v3528, %v3535
        %v3538 = vunpack.c.l.s4 1934713408
        %v3539 = vunpack.c.0.s8 %v3538
        %v3540 = vlaneseq
        %v3541 = vshrl.u32 %v3540, 7
        %v3542 = vsub.s32 %v3539, %v3541
        %v3543 = vrot.slane %v3529, %v3542
        %v3544 = vcombine.low %v3488, %v3504
        %v3545 = vcombine.high %v3488, %v3504
        %v3547 = vunpack.c.l.s4 1934713408
        %v3548 = vunpack.c.0.s8 %v3547
        %v3549 = vlaneseq
        %v3550 = vshrl.u32 %v3549, 7
        %v3551 = vsub.s32 %v3548, %v3550
        %v3552 = vrot.slane %v3544, %v3551
        %v3554 = vunpack.c.l.s4 1934713408
        %v3555 = vunpack.c.0.s8 %v3554
        %v3556 = vlaneseq
        %v3557 = vshrl.u32 %v3556, 7
        %v3558 = vsub.s32 %v3555, %v3557
        %v3559 = vrot.slane %v3545, %v3558
        %v3560 = vcombine.low %v3495, %v3511
        %v3561 = vcombine.high %v3495, %v3511
        %v3563 = vunpack.c.l.s4 1934713408
        %v3564 = vunpack.c.0.s8 %v3563
        %v3565 = vlaneseq
        %v3566 = vshrl.u32 %v3565, 7
        %v3567 = vsub.s32 %v3564, %v3566
        %v3568 = vrot.slane %v3560, %v3567
        %v3570 = vunpack.c.l.s4 1934713408
        %v3571 = vunpack.c.0.s8 %v3570
        %v3572 = vlaneseq
        %v3573 = vshrl.u32 %v3572, 7
        %v3574 = vsub.s32 %v3571, %v3573
        %v3575 = vrot.slane %v3561, %v3574
        %v3576 = vcombine.low %v3520, %v3552
        %v3577 = vcombine.high %v3520, %v3552
        %v3578 = vcombine.low %v3527, %v3559
        %v3579 = vcombine.high %v3527, %v3559
        %v3580 = vcombine.low %v3536, %v3568
        %v3581 = vcombine.high %v3536, %v3568
        %v3582 = vcombine.low %v3543, %v3575
        %v3583 = vcombine.high %v3543, %v3575
        %v3584 = vld [vmem:[%s6] sm:$0xff]
        %v3585 = vld [vmem:[%s6 + $0x8] sm:$0xff]
        %v3586 = vld [vmem:[%s7] sm:$0x1]
        %s3587 = sld [smem:[#allocation2 + $0x2]]
        %v3589 = vlaneseq
        %v3590 = vshrl.u32 %v3589, 7
        %v3591 = vsub.s32 0, %v3590
        %v3592 = vrot.slane %v3586, %v3591
        %v3595 = vsel %vm383, %v3576, 0
        %v3598 = vsel %vm383, %v3577, 0
        %v3601 = vsel %vm383, %v3578, 0
        %v3604 = vsel %vm383, %v3579, 0
        %v3607 = vsel %vm383, %v3580, 0
        %v3610 = vsel %vm383, %v3581, 0
        %v3613 = vsel %vm383, %v3582, 0
        %v3616 = vsel %vm383, %v3583, 0
        %3618 = vmatprep.subr.mxu0 0.0
        %3619 = vmatpush1.msra.mxu0 %v3584
        %3620 = vmatprep.subr.mxu0 0.0
        %3621 = vmatpush1.msra.mxu0 %v3585
        %3622 = vmatprep.subr.mxu0 0.0
        %3623 = vmatpush1.msra.mxu0 0.0
        %3624 = vmatprep.subr.mxu0 0.0
        %3625 = vmatpush1.msra.mxu0 0.0
        %3626 = vmatprep.subr.mxu0 0.0
        %3627 = vmatpush1.msra.mxu0 0.0
        %3628 = vmatprep.subr.mxu0 0.0
        %3629 = vmatpush1.msra.mxu0 0.0
        %3630 = vmatprep.subr.mxu0 0.0
        %3631 = vmatpush1.msra.mxu0 0.0
        %3632 = vmatprep.subr.mxu0 0.0
        %3633 = vmatpush1.msra.mxu0 0.0
        %3634 = vmatprep.subr.mxu0 0.0
        %3635 = vmatpush1.msra.mxu0 0.0
        %3636 = vmatprep.subr.mxu0 0.0
        %3637 = vmatpush1.msra.mxu0 0.0
        %3638 = vmatprep.subr.mxu0 0.0
        %3639 = vmatpush1.msra.mxu0 0.0
        %3640 = vmatprep.subr.mxu0 0.0
        %3641 = vmatpush1.msra.mxu0 0.0
        %3642 = vmatprep.subr.mxu0 0.0
        %3643 = vmatpush1.msra.mxu0 0.0
        %3644 = vmatprep.subr.mxu0 0.0
        %3645 = vmatpush1.msra.mxu0 0.0
        %3646 = vmatprep.subr.mxu0 0.0
        %3647 = vmatpush1.msra.mxu0 0.0
        %3648 = vmatprep.subr.mxu0 0.0
        %3649 = vmatpush1.msra.mxu0 0.0
        %3650 = vmatprep.subr.mxu0 0.0
        %3651 = vmatpush1.msra.mxu0 0.0
        %3652 = vmatprep.subr.mxu0 0.0
        %3653 = vmatpush1.msra.mxu0 0.0
        %3654 = vmatprep.subr.mxu0 0.0
        %3655 = vmatpush1.msra.mxu0 0.0
        %3656 = vmatprep.subr.mxu0 0.0
        %3657 = vmatpush1.msra.mxu0 0.0
        %3658 = vmatprep.subr.mxu0 0.0
        %3659 = vmatpush1.msra.mxu0 0.0
        %3660 = vmatprep.subr.mxu0 0.0
        %3661 = vmatpush1.msra.mxu0 0.0
        %3662 = vmatprep.subr.mxu0 0.0
        %3663 = vmatpush1.msra.mxu0 0.0
        %3664 = vmatprep.subr.mxu0 0.0
        %3665 = vmatpush1.msra.mxu0 0.0
        %3666 = vmatprep.subr.mxu0 0.0
        %3667 = vmatpush1.msra.mxu0 0.0
        %3668 = vmatprep.subr.mxu0 0.0
        %3669 = vmatpush1.msra.mxu0 0.0
        %3670 = vmatprep.subr.mxu0 0.0
        %3671 = vmatpush1.msra.mxu0 0.0
        %3672 = vmatprep.subr.mxu0 0.0
        %3673 = vmatpush1.msra.mxu0 0.0
        %3674 = vmatprep.subr.mxu0 0.0
        %3675 = vmatpush1.msra.mxu0 0.0
        %3676 = vmatprep.subr.mxu0 0.0
        %3677 = vmatpush1.msra.mxu0 0.0
        %3678 = vmatprep.subr.mxu0 0.0
        %3679 = vmatpush1.msra.mxu0 0.0
        %3680 = vmatprep.subr.mxu0 0.0
        %3681 = vmatpush1.msra.mxu0 0.0
        %3682 = vmatprep.mubr.f32.mxu0 0.0
        %3683 = vmatmul.mubr.f32.gmra.mrb[0].mxu0 %v3595
        %v3684 = vpop.f32.mrb[0].mxu0
        %v3685 = vadd.f32 %v3592, %v3684
        %v3686 = vpop.f32.mrb[0].mxu0
        %3687 = vmatprep.mubr.f32.mxu0 0.0
        %3688 = vmatmul.mubr.f32.gmra.mrb[0].mxu0 %v3598
        %v3689 = vpop.f32.mrb[0].mxu0
        %v3690 = vadd.f32 %v3592, %v3689
        %v3691 = vpop.f32.mrb[0].mxu0
        %3692 = vmatprep.mubr.f32.mxu0 0.0
        %3693 = vmatmul.mubr.f32.gmra.mrb[0].mxu0 %v3601
        %v3694 = vpop.f32.mrb[0].mxu0
        %v3695 = vadd.f32 %v3592, %v3694
        %v3696 = vpop.f32.mrb[0].mxu0
        %3697 = vmatprep.mubr.f32.mxu0 0.0
        %3698 = vmatmul.mubr.f32.gmra.mrb[0].mxu0 %v3604
        %v3699 = vpop.f32.mrb[0].mxu0
        %v3700 = vadd.f32 %v3592, %v3699
        %v3701 = vpop.f32.mrb[0].mxu0
        %3702 = vmatprep.mubr.f32.mxu0 0.0
        %3703 = vmatmul.mubr.f32.gmra.mrb[0].mxu0 %v3607
        %v3704 = vpop.f32.mrb[0].mxu0
        %v3705 = vadd.f32 %v3592, %v3704
        %v3706 = vpop.f32.mrb[0].mxu0
        %3707 = vmatprep.mubr.f32.mxu0 0.0
        %3708 = vmatmul.mubr.f32.gmra.mrb[0].mxu0 %v3610
        %v3709 = vpop.f32.mrb[0].mxu0
        %v3710 = vadd.f32 %v3592, %v3709
        %v3711 = vpop.f32.mrb[0].mxu0
        %3712 = vmatprep.mubr.f32.mxu0 0.0
        %3713 = vmatmul.mubr.f32.gmra.mrb[0].mxu0 %v3613
        %v3714 = vpop.f32.mrb[0].mxu0
        %v3715 = vadd.f32 %v3592, %v3714
        %v3716 = vpop.f32.mrb[0].mxu0
        %3717 = vmatprep.mubr.f32.mxu0 0.0
        %3718 = vmatmul.mubr.f32.gmra.mrb[0].mxu0 %v3616
        %v3719 = vpop.f32.mrb[0].mxu0
        %v3720 = vadd.f32 %v3592, %v3719
        %v3721 = vpop.f32.mrb[0].mxu0
        %3722 = vdwg.mxu0
        %3724 = vrot.lane.b32.xlu0 %v3685, 126
        %v3725 = vpop.permute.xlu0 %3724
        %v3726 = vsel %vm516, %v3685, 0
        %v3728 = vsel %vm516, %v3725, 0
        %3730 = vmatprep.subr.mxu0 0.0
        %3731 = vmatpush1.xpose.msra.mxu0 %v3728
        %3732 = vmatprep.subr.mxu0 0.0
        %3733 = vmatpush1.xpose.msra.mxu0 0.0
        %3734 = vmatprep.subr.mxu0 0.0
        %3735 = vmatpush1.xpose.msra.mxu0 0.0
        %3736 = vmatprep.subr.mxu0 0.0
        %3737 = vmatpush1.xpose.msra.mxu0 0.0
        %3738 = vmatprep.subr.mxu0 0.0
        %3739 = vmatpush1.xpose.msra.mxu0 0.0
        %3740 = vmatprep.subr.mxu0 0.0
        %3741 = vmatpush1.xpose.msra.mxu0 0.0
        %3742 = vmatprep.subr.mxu0 0.0
        %3743 = vmatpush1.xpose.msra.mxu0 0.0
        %3744 = vmatprep.subr.mxu0 0.0
        %3745 = vmatpush1.xpose.msra.mxu0 0.0
        %3746 = vmatprep.subr.mxu0 0.0
        %3747 = vmatpush1.xpose.msra.mxu0 0.0
        %3748 = vmatprep.subr.mxu0 0.0
        %3749 = vmatpush1.xpose.msra.mxu0 0.0
        %3750 = vmatprep.subr.mxu0 0.0
        %3751 = vmatpush1.xpose.msra.mxu0 0.0
        %3752 = vmatprep.subr.mxu0 0.0
        %3753 = vmatpush1.xpose.msra.mxu0 0.0
        %3754 = vmatprep.subr.mxu0 0.0
        %3755 = vmatpush1.xpose.msra.mxu0 0.0
        %3756 = vmatprep.subr.mxu0 0.0
        %3757 = vmatpush1.xpose.msra.mxu0 0.0
        %3758 = vmatprep.subr.mxu0 0.0
        %3759 = vmatpush1.xpose.msra.mxu0 0.0
        %3760 = vmatprep.subr.mxu0 0.0
        %3761 = vmatpush1.xpose.msra.mxu0 0.0
        %3762 = vmatprep.subr.mxu0 0.0
        %3763 = vmatpush1.xpose.msra.mxu0 0.0
        %3764 = vmatprep.subr.mxu0 0.0
        %3765 = vmatpush1.xpose.msra.mxu0 0.0
        %3766 = vmatprep.subr.mxu0 0.0
        %3767 = vmatpush1.xpose.msra.mxu0 0.0
        %3768 = vmatprep.subr.mxu0 0.0
        %3769 = vmatpush1.xpose.msra.mxu0 0.0
        %3770 = vmatprep.subr.mxu0 0.0
        %3771 = vmatpush1.xpose.msra.mxu0 0.0
        %3772 = vmatprep.subr.mxu0 0.0
        %3773 = vmatpush1.xpose.msra.mxu0 0.0
        %3774 = vmatprep.subr.mxu0 0.0
        %3775 = vmatpush1.xpose.msra.mxu0 0.0
        %3776 = vmatprep.subr.mxu0 0.0
        %3777 = vmatpush1.xpose.msra.mxu0 0.0
        %3778 = vmatprep.subr.mxu0 0.0
        %3779 = vmatpush1.xpose.msra.mxu0 0.0
        %3780 = vmatprep.subr.mxu0 0.0
        %3781 = vmatpush1.xpose.msra.mxu0 0.0
        %3782 = vmatprep.subr.mxu0 0.0
        %3783 = vmatpush1.xpose.msra.mxu0 0.0
        %3784 = vmatprep.subr.mxu0 0.0
        %3785 = vmatpush1.xpose.msra.mxu0 0.0
        %3786 = vmatprep.subr.mxu0 0.0
        %3787 = vmatpush1.xpose.msra.mxu0 0.0
        %3788 = vmatprep.subr.mxu0 0.0
        %3789 = vmatpush1.xpose.msra.mxu0 0.0
        %3790 = vmatprep.subr.mxu0 0.0
        %3791 = vmatpush1.xpose.msra.mxu0 0.0
        %3792 = vmatprep.subr.mxu0 0.0
        %3793 = vmatpush1.xpose.msra.mxu0 0.0
        %3794 = vmatprep.mubr.f32.mxu0 0.0
        %3795 = vmatmul.mubr.f32.gmra.mrb[0].mxu0 %v3726
        %v3796 = vpop.f32.mrb[0].mxu0
        %v3797 = vadd.f32 0.0, %v3796
        %v3798 = vpop.f32.mrb[0].mxu0
        %3799 = vdwg.mxu0
        %3801 = vrot.lane.b32.xlu0 %v3690, 126
        %v3802 = vpop.permute.xlu0 %3801
        %v3803 = vsel %vm516, %v3690, 0
        %v3805 = vsel %vm516, %v3802, 0
        %3807 = vmatprep.subr.mxu0 0.0
        %3808 = vmatpush1.xpose.msra.mxu0 %v3805
        %3809 = vmatprep.subr.mxu0 0.0
        %3810 = vmatpush1.xpose.msra.mxu0 0.0
        %3811 = vmatprep.subr.mxu0 0.0
        %3812 = vmatpush1.xpose.msra.mxu0 0.0
        %3813 = vmatprep.subr.mxu0 0.0
        %3814 = vmatpush1.xpose.msra.mxu0 0.0
        %3815 = vmatprep.subr.mxu0 0.0
        %3816 = vmatpush1.xpose.msra.mxu0 0.0
        %3817 = vmatprep.subr.mxu0 0.0
        %3818 = vmatpush1.xpose.msra.mxu0 0.0
        %3819 = vmatprep.subr.mxu0 0.0
        %3820 = vmatpush1.xpose.msra.mxu0 0.0
        %3821 = vmatprep.subr.mxu0 0.0
        %3822 = vmatpush1.xpose.msra.mxu0 0.0
        %3823 = vmatprep.subr.mxu0 0.0
        %3824 = vmatpush1.xpose.msra.mxu0 0.0
        %3825 = vmatprep.subr.mxu0 0.0
        %3826 = vmatpush1.xpose.msra.mxu0 0.0
        %3827 = vmatprep.subr.mxu0 0.0
        %3828 = vmatpush1.xpose.msra.mxu0 0.0
        %3829 = vmatprep.subr.mxu0 0.0
        %3830 = vmatpush1.xpose.msra.mxu0 0.0
        %3831 = vmatprep.subr.mxu0 0.0
        %3832 = vmatpush1.xpose.msra.mxu0 0.0
        %3833 = vmatprep.subr.mxu0 0.0
        %3834 = vmatpush1.xpose.msra.mxu0 0.0
        %3835 = vmatprep.subr.mxu0 0.0
        %3836 = vmatpush1.xpose.msra.mxu0 0.0
        %3837 = vmatprep.subr.mxu0 0.0
        %3838 = vmatpush1.xpose.msra.mxu0 0.0
        %3839 = vmatprep.subr.mxu0 0.0
        %3840 = vmatpush1.xpose.msra.mxu0 0.0
        %3841 = vmatprep.subr.mxu0 0.0
        %3842 = vmatpush1.xpose.msra.mxu0 0.0
        %3843 = vmatprep.subr.mxu0 0.0
        %3844 = vmatpush1.xpose.msra.mxu0 0.0
        %3845 = vmatprep.subr.mxu0 0.0
        %3846 = vmatpush1.xpose.msra.mxu0 0.0
        %3847 = vmatprep.subr.mxu0 0.0
        %3848 = vmatpush1.xpose.msra.mxu0 0.0
        %3849 = vmatprep.subr.mxu0 0.0
        %3850 = vmatpush1.xpose.msra.mxu0 0.0
        %3851 = vmatprep.subr.mxu0 0.0
        %3852 = vmatpush1.xpose.msra.mxu0 0.0
        %3853 = vmatprep.subr.mxu0 0.0
        %3854 = vmatpush1.xpose.msra.mxu0 0.0
        %3855 = vmatprep.subr.mxu0 0.0
        %3856 = vmatpush1.xpose.msra.mxu0 0.0
        %3857 = vmatprep.subr.mxu0 0.0
        %3858 = vmatpush1.xpose.msra.mxu0 0.0
        %3859 = vmatprep.subr.mxu0 0.0
        %3860 = vmatpush1.xpose.msra.mxu0 0.0
        %3861 = vmatprep.subr.mxu0 0.0
        %3862 = vmatpush1.xpose.msra.mxu0 0.0
        %3863 = vmatprep.subr.mxu0 0.0
        %3864 = vmatpush1.xpose.msra.mxu0 0.0
        %3865 = vmatprep.subr.mxu0 0.0
        %3866 = vmatpush1.xpose.msra.mxu0 0.0
        %3867 = vmatprep.subr.mxu0 0.0
        %3868 = vmatpush1.xpose.msra.mxu0 0.0
        %3869 = vmatprep.subr.mxu0 0.0
        %3870 = vmatpush1.xpose.msra.mxu0 0.0
        %3871 = vmatprep.mubr.f32.mxu0 0.0
        %3872 = vmatmul.mubr.f32.gmra.mrb[0].mxu0 %v3803
        %v3873 = vpop.f32.mrb[0].mxu0
        %v3874 = vadd.f32 0.0, %v3873
        %v3875 = vpop.f32.mrb[0].mxu0
        %3876 = vdwg.mxu0
        %3878 = vrot.lane.b32.xlu0 %v3695, 126
        %v3879 = vpop.permute.xlu0 %3878
        %v3880 = vsel %vm516, %v3695, 0
        %v3882 = vsel %vm516, %v3879, 0
        %3884 = vmatprep.subr.mxu0 0.0
        %3885 = vmatpush1.xpose.msra.mxu0 %v3882
        %3886 = vmatprep.subr.mxu0 0.0
        %3887 = vmatpush1.xpose.msra.mxu0 0.0
        %3888 = vmatprep.subr.mxu0 0.0
        %3889 = vmatpush1.xpose.msra.mxu0 0.0
        %3890 = vmatprep.subr.mxu0 0.0
        %3891 = vmatpush1.xpose.msra.mxu0 0.0
        %3892 = vmatprep.subr.mxu0 0.0
        %3893 = vmatpush1.xpose.msra.mxu0 0.0
        %3894 = vmatprep.subr.mxu0 0.0
        %3895 = vmatpush1.xpose.msra.mxu0 0.0
        %3896 = vmatprep.subr.mxu0 0.0
        %3897 = vmatpush1.xpose.msra.mxu0 0.0
        %3898 = vmatprep.subr.mxu0 0.0
        %3899 = vmatpush1.xpose.msra.mxu0 0.0
        %3900 = vmatprep.subr.mxu0 0.0
        %3901 = vmatpush1.xpose.msra.mxu0 0.0
        %3902 = vmatprep.subr.mxu0 0.0
        %3903 = vmatpush1.xpose.msra.mxu0 0.0
        %3904 = vmatprep.subr.mxu0 0.0
        %3905 = vmatpush1.xpose.msra.mxu0 0.0
        %3906 = vmatprep.subr.mxu0 0.0
        %3907 = vmatpush1.xpose.msra.mxu0 0.0
        %3908 = vmatprep.subr.mxu0 0.0
        %3909 = vmatpush1.xpose.msra.mxu0 0.0
        %3910 = vmatprep.subr.mxu0 0.0
        %3911 = vmatpush1.xpose.msra.mxu0 0.0
        %3912 = vmatprep.subr.mxu0 0.0
        %3913 = vmatpush1.xpose.msra.mxu0 0.0
        %3914 = vmatprep.subr.mxu0 0.0
        %3915 = vmatpush1.xpose.msra.mxu0 0.0
        %3916 = vmatprep.subr.mxu0 0.0
        %3917 = vmatpush1.xpose.msra.mxu0 0.0
        %3918 = vmatprep.subr.mxu0 0.0
        %3919 = vmatpush1.xpose.msra.mxu0 0.0
        %3920 = vmatprep.subr.mxu0 0.0
        %3921 = vmatpush1.xpose.msra.mxu0 0.0
        %3922 = vmatprep.subr.mxu0 0.0
        %3923 = vmatpush1.xpose.msra.mxu0 0.0
        %3924 = vmatprep.subr.mxu0 0.0
        %3925 = vmatpush1.xpose.msra.mxu0 0.0
        %3926 = vmatprep.subr.mxu0 0.0
        %3927 = vmatpush1.xpose.msra.mxu0 0.0
        %3928 = vmatprep.subr.mxu0 0.0
        %3929 = vmatpush1.xpose.msra.mxu0 0.0
        %3930 = vmatprep.subr.mxu0 0.0
        %3931 = vmatpush1.xpose.msra.mxu0 0.0
        %3932 = vmatprep.subr.mxu0 0.0
        %3933 = vmatpush1.xpose.msra.mxu0 0.0
        %3934 = vmatprep.subr.mxu0 0.0
        %3935 = vmatpush1.xpose.msra.mxu0 0.0
        %3936 = vmatprep.subr.mxu0 0.0
        %3937 = vmatpush1.xpose.msra.mxu0 0.0
        %3938 = vmatprep.subr.mxu0 0.0
        %3939 = vmatpush1.xpose.msra.mxu0 0.0
        %3940 = vmatprep.subr.mxu0 0.0
        %3941 = vmatpush1.xpose.msra.mxu0 0.0
        %3942 = vmatprep.subr.mxu0 0.0
        %3943 = vmatpush1.xpose.msra.mxu0 0.0
        %3944 = vmatprep.subr.mxu0 0.0
        %3945 = vmatpush1.xpose.msra.mxu0 0.0
        %3946 = vmatprep.subr.mxu0 0.0
        %3947 = vmatpush1.xpose.msra.mxu0 0.0
        %3948 = vmatprep.mubr.f32.mxu0 0.0
        %3949 = vmatmul.mubr.f32.gmra.mrb[0].mxu0 %v3880
        %v3950 = vpop.f32.mrb[0].mxu0
        %v3951 = vadd.f32 0.0, %v3950
        %v3952 = vpop.f32.mrb[0].mxu0
        %3953 = vdwg.mxu0
        %3955 = vrot.lane.b32.xlu0 %v3700, 126
        %v3956 = vpop.permute.xlu0 %3955
        %v3957 = vsel %vm516, %v3700, 0
        %v3959 = vsel %vm516, %v3956, 0
        %3961 = vmatprep.subr.mxu0 0.0
        %3962 = vmatpush1.xpose.msra.mxu0 %v3959
        %3963 = vmatprep.subr.mxu0 0.0
        %3964 = vmatpush1.xpose.msra.mxu0 0.0
        %3965 = vmatprep.subr.mxu0 0.0
        %3966 = vmatpush1.xpose.msra.mxu0 0.0
        %3967 = vmatprep.subr.mxu0 0.0
        %3968 = vmatpush1.xpose.msra.mxu0 0.0
        %3969 = vmatprep.subr.mxu0 0.0
        %3970 = vmatpush1.xpose.msra.mxu0 0.0
        %3971 = vmatprep.subr.mxu0 0.0
        %3972 = vmatpush1.xpose.msra.mxu0 0.0
        %3973 = vmatprep.subr.mxu0 0.0
        %3974 = vmatpush1.xpose.msra.mxu0 0.0
        %3975 = vmatprep.subr.mxu0 0.0
        %3976 = vmatpush1.xpose.msra.mxu0 0.0
        %3977 = vmatprep.subr.mxu0 0.0
        %3978 = vmatpush1.xpose.msra.mxu0 0.0
        %3979 = vmatprep.subr.mxu0 0.0
        %3980 = vmatpush1.xpose.msra.mxu0 0.0
        %3981 = vmatprep.subr.mxu0 0.0
        %3982 = vmatpush1.xpose.msra.mxu0 0.0
        %3983 = vmatprep.subr.mxu0 0.0
        %3984 = vmatpush1.xpose.msra.mxu0 0.0
        %3985 = vmatprep.subr.mxu0 0.0
        %3986 = vmatpush1.xpose.msra.mxu0 0.0
        %3987 = vmatprep.subr.mxu0 0.0
        %3988 = vmatpush1.xpose.msra.mxu0 0.0
        %3989 = vmatprep.subr.mxu0 0.0
        %3990 = vmatpush1.xpose.msra.mxu0 0.0
        %3991 = vmatprep.subr.mxu0 0.0
        %3992 = vmatpush1.xpose.msra.mxu0 0.0
        %3993 = vmatprep.subr.mxu0 0.0
        %3994 = vmatpush1.xpose.msra.mxu0 0.0
        %3995 = vmatprep.subr.mxu0 0.0
        %3996 = vmatpush1.xpose.msra.mxu0 0.0
        %3997 = vmatprep.subr.mxu0 0.0
        %3998 = vmatpush1.xpose.msra.mxu0 0.0
        %3999 = vmatprep.subr.mxu0 0.0
        %4000 = vmatpush1.xpose.msra.mxu0 0.0
        %4001 = vmatprep.subr.mxu0 0.0
        %4002 = vmatpush1.xpose.msra.mxu0 0.0
        %4003 = vmatprep.subr.mxu0 0.0
        %4004 = vmatpush1.xpose.msra.mxu0 0.0
        %4005 = vmatprep.subr.mxu0 0.0
        %4006 = vmatpush1.xpose.msra.mxu0 0.0
        %4007 = vmatprep.subr.mxu0 0.0
        %4008 = vmatpush1.xpose.msra.mxu0 0.0
        %4009 = vmatprep.subr.mxu0 0.0
        %4010 = vmatpush1.xpose.msra.mxu0 0.0
        %4011 = vmatprep.subr.mxu0 0.0
        %4012 = vmatpush1.xpose.msra.mxu0 0.0
        %4013 = vmatprep.subr.mxu0 0.0
        %4014 = vmatpush1.xpose.msra.mxu0 0.0
        %4015 = vmatprep.subr.mxu0 0.0
        %4016 = vmatpush1.xpose.msra.mxu0 0.0
        %4017 = vmatprep.subr.mxu0 0.0
        %4018 = vmatpush1.xpose.msra.mxu0 0.0
        %4019 = vmatprep.subr.mxu0 0.0
        %4020 = vmatpush1.xpose.msra.mxu0 0.0
        %4021 = vmatprep.subr.mxu0 0.0
        %4022 = vmatpush1.xpose.msra.mxu0 0.0
        %4023 = vmatprep.subr.mxu0 0.0
        %4024 = vmatpush1.xpose.msra.mxu0 0.0
        %4025 = vmatprep.mubr.f32.mxu0 0.0
        %4026 = vmatmul.mubr.f32.gmra.mrb[0].mxu0 %v3957
        %v4027 = vpop.f32.mrb[0].mxu0
        %v4028 = vadd.f32 0.0, %v4027
        %v4029 = vpop.f32.mrb[0].mxu0
        %4030 = vdwg.mxu0
        %4032 = vrot.lane.b32.xlu0 %v3705, 126
        %v4033 = vpop.permute.xlu0 %4032
        %v4034 = vsel %vm516, %v3705, 0
        %v4036 = vsel %vm516, %v4033, 0
        %4038 = vmatprep.subr.mxu0 0.0
        %4039 = vmatpush1.xpose.msra.mxu0 %v4036
        %4040 = vmatprep.subr.mxu0 0.0
        %4041 = vmatpush1.xpose.msra.mxu0 0.0
        %4042 = vmatprep.subr.mxu0 0.0
        %4043 = vmatpush1.xpose.msra.mxu0 0.0
        %4044 = vmatprep.subr.mxu0 0.0
        %4045 = vmatpush1.xpose.msra.mxu0 0.0
        %4046 = vmatprep.subr.mxu0 0.0
        %4047 = vmatpush1.xpose.msra.mxu0 0.0
        %4048 = vmatprep.subr.mxu0 0.0
        %4049 = vmatpush1.xpose.msra.mxu0 0.0
        %4050 = vmatprep.subr.mxu0 0.0
        %4051 = vmatpush1.xpose.msra.mxu0 0.0
        %4052 = vmatprep.subr.mxu0 0.0
        %4053 = vmatpush1.xpose.msra.mxu0 0.0
        %4054 = vmatprep.subr.mxu0 0.0
        %4055 = vmatpush1.xpose.msra.mxu0 0.0
        %4056 = vmatprep.subr.mxu0 0.0
        %4057 = vmatpush1.xpose.msra.mxu0 0.0
        %4058 = vmatprep.subr.mxu0 0.0
        %4059 = vmatpush1.xpose.msra.mxu0 0.0
        %4060 = vmatprep.subr.mxu0 0.0
        %4061 = vmatpush1.xpose.msra.mxu0 0.0
        %4062 = vmatprep.subr.mxu0 0.0
        %4063 = vmatpush1.xpose.msra.mxu0 0.0
        %4064 = vmatprep.subr.mxu0 0.0
        %4065 = vmatpush1.xpose.msra.mxu0 0.0
        %4066 = vmatprep.subr.mxu0 0.0
        %4067 = vmatpush1.xpose.msra.mxu0 0.0
        %4068 = vmatprep.subr.mxu0 0.0
        %4069 = vmatpush1.xpose.msra.mxu0 0.0
        %4070 = vmatprep.subr.mxu0 0.0
        %4071 = vmatpush1.xpose.msra.mxu0 0.0
        %4072 = vmatprep.subr.mxu0 0.0
        %4073 = vmatpush1.xpose.msra.mxu0 0.0
        %4074 = vmatprep.subr.mxu0 0.0
        %4075 = vmatpush1.xpose.msra.mxu0 0.0
        %4076 = vmatprep.subr.mxu0 0.0
        %4077 = vmatpush1.xpose.msra.mxu0 0.0
        %4078 = vmatprep.subr.mxu0 0.0
        %4079 = vmatpush1.xpose.msra.mxu0 0.0
        %4080 = vmatprep.subr.mxu0 0.0
        %4081 = vmatpush1.xpose.msra.mxu0 0.0
        %4082 = vmatprep.subr.mxu0 0.0
        %4083 = vmatpush1.xpose.msra.mxu0 0.0
        %4084 = vmatprep.subr.mxu0 0.0
        %4085 = vmatpush1.xpose.msra.mxu0 0.0
        %4086 = vmatprep.subr.mxu0 0.0
        %4087 = vmatpush1.xpose.msra.mxu0 0.0
        %4088 = vmatprep.subr.mxu0 0.0
        %4089 = vmatpush1.xpose.msra.mxu0 0.0
        %4090 = vmatprep.subr.mxu0 0.0
        %4091 = vmatpush1.xpose.msra.mxu0 0.0
        %4092 = vmatprep.subr.mxu0 0.0
        %4093 = vmatpush1.xpose.msra.mxu0 0.0
        %4094 = vmatprep.subr.mxu0 0.0
        %4095 = vmatpush1.xpose.msra.mxu0 0.0
        %4096 = vmatprep.subr.mxu0 0.0
        %4097 = vmatpush1.xpose.msra.mxu0 0.0
        %4098 = vmatprep.subr.mxu0 0.0
        %4099 = vmatpush1.xpose.msra.mxu0 0.0
        %4100 = vmatprep.subr.mxu0 0.0
        %4101 = vmatpush1.xpose.msra.mxu0 0.0
        %4102 = vmatprep.mubr.f32.mxu0 0.0
        %4103 = vmatmul.mubr.f32.gmra.mrb[0].mxu0 %v4034
        %v4104 = vpop.f32.mrb[0].mxu0
        %v4105 = vadd.f32 0.0, %v4104
        %v4106 = vpop.f32.mrb[0].mxu0
        %4107 = vdwg.mxu0
        %4109 = vrot.lane.b32.xlu0 %v3710, 126
        %v4110 = vpop.permute.xlu0 %4109
        %v4111 = vsel %vm516, %v3710, 0
        %v4113 = vsel %vm516, %v4110, 0
        %4115 = vmatprep.subr.mxu0 0.0
        %4116 = vmatpush1.xpose.msra.mxu0 %v4113
        %4117 = vmatprep.subr.mxu0 0.0
        %4118 = vmatpush1.xpose.msra.mxu0 0.0
        %4119 = vmatprep.subr.mxu0 0.0
        %4120 = vmatpush1.xpose.msra.mxu0 0.0
        %4121 = vmatprep.subr.mxu0 0.0
        %4122 = vmatpush1.xpose.msra.mxu0 0.0
        %4123 = vmatprep.subr.mxu0 0.0
        %4124 = vmatpush1.xpose.msra.mxu0 0.0
        %4125 = vmatprep.subr.mxu0 0.0
        %4126 = vmatpush1.xpose.msra.mxu0 0.0
        %4127 = vmatprep.subr.mxu0 0.0
        %4128 = vmatpush1.xpose.msra.mxu0 0.0
        %4129 = vmatprep.subr.mxu0 0.0
        %4130 = vmatpush1.xpose.msra.mxu0 0.0
        %4131 = vmatprep.subr.mxu0 0.0
        %4132 = vmatpush1.xpose.msra.mxu0 0.0
        %4133 = vmatprep.subr.mxu0 0.0
        %4134 = vmatpush1.xpose.msra.mxu0 0.0
        %4135 = vmatprep.subr.mxu0 0.0
        %4136 = vmatpush1.xpose.msra.mxu0 0.0
        %4137 = vmatprep.subr.mxu0 0.0
        %4138 = vmatpush1.xpose.msra.mxu0 0.0
        %4139 = vmatprep.subr.mxu0 0.0
        %4140 = vmatpush1.xpose.msra.mxu0 0.0
        %4141 = vmatprep.subr.mxu0 0.0
        %4142 = vmatpush1.xpose.msra.mxu0 0.0
        %4143 = vmatprep.subr.mxu0 0.0
        %4144 = vmatpush1.xpose.msra.mxu0 0.0
        %4145 = vmatprep.subr.mxu0 0.0
        %4146 = vmatpush1.xpose.msra.mxu0 0.0
        %4147 = vmatprep.subr.mxu0 0.0
        %4148 = vmatpush1.xpose.msra.mxu0 0.0
        %4149 = vmatprep.subr.mxu0 0.0
        %4150 = vmatpush1.xpose.msra.mxu0 0.0
        %4151 = vmatprep.subr.mxu0 0.0
        %4152 = vmatpush1.xpose.msra.mxu0 0.0
        %4153 = vmatprep.subr.mxu0 0.0
        %4154 = vmatpush1.xpose.msra.mxu0 0.0
        %4155 = vmatprep.subr.mxu0 0.0
        %4156 = vmatpush1.xpose.msra.mxu0 0.0
        %4157 = vmatprep.subr.mxu0 0.0
        %4158 = vmatpush1.xpose.msra.mxu0 0.0
        %4159 = vmatprep.subr.mxu0 0.0
        %4160 = vmatpush1.xpose.msra.mxu0 0.0
        %4161 = vmatprep.subr.mxu0 0.0
        %4162 = vmatpush1.xpose.msra.mxu0 0.0
        %4163 = vmatprep.subr.mxu0 0.0
        %4164 = vmatpush1.xpose.msra.mxu0 0.0
        %4165 = vmatprep.subr.mxu0 0.0
        %4166 = vmatpush1.xpose.msra.mxu0 0.0
        %4167 = vmatprep.subr.mxu0 0.0
        %4168 = vmatpush1.xpose.msra.mxu0 0.0
        %4169 = vmatprep.subr.mxu0 0.0
        %4170 = vmatpush1.xpose.msra.mxu0 0.0
        %4171 = vmatprep.subr.mxu0 0.0
        %4172 = vmatpush1.xpose.msra.mxu0 0.0
        %4173 = vmatprep.subr.mxu0 0.0
        %4174 = vmatpush1.xpose.msra.mxu0 0.0
        %4175 = vmatprep.subr.mxu0 0.0
        %4176 = vmatpush1.xpose.msra.mxu0 0.0
        %4177 = vmatprep.subr.mxu0 0.0
        %4178 = vmatpush1.xpose.msra.mxu0 0.0
        %4179 = vmatprep.mubr.f32.mxu0 0.0
        %4180 = vmatmul.mubr.f32.gmra.mrb[0].mxu0 %v4111
        %v4181 = vpop.f32.mrb[0].mxu0
        %v4182 = vadd.f32 0.0, %v4181
        %v4183 = vpop.f32.mrb[0].mxu0
        %4184 = vdwg.mxu0
        %4186 = vrot.lane.b32.xlu0 %v3715, 126
        %v4187 = vpop.permute.xlu0 %4186
        %v4188 = vsel %vm516, %v3715, 0
        %v4190 = vsel %vm516, %v4187, 0
        %4192 = vmatprep.subr.mxu0 0.0
        %4193 = vmatpush1.xpose.msra.mxu0 %v4190
        %4194 = vmatprep.subr.mxu0 0.0
        %4195 = vmatpush1.xpose.msra.mxu0 0.0
        %4196 = vmatprep.subr.mxu0 0.0
        %4197 = vmatpush1.xpose.msra.mxu0 0.0
        %4198 = vmatprep.subr.mxu0 0.0
        %4199 = vmatpush1.xpose.msra.mxu0 0.0
        %4200 = vmatprep.subr.mxu0 0.0
        %4201 = vmatpush1.xpose.msra.mxu0 0.0
        %4202 = vmatprep.subr.mxu0 0.0
        %4203 = vmatpush1.xpose.msra.mxu0 0.0
        %4204 = vmatprep.subr.mxu0 0.0
        %4205 = vmatpush1.xpose.msra.mxu0 0.0
        %4206 = vmatprep.subr.mxu0 0.0
        %4207 = vmatpush1.xpose.msra.mxu0 0.0
        %4208 = vmatprep.subr.mxu0 0.0
        %4209 = vmatpush1.xpose.msra.mxu0 0.0
        %4210 = vmatprep.subr.mxu0 0.0
        %4211 = vmatpush1.xpose.msra.mxu0 0.0
        %4212 = vmatprep.subr.mxu0 0.0
        %4213 = vmatpush1.xpose.msra.mxu0 0.0
        %4214 = vmatprep.subr.mxu0 0.0
        %4215 = vmatpush1.xpose.msra.mxu0 0.0
        %4216 = vmatprep.subr.mxu0 0.0
        %4217 = vmatpush1.xpose.msra.mxu0 0.0
        %4218 = vmatprep.subr.mxu0 0.0
        %4219 = vmatpush1.xpose.msra.mxu0 0.0
        %4220 = vmatprep.subr.mxu0 0.0
        %4221 = vmatpush1.xpose.msra.mxu0 0.0
        %4222 = vmatprep.subr.mxu0 0.0
        %4223 = vmatpush1.xpose.msra.mxu0 0.0
        %4224 = vmatprep.subr.mxu0 0.0
        %4225 = vmatpush1.xpose.msra.mxu0 0.0
        %4226 = vmatprep.subr.mxu0 0.0
        %4227 = vmatpush1.xpose.msra.mxu0 0.0
        %4228 = vmatprep.subr.mxu0 0.0
        %4229 = vmatpush1.xpose.msra.mxu0 0.0
        %4230 = vmatprep.subr.mxu0 0.0
        %4231 = vmatpush1.xpose.msra.mxu0 0.0
        %4232 = vmatprep.subr.mxu0 0.0
        %4233 = vmatpush1.xpose.msra.mxu0 0.0
        %4234 = vmatprep.subr.mxu0 0.0
        %4235 = vmatpush1.xpose.msra.mxu0 0.0
        %4236 = vmatprep.subr.mxu0 0.0
        %4237 = vmatpush1.xpose.msra.mxu0 0.0
        %4238 = vmatprep.subr.mxu0 0.0
        %4239 = vmatpush1.xpose.msra.mxu0 0.0
        %4240 = vmatprep.subr.mxu0 0.0
        %4241 = vmatpush1.xpose.msra.mxu0 0.0
        %4242 = vmatprep.subr.mxu0 0.0
        %4243 = vmatpush1.xpose.msra.mxu0 0.0
        %4244 = vmatprep.subr.mxu0 0.0
        %4245 = vmatpush1.xpose.msra.mxu0 0.0
        %4246 = vmatprep.subr.mxu0 0.0
        %4247 = vmatpush1.xpose.msra.mxu0 0.0
        %4248 = vmatprep.subr.mxu0 0.0
        %4249 = vmatpush1.xpose.msra.mxu0 0.0
        %4250 = vmatprep.subr.mxu0 0.0
        %4251 = vmatpush1.xpose.msra.mxu0 0.0
        %4252 = vmatprep.subr.mxu0 0.0
        %4253 = vmatpush1.xpose.msra.mxu0 0.0
        %4254 = vmatprep.subr.mxu0 0.0
        %4255 = vmatpush1.xpose.msra.mxu0 0.0
        %4256 = vmatprep.mubr.f32.mxu0 0.0
        %4257 = vmatmul.mubr.f32.gmra.mrb[0].mxu0 %v4188
        %v4258 = vpop.f32.mrb[0].mxu0
        %v4259 = vadd.f32 0.0, %v4258
        %v4260 = vpop.f32.mrb[0].mxu0
        %4261 = vdwg.mxu0
        %4263 = vrot.lane.b32.xlu0 %v3720, 126
        %v4264 = vpop.permute.xlu0 %4263
        %v4265 = vsel %vm516, %v3720, 0
        %v4267 = vsel %vm516, %v4264, 0
        %4269 = vmatprep.subr.mxu0 0.0
        %4270 = vmatpush1.xpose.msra.mxu0 %v4267
        %4271 = vmatprep.subr.mxu0 0.0
        %4272 = vmatpush1.xpose.msra.mxu0 0.0
        %4273 = vmatprep.subr.mxu0 0.0
        %4274 = vmatpush1.xpose.msra.mxu0 0.0
        %4275 = vmatprep.subr.mxu0 0.0
        %4276 = vmatpush1.xpose.msra.mxu0 0.0
        %4277 = vmatprep.subr.mxu0 0.0
        %4278 = vmatpush1.xpose.msra.mxu0 0.0
        %4279 = vmatprep.subr.mxu0 0.0
        %4280 = vmatpush1.xpose.msra.mxu0 0.0
        %4281 = vmatprep.subr.mxu0 0.0
        %4282 = vmatpush1.xpose.msra.mxu0 0.0
        %4283 = vmatprep.subr.mxu0 0.0
        %4284 = vmatpush1.xpose.msra.mxu0 0.0
        %4285 = vmatprep.subr.mxu0 0.0
        %4286 = vmatpush1.xpose.msra.mxu0 0.0
        %4287 = vmatprep.subr.mxu0 0.0
        %4288 = vmatpush1.xpose.msra.mxu0 0.0
        %4289 = vmatprep.subr.mxu0 0.0
        %4290 = vmatpush1.xpose.msra.mxu0 0.0
        %4291 = vmatprep.subr.mxu0 0.0
        %4292 = vmatpush1.xpose.msra.mxu0 0.0
        %4293 = vmatprep.subr.mxu0 0.0
        %4294 = vmatpush1.xpose.msra.mxu0 0.0
        %4295 = vmatprep.subr.mxu0 0.0
        %4296 = vmatpush1.xpose.msra.mxu0 0.0
        %4297 = vmatprep.subr.mxu0 0.0
        %4298 = vmatpush1.xpose.msra.mxu0 0.0
        %4299 = vmatprep.subr.mxu0 0.0
        %4300 = vmatpush1.xpose.msra.mxu0 0.0
        %4301 = vmatprep.subr.mxu0 0.0
        %4302 = vmatpush1.xpose.msra.mxu0 0.0
        %4303 = vmatprep.subr.mxu0 0.0
        %4304 = vmatpush1.xpose.msra.mxu0 0.0
        %4305 = vmatprep.subr.mxu0 0.0
        %4306 = vmatpush1.xpose.msra.mxu0 0.0
        %4307 = vmatprep.subr.mxu0 0.0
        %4308 = vmatpush1.xpose.msra.mxu0 0.0
        %4309 = vmatprep.subr.mxu0 0.0
        %4310 = vmatpush1.xpose.msra.mxu0 0.0
        %4311 = vmatprep.subr.mxu0 0.0
        %4312 = vmatpush1.xpose.msra.mxu0 0.0
        %4313 = vmatprep.subr.mxu0 0.0
        %4314 = vmatpush1.xpose.msra.mxu0 0.0
        %4315 = vmatprep.subr.mxu0 0.0
        %4316 = vmatpush1.xpose.msra.mxu0 0.0
        %4317 = vmatprep.subr.mxu0 0.0
        %4318 = vmatpush1.xpose.msra.mxu0 0.0
        %4319 = vmatprep.subr.mxu0 0.0
        %4320 = vmatpush1.xpose.msra.mxu0 0.0
        %4321 = vmatprep.subr.mxu0 0.0
        %4322 = vmatpush1.xpose.msra.mxu0 0.0
        %4323 = vmatprep.subr.mxu0 0.0
        %4324 = vmatpush1.xpose.msra.mxu0 0.0
        %4325 = vmatprep.subr.mxu0 0.0
        %4326 = vmatpush1.xpose.msra.mxu0 0.0
        %4327 = vmatprep.subr.mxu0 0.0
        %4328 = vmatpush1.xpose.msra.mxu0 0.0
        %4329 = vmatprep.subr.mxu0 0.0
        %4330 = vmatpush1.xpose.msra.mxu0 0.0
        %4331 = vmatprep.subr.mxu0 0.0
        %4332 = vmatpush1.xpose.msra.mxu0 0.0
        %4333 = vmatprep.mubr.f32.mxu0 0.0
        %4334 = vmatmul.mubr.f32.gmra.mrb[0].mxu0 %v4265
        %v4335 = vpop.f32.mrb[0].mxu0
        %v4336 = vadd.f32 0.0, %v4335
        %v4337 = vpop.f32.mrb[0].mxu0
        %4338 = vdwg.mxu0
        %v4339 = vsel %vm1130, %v3797, -inf
        %4340 = vmax.xlane.f32.xlu0 %v4339
        %v4341 = vpop.xlane.xlu0 %4340
        %v4342 = vsel %vm1130, %v3874, -inf
        %4343 = vmax.xlane.f32.xlu0 %v4342
        %v4344 = vpop.xlane.xlu0 %4343
        %v4345 = vsel %vm1130, %v3951, -inf
        %4346 = vmax.xlane.f32.xlu0 %v4345
        %v4347 = vpop.xlane.xlu0 %4346
        %v4348 = vsel %vm1130, %v4028, -inf
        %4349 = vmax.xlane.f32.xlu0 %v4348
        %v4350 = vpop.xlane.xlu0 %4349
        %v4351 = vsel %vm1130, %v4105, -inf
        %4352 = vmax.xlane.f32.xlu0 %v4351
        %v4353 = vpop.xlane.xlu0 %4352
        %v4354 = vsel %vm1130, %v4182, -inf
        %4355 = vmax.xlane.f32.xlu0 %v4354
        %v4356 = vpop.xlane.xlu0 %4355
        %v4357 = vsel %vm1130, %v4259, -inf
        %4358 = vmax.xlane.f32.xlu0 %v4357
        %v4359 = vpop.xlane.xlu0 %4358
        %v4360 = vsel %vm1130, %v4336, -inf
        %4361 = vmax.xlane.f32.xlu0 %v4360
        %v4362 = vpop.xlane.xlu0 %4361
        %v4363 = vsub.f32 %v3797, %v4341
        %v4364 = vsub.f32 %v3874, %v4344
        %v4365 = vsub.f32 %v3951, %v4347
        %v4366 = vsub.f32 %v4028, %v4350
        %v4367 = vsub.f32 %v4105, %v4353
        %v4368 = vsub.f32 %v4182, %v4356
        %v4369 = vsub.f32 %v4259, %v4359
        %v4370 = vsub.f32 %v4336, %v4362
        %v4371 = vmul.f32 %v4363, 1.442695
        %v4372 = vpow.pop %v4371
        %v4373 = vmul.f32 %v4364, 1.442695
        %v4374 = vpow.pop %v4373
        %v4375 = vmul.f32 %v4365, 1.442695
        %v4376 = vpow.pop %v4375
        %v4377 = vmul.f32 %v4366, 1.442695
        %v4378 = vpow.pop %v4377
        %v4379 = vmul.f32 %v4367, 1.442695
        %v4380 = vpow.pop %v4379
        %v4381 = vmul.f32 %v4368, 1.442695
        %v4382 = vpow.pop %v4381
        %v4383 = vmul.f32 %v4369, 1.442695
        %v4384 = vpow.pop %v4383
        %v4385 = vmul.f32 %v4370, 1.442695
        %v4386 = vpow.pop %v4385
        %v4387 = vsel %vm1130, %v4372, 0.0
        %4388 = vadd.xlane.f32.xlu0 %v4387
        %v4389 = vpop.xlane.xlu0 %4388
        %v4390 = vsel %vm1130, %v4374, 0.0
        %4391 = vadd.xlane.f32.xlu0 %v4390
        %v4392 = vpop.xlane.xlu0 %4391
        %v4393 = vsel %vm1130, %v4376, 0.0
        %4394 = vadd.xlane.f32.xlu0 %v4393
        %v4395 = vpop.xlane.xlu0 %4394
        %v4396 = vsel %vm1130, %v4378, 0.0
        %4397 = vadd.xlane.f32.xlu0 %v4396
        %v4398 = vpop.xlane.xlu0 %4397
        %v4399 = vsel %vm1130, %v4380, 0.0
        %4400 = vadd.xlane.f32.xlu0 %v4399
        %v4401 = vpop.xlane.xlu0 %4400
        %v4402 = vsel %vm1130, %v4382, 0.0
        %4403 = vadd.xlane.f32.xlu0 %v4402
        %v4404 = vpop.xlane.xlu0 %4403
        %v4405 = vsel %vm1130, %v4384, 0.0
        %4406 = vadd.xlane.f32.xlu0 %v4405
        %v4407 = vpop.xlane.xlu0 %4406
        %v4408 = vsel %vm1130, %v4386, 0.0
        %4409 = vadd.xlane.f32.xlu0 %v4408
        %v4410 = vpop.xlane.xlu0 %4409
        %v4411 = vrcp.pop %v4389
        %v4412 = vrcp.pop %v4392
        %v4413 = vrcp.pop %v4395
        %v4414 = vrcp.pop %v4398
        %v4415 = vrcp.pop %v4401
        %v4416 = vrcp.pop %v4404
        %v4417 = vrcp.pop %v4407
        %v4418 = vrcp.pop %v4410
        %v4419 = vmul.f32 %v4372, %v4411
        %v4420 = vmul.f32 %v4374, %v4412
        %v4421 = vmul.f32 %v4376, %v4413
        %v4422 = vmul.f32 %v4378, %v4414
        %v4423 = vmul.f32 %v4380, %v4415
        %v4424 = vmul.f32 %v4382, %v4416
        %v4425 = vmul.f32 %v4384, %v4417
        %v4426 = vmul.f32 %v4386, %v4418
        %4427 = vrot.lane.b32.xlu0 %v3685, 124
        %v4428 = vpop.permute.xlu0 %4427
        %v4431 = vsel %vm1130, %v4419, 0
        %4433 = vmatprep.subr.mxu0 0.0
        %4434 = vmatpush1.msra.mxu0 %v4428
        %4435 = vmatprep.subr.mxu0 0.0
        %4436 = vmatpush1.msra.mxu0 0.0
        %4437 = vmatprep.subr.mxu0 0.0
        %4438 = vmatpush1.msra.mxu0 0.0
        %4439 = vmatprep.subr.mxu0 0.0
        %4440 = vmatpush1.msra.mxu0 0.0
        %4441 = vmatprep.subr.mxu0 0.0
        %4442 = vmatpush1.msra.mxu0 0.0
        %4443 = vmatprep.subr.mxu0 0.0
        %4444 = vmatpush1.msra.mxu0 0.0
        %4445 = vmatprep.subr.mxu0 0.0
        %4446 = vmatpush1.msra.mxu0 0.0
        %4447 = vmatprep.subr.mxu0 0.0
        %4448 = vmatpush1.msra.mxu0 0.0
        %4449 = vmatprep.subr.mxu0 0.0
        %4450 = vmatpush1.msra.mxu0 0.0
        %4451 = vmatprep.subr.mxu0 0.0
        %4452 = vmatpush1.msra.mxu0 0.0
        %4453 = vmatprep.subr.mxu0 0.0
        %4454 = vmatpush1.msra.mxu0 0.0
        %4455 = vmatprep.subr.mxu0 0.0
        %4456 = vmatpush1.msra.mxu0 0.0
        %4457 = vmatprep.subr.mxu0 0.0
        %4458 = vmatpush1.msra.mxu0 0.0
        %4459 = vmatprep.subr.mxu0 0.0
        %4460 = vmatpush1.msra.mxu0 0.0
        %4461 = vmatprep.subr.mxu0 0.0
        %4462 = vmatpush1.msra.mxu0 0.0
        %4463 = vmatprep.subr.mxu0 0.0
        %4464 = vmatpush1.msra.mxu0 0.0
        %4465 = vmatprep.subr.mxu0 0.0
        %4466 = vmatpush1.msra.mxu0 0.0
        %4467 = vmatprep.subr.mxu0 0.0
        %4468 = vmatpush1.msra.mxu0 0.0
        %4469 = vmatprep.subr.mxu0 0.0
        %4470 = vmatpush1.msra.mxu0 0.0
        %4471 = vmatprep.subr.mxu0 0.0
        %4472 = vmatpush1.msra.mxu0 0.0
        %4473 = vmatprep.subr.mxu0 0.0
        %4474 = vmatpush1.msra.mxu0 0.0
        %4475 = vmatprep.subr.mxu0 0.0
        %4476 = vmatpush1.msra.mxu0 0.0
        %4477 = vmatprep.subr.mxu0 0.0
        %4478 = vmatpush1.msra.mxu0 0.0
        %4479 = vmatprep.subr.mxu0 0.0
        %4480 = vmatpush1.msra.mxu0 0.0
        %4481 = vmatprep.subr.mxu0 0.0
        %4482 = vmatpush1.msra.mxu0 0.0
        %4483 = vmatprep.subr.mxu0 0.0
        %4484 = vmatpush1.msra.mxu0 0.0
        %4485 = vmatprep.subr.mxu0 0.0
        %4486 = vmatpush1.msra.mxu0 0.0
        %4487 = vmatprep.subr.mxu0 0.0
        %4488 = vmatpush1.msra.mxu0 0.0
        %4489 = vmatprep.subr.mxu0 0.0
        %4490 = vmatpush1.msra.mxu0 0.0
        %4491 = vmatprep.subr.mxu0 0.0
        %4492 = vmatpush1.msra.mxu0 0.0
        %4493 = vmatprep.subr.mxu0 0.0
        %4494 = vmatpush1.msra.mxu0 0.0
        %4495 = vmatprep.subr.mxu0 0.0
        %4496 = vmatpush1.msra.mxu0 0.0
        %4497 = vmatprep.mubr.f32.mxu0 0.0
        %4498 = vmatmul.mubr.f32.gmra.mrb[0].mxu0 %v4431
        %v4499 = vpop.f32.mrb[0].mxu0
        %v4500 = vadd.f32 0.0, %v4499
        %v4501 = vpop.f32.mrb[0].mxu0
        %4502 = vdwg.mxu0
        %4503 = vrot.lane.b32.xlu0 %v3690, 124
        %v4504 = vpop.permute.xlu0 %4503
        %v4507 = vsel %vm1130, %v4420, 0
        %4509 = vmatprep.subr.mxu0 0.0
        %4510 = vmatpush1.msra.mxu0 %v4504
        %4511 = vmatprep.subr.mxu0 0.0
        %4512 = vmatpush1.msra.mxu0 0.0
        %4513 = vmatprep.subr.mxu0 0.0
        %4514 = vmatpush1.msra.mxu0 0.0
        %4515 = vmatprep.subr.mxu0 0.0
        %4516 = vmatpush1.msra.mxu0 0.0
        %4517 = vmatprep.subr.mxu0 0.0
        %4518 = vmatpush1.msra.mxu0 0.0
        %4519 = vmatprep.subr.mxu0 0.0
        %4520 = vmatpush1.msra.mxu0 0.0
        %4521 = vmatprep.subr.mxu0 0.0
        %4522 = vmatpush1.msra.mxu0 0.0
        %4523 = vmatprep.subr.mxu0 0.0
        %4524 = vmatpush1.msra.mxu0 0.0
        %4525 = vmatprep.subr.mxu0 0.0
        %4526 = vmatpush1.msra.mxu0 0.0
        %4527 = vmatprep.subr.mxu0 0.0
        %4528 = vmatpush1.msra.mxu0 0.0
        %4529 = vmatprep.subr.mxu0 0.0
        %4530 = vmatpush1.msra.mxu0 0.0
        %4531 = vmatprep.subr.mxu0 0.0
        %4532 = vmatpush1.msra.mxu0 0.0
        %4533 = vmatprep.subr.mxu0 0.0
        %4534 = vmatpush1.msra.mxu0 0.0
        %4535 = vmatprep.subr.mxu0 0.0
        %4536 = vmatpush1.msra.mxu0 0.0
        %4537 = vmatprep.subr.mxu0 0.0
        %4538 = vmatpush1.msra.mxu0 0.0
        %4539 = vmatprep.subr.mxu0 0.0
        %4540 = vmatpush1.msra.mxu0 0.0
        %4541 = vmatprep.subr.mxu0 0.0
        %4542 = vmatpush1.msra.mxu0 0.0
        %4543 = vmatprep.subr.mxu0 0.0
        %4544 = vmatpush1.msra.mxu0 0.0
        %4545 = vmatprep.subr.mxu0 0.0
        %4546 = vmatpush1.msra.mxu0 0.0
        %4547 = vmatprep.subr.mxu0 0.0
        %4548 = vmatpush1.msra.mxu0 0.0
        %4549 = vmatprep.subr.mxu0 0.0
        %4550 = vmatpush1.msra.mxu0 0.0
        %4551 = vmatprep.subr.mxu0 0.0
        %4552 = vmatpush1.msra.mxu0 0.0
        %4553 = vmatprep.subr.mxu0 0.0
        %4554 = vmatpush1.msra.mxu0 0.0
        %4555 = vmatprep.subr.mxu0 0.0
        %4556 = vmatpush1.msra.mxu0 0.0
        %4557 = vmatprep.subr.mxu0 0.0
        %4558 = vmatpush1.msra.mxu0 0.0
        %4559 = vmatprep.subr.mxu0 0.0
        %4560 = vmatpush1.msra.mxu0 0.0
        %4561 = vmatprep.subr.mxu0 0.0
        %4562 = vmatpush1.msra.mxu0 0.0
        %4563 = vmatprep.subr.mxu0 0.0
        %4564 = vmatpush1.msra.mxu0 0.0
        %4565 = vmatprep.subr.mxu0 0.0
        %4566 = vmatpush1.msra.mxu0 0.0
        %4567 = vmatprep.subr.mxu0 0.0
        %4568 = vmatpush1.msra.mxu0 0.0
        %4569 = vmatprep.subr.mxu0 0.0
        %4570 = vmatpush1.msra.mxu0 0.0
        %4571 = vmatprep.subr.mxu0 0.0
        %4572 = vmatpush1.msra.mxu0 0.0
        %4573 = vmatprep.mubr.f32.mxu0 0.0
        %4574 = vmatmul.mubr.f32.gmra.mrb[0].mxu0 %v4507
        %v4575 = vpop.f32.mrb[0].mxu0
        %v4576 = vadd.f32 0.0, %v4575
        %v4577 = vpop.f32.mrb[0].mxu0
        %4578 = vdwg.mxu0
        %4579 = vrot.lane.b32.xlu0 %v3695, 124
        %v4580 = vpop.permute.xlu0 %4579
        %v4583 = vsel %vm1130, %v4421, 0
        %4585 = vmatprep.subr.mxu0 0.0
        %4586 = vmatpush1.msra.mxu0 %v4580
        %4587 = vmatprep.subr.mxu0 0.0
        %4588 = vmatpush1.msra.mxu0 0.0
        %4589 = vmatprep.subr.mxu0 0.0
        %4590 = vmatpush1.msra.mxu0 0.0
        %4591 = vmatprep.subr.mxu0 0.0
        %4592 = vmatpush1.msra.mxu0 0.0
        %4593 = vmatprep.subr.mxu0 0.0
        %4594 = vmatpush1.msra.mxu0 0.0
        %4595 = vmatprep.subr.mxu0 0.0
        %4596 = vmatpush1.msra.mxu0 0.0
        %4597 = vmatprep.subr.mxu0 0.0
        %4598 = vmatpush1.msra.mxu0 0.0
        %4599 = vmatprep.subr.mxu0 0.0
        %4600 = vmatpush1.msra.mxu0 0.0
        %4601 = vmatprep.subr.mxu0 0.0
        %4602 = vmatpush1.msra.mxu0 0.0
        %4603 = vmatprep.subr.mxu0 0.0
        %4604 = vmatpush1.msra.mxu0 0.0
        %4605 = vmatprep.subr.mxu0 0.0
        %4606 = vmatpush1.msra.mxu0 0.0
        %4607 = vmatprep.subr.mxu0 0.0
        %4608 = vmatpush1.msra.mxu0 0.0
        %4609 = vmatprep.subr.mxu0 0.0
        %4610 = vmatpush1.msra.mxu0 0.0
        %4611 = vmatprep.subr.mxu0 0.0
        %4612 = vmatpush1.msra.mxu0 0.0
        %4613 = vmatprep.subr.mxu0 0.0
        %4614 = vmatpush1.msra.mxu0 0.0
        %4615 = vmatprep.subr.mxu0 0.0
        %4616 = vmatpush1.msra.mxu0 0.0
        %4617 = vmatprep.subr.mxu0 0.0
        %4618 = vmatpush1.msra.mxu0 0.0
        %4619 = vmatprep.subr.mxu0 0.0
        %4620 = vmatpush1.msra.mxu0 0.0
        %4621 = vmatprep.subr.mxu0 0.0
        %4622 = vmatpush1.msra.mxu0 0.0
        %4623 = vmatprep.subr.mxu0 0.0
        %4624 = vmatpush1.msra.mxu0 0.0
        %4625 = vmatprep.subr.mxu0 0.0
        %4626 = vmatpush1.msra.mxu0 0.0
        %4627 = vmatprep.subr.mxu0 0.0
        %4628 = vmatpush1.msra.mxu0 0.0
        %4629 = vmatprep.subr.mxu0 0.0
        %4630 = vmatpush1.msra.mxu0 0.0
        %4631 = vmatprep.subr.mxu0 0.0
        %4632 = vmatpush1.msra.mxu0 0.0
        %4633 = vmatprep.subr.mxu0 0.0
        %4634 = vmatpush1.msra.mxu0 0.0
        %4635 = vmatprep.subr.mxu0 0.0
        %4636 = vmatpush1.msra.mxu0 0.0
        %4637 = vmatprep.subr.mxu0 0.0
        %4638 = vmatpush1.msra.mxu0 0.0
        %4639 = vmatprep.subr.mxu0 0.0
        %4640 = vmatpush1.msra.mxu0 0.0
        %4641 = vmatprep.subr.mxu0 0.0
        %4642 = vmatpush1.msra.mxu0 0.0
        %4643 = vmatprep.subr.mxu0 0.0
        %4644 = vmatpush1.msra.mxu0 0.0
        %4645 = vmatprep.subr.mxu0 0.0
        %4646 = vmatpush1.msra.mxu0 0.0
        %4647 = vmatprep.subr.mxu0 0.0
        %4648 = vmatpush1.msra.mxu0 0.0
        %4649 = vmatprep.mubr.f32.mxu0 0.0
        %4650 = vmatmul.mubr.f32.gmra.mrb[0].mxu0 %v4583
        %v4651 = vpop.f32.mrb[0].mxu0
        %v4652 = vadd.f32 0.0, %v4651
        %v4653 = vpop.f32.mrb[0].mxu0
        %4654 = vdwg.mxu0
        %4655 = vrot.lane.b32.xlu0 %v3700, 124
        %v4656 = vpop.permute.xlu0 %4655
        %v4659 = vsel %vm1130, %v4422, 0
        %4661 = vmatprep.subr.mxu0 0.0
        %4662 = vmatpush1.msra.mxu0 %v4656
        %4663 = vmatprep.subr.mxu0 0.0
        %4664 = vmatpush1.msra.mxu0 0.0
        %4665 = vmatprep.subr.mxu0 0.0
        %4666 = vmatpush1.msra.mxu0 0.0
        %4667 = vmatprep.subr.mxu0 0.0
        %4668 = vmatpush1.msra.mxu0 0.0
        %4669 = vmatprep.subr.mxu0 0.0
        %4670 = vmatpush1.msra.mxu0 0.0
        %4671 = vmatprep.subr.mxu0 0.0
        %4672 = vmatpush1.msra.mxu0 0.0
        %4673 = vmatprep.subr.mxu0 0.0
        %4674 = vmatpush1.msra.mxu0 0.0
        %4675 = vmatprep.subr.mxu0 0.0
        %4676 = vmatpush1.msra.mxu0 0.0
        %4677 = vmatprep.subr.mxu0 0.0
        %4678 = vmatpush1.msra.mxu0 0.0
        %4679 = vmatprep.subr.mxu0 0.0
        %4680 = vmatpush1.msra.mxu0 0.0
        %4681 = vmatprep.subr.mxu0 0.0
        %4682 = vmatpush1.msra.mxu0 0.0
        %4683 = vmatprep.subr.mxu0 0.0
        %4684 = vmatpush1.msra.mxu0 0.0
        %4685 = vmatprep.subr.mxu0 0.0
        %4686 = vmatpush1.msra.mxu0 0.0
        %4687 = vmatprep.subr.mxu0 0.0
        %4688 = vmatpush1.msra.mxu0 0.0
        %4689 = vmatprep.subr.mxu0 0.0
        %4690 = vmatpush1.msra.mxu0 0.0
        %4691 = vmatprep.subr.mxu0 0.0
        %4692 = vmatpush1.msra.mxu0 0.0
        %4693 = vmatprep.subr.mxu0 0.0
        %4694 = vmatpush1.msra.mxu0 0.0
        %4695 = vmatprep.subr.mxu0 0.0
        %4696 = vmatpush1.msra.mxu0 0.0
        %4697 = vmatprep.subr.mxu0 0.0
        %4698 = vmatpush1.msra.mxu0 0.0
        %4699 = vmatprep.subr.mxu0 0.0
        %4700 = vmatpush1.msra.mxu0 0.0
        %4701 = vmatprep.subr.mxu0 0.0
        %4702 = vmatpush1.msra.mxu0 0.0
        %4703 = vmatprep.subr.mxu0 0.0
        %4704 = vmatpush1.msra.mxu0 0.0
        %4705 = vmatprep.subr.mxu0 0.0
        %4706 = vmatpush1.msra.mxu0 0.0
        %4707 = vmatprep.subr.mxu0 0.0
        %4708 = vmatpush1.msra.mxu0 0.0
        %4709 = vmatprep.subr.mxu0 0.0
        %4710 = vmatpush1.msra.mxu0 0.0
        %4711 = vmatprep.subr.mxu0 0.0
        %4712 = vmatpush1.msra.mxu0 0.0
        %4713 = vmatprep.subr.mxu0 0.0
        %4714 = vmatpush1.msra.mxu0 0.0
        %4715 = vmatprep.subr.mxu0 0.0
        %4716 = vmatpush1.msra.mxu0 0.0
        %4717 = vmatprep.subr.mxu0 0.0
        %4718 = vmatpush1.msra.mxu0 0.0
        %4719 = vmatprep.subr.mxu0 0.0
        %4720 = vmatpush1.msra.mxu0 0.0
        %4721 = vmatprep.subr.mxu0 0.0
        %4722 = vmatpush1.msra.mxu0 0.0
        %4723 = vmatprep.subr.mxu0 0.0
        %4724 = vmatpush1.msra.mxu0 0.0
        %4725 = vmatprep.mubr.f32.mxu0 0.0
        %4726 = vmatmul.mubr.f32.gmra.mrb[0].mxu0 %v4659
        %v4727 = vpop.f32.mrb[0].mxu0
        %v4728 = vadd.f32 0.0, %v4727
        %v4729 = vpop.f32.mrb[0].mxu0
        %4730 = vdwg.mxu0
        %4731 = vrot.lane.b32.xlu0 %v3705, 124
        %v4732 = vpop.permute.xlu0 %4731
        %v4735 = vsel %vm1130, %v4423, 0
        %4737 = vmatprep.subr.mxu0 0.0
        %4738 = vmatpush1.msra.mxu0 %v4732
        %4739 = vmatprep.subr.mxu0 0.0
        %4740 = vmatpush1.msra.mxu0 0.0
        %4741 = vmatprep.subr.mxu0 0.0
        %4742 = vmatpush1.msra.mxu0 0.0
        %4743 = vmatprep.subr.mxu0 0.0
        %4744 = vmatpush1.msra.mxu0 0.0
        %4745 = vmatprep.subr.mxu0 0.0
        %4746 = vmatpush1.msra.mxu0 0.0
        %4747 = vmatprep.subr.mxu0 0.0
        %4748 = vmatpush1.msra.mxu0 0.0
        %4749 = vmatprep.subr.mxu0 0.0
        %4750 = vmatpush1.msra.mxu0 0.0
        %4751 = vmatprep.subr.mxu0 0.0
        %4752 = vmatpush1.msra.mxu0 0.0
        %4753 = vmatprep.subr.mxu0 0.0
        %4754 = vmatpush1.msra.mxu0 0.0
        %4755 = vmatprep.subr.mxu0 0.0
        %4756 = vmatpush1.msra.mxu0 0.0
        %4757 = vmatprep.subr.mxu0 0.0
        %4758 = vmatpush1.msra.mxu0 0.0
        %4759 = vmatprep.subr.mxu0 0.0
        %4760 = vmatpush1.msra.mxu0 0.0
        %4761 = vmatprep.subr.mxu0 0.0
        %4762 = vmatpush1.msra.mxu0 0.0
        %4763 = vmatprep.subr.mxu0 0.0
        %4764 = vmatpush1.msra.mxu0 0.0
        %4765 = vmatprep.subr.mxu0 0.0
        %4766 = vmatpush1.msra.mxu0 0.0
        %4767 = vmatprep.subr.mxu0 0.0
        %4768 = vmatpush1.msra.mxu0 0.0
        %4769 = vmatprep.subr.mxu0 0.0
        %4770 = vmatpush1.msra.mxu0 0.0
        %4771 = vmatprep.subr.mxu0 0.0
        %4772 = vmatpush1.msra.mxu0 0.0
        %4773 = vmatprep.subr.mxu0 0.0
        %4774 = vmatpush1.msra.mxu0 0.0
        %4775 = vmatprep.subr.mxu0 0.0
        %4776 = vmatpush1.msra.mxu0 0.0
        %4777 = vmatprep.subr.mxu0 0.0
        %4778 = vmatpush1.msra.mxu0 0.0
        %4779 = vmatprep.subr.mxu0 0.0
        %4780 = vmatpush1.msra.mxu0 0.0
        %4781 = vmatprep.subr.mxu0 0.0
        %4782 = vmatpush1.msra.mxu0 0.0
        %4783 = vmatprep.subr.mxu0 0.0
        %4784 = vmatpush1.msra.mxu0 0.0
        %4785 = vmatprep.subr.mxu0 0.0
        %4786 = vmatpush1.msra.mxu0 0.0
        %4787 = vmatprep.subr.mxu0 0.0
        %4788 = vmatpush1.msra.mxu0 0.0
        %4789 = vmatprep.subr.mxu0 0.0
        %4790 = vmatpush1.msra.mxu0 0.0
        %4791 = vmatprep.subr.mxu0 0.0
        %4792 = vmatpush1.msra.mxu0 0.0
        %4793 = vmatprep.subr.mxu0 0.0
        %4794 = vmatpush1.msra.mxu0 0.0
        %4795 = vmatprep.subr.mxu0 0.0
        %4796 = vmatpush1.msra.mxu0 0.0
        %4797 = vmatprep.subr.mxu0 0.0
        %4798 = vmatpush1.msra.mxu0 0.0
        %4799 = vmatprep.subr.mxu0 0.0
        %4800 = vmatpush1.msra.mxu0 0.0
        %4801 = vmatprep.mubr.f32.mxu0 0.0
        %4802 = vmatmul.mubr.f32.gmra.mrb[0].mxu0 %v4735
        %v4803 = vpop.f32.mrb[0].mxu0
        %v4804 = vadd.f32 0.0, %v4803
        %v4805 = vpop.f32.mrb[0].mxu0
        %4806 = vdwg.mxu0
        %4807 = vrot.lane.b32.xlu0 %v3710, 124
        %v4808 = vpop.permute.xlu0 %4807
        %v4811 = vsel %vm1130, %v4424, 0
        %4813 = vmatprep.subr.mxu0 0.0
        %4814 = vmatpush1.msra.mxu0 %v4808
        %4815 = vmatprep.subr.mxu0 0.0
        %4816 = vmatpush1.msra.mxu0 0.0
        %4817 = vmatprep.subr.mxu0 0.0
        %4818 = vmatpush1.msra.mxu0 0.0
        %4819 = vmatprep.subr.mxu0 0.0
        %4820 = vmatpush1.msra.mxu0 0.0
        %4821 = vmatprep.subr.mxu0 0.0
        %4822 = vmatpush1.msra.mxu0 0.0
        %4823 = vmatprep.subr.mxu0 0.0
        %4824 = vmatpush1.msra.mxu0 0.0
        %4825 = vmatprep.subr.mxu0 0.0
        %4826 = vmatpush1.msra.mxu0 0.0
        %4827 = vmatprep.subr.mxu0 0.0
        %4828 = vmatpush1.msra.mxu0 0.0
        %4829 = vmatprep.subr.mxu0 0.0
        %4830 = vmatpush1.msra.mxu0 0.0
        %4831 = vmatprep.subr.mxu0 0.0
        %4832 = vmatpush1.msra.mxu0 0.0
        %4833 = vmatprep.subr.mxu0 0.0
        %4834 = vmatpush1.msra.mxu0 0.0
        %4835 = vmatprep.subr.mxu0 0.0
        %4836 = vmatpush1.msra.mxu0 0.0
        %4837 = vmatprep.subr.mxu0 0.0
        %4838 = vmatpush1.msra.mxu0 0.0
        %4839 = vmatprep.subr.mxu0 0.0
        %4840 = vmatpush1.msra.mxu0 0.0
        %4841 = vmatprep.subr.mxu0 0.0
        %4842 = vmatpush1.msra.mxu0 0.0
        %4843 = vmatprep.subr.mxu0 0.0
        %4844 = vmatpush1.msra.mxu0 0.0
        %4845 = vmatprep.subr.mxu0 0.0
        %4846 = vmatpush1.msra.mxu0 0.0
        %4847 = vmatprep.subr.mxu0 0.0
        %4848 = vmatpush1.msra.mxu0 0.0
        %4849 = vmatprep.subr.mxu0 0.0
        %4850 = vmatpush1.msra.mxu0 0.0
        %4851 = vmatprep.subr.mxu0 0.0
        %4852 = vmatpush1.msra.mxu0 0.0
        %4853 = vmatprep.subr.mxu0 0.0
        %4854 = vmatpush1.msra.mxu0 0.0
        %4855 = vmatprep.subr.mxu0 0.0
        %4856 = vmatpush1.msra.mxu0 0.0
        %4857 = vmatprep.subr.mxu0 0.0
        %4858 = vmatpush1.msra.mxu0 0.0
        %4859 = vmatprep.subr.mxu0 0.0
        %4860 = vmatpush1.msra.mxu0 0.0
        %4861 = vmatprep.subr.mxu0 0.0
        %4862 = vmatpush1.msra.mxu0 0.0
        %4863 = vmatprep.subr.mxu0 0.0
        %4864 = vmatpush1.msra.mxu0 0.0
        %4865 = vmatprep.subr.mxu0 0.0
        %4866 = vmatpush1.msra.mxu0 0.0
        %4867 = vmatprep.subr.mxu0 0.0
        %4868 = vmatpush1.msra.mxu0 0.0
        %4869 = vmatprep.subr.mxu0 0.0
        %4870 = vmatpush1.msra.mxu0 0.0
        %4871 = vmatprep.subr.mxu0 0.0
        %4872 = vmatpush1.msra.mxu0 0.0
        %4873 = vmatprep.subr.mxu0 0.0
        %4874 = vmatpush1.msra.mxu0 0.0
        %4875 = vmatprep.subr.mxu0 0.0
        %4876 = vmatpush1.msra.mxu0 0.0
        %4877 = vmatprep.mubr.f32.mxu0 0.0
        %4878 = vmatmul.mubr.f32.gmra.mrb[0].mxu0 %v4811
        %v4879 = vpop.f32.mrb[0].mxu0
        %v4880 = vadd.f32 0.0, %v4879
        %v4881 = vpop.f32.mrb[0].mxu0
        %4882 = vdwg.mxu0
        %4883 = vrot.lane.b32.xlu0 %v3715, 124
        %v4884 = vpop.permute.xlu0 %4883
        %v4887 = vsel %vm1130, %v4425, 0
        %4889 = vmatprep.subr.mxu0 0.0
        %4890 = vmatpush1.msra.mxu0 %v4884
        %4891 = vmatprep.subr.mxu0 0.0
        %4892 = vmatpush1.msra.mxu0 0.0
        %4893 = vmatprep.subr.mxu0 0.0
        %4894 = vmatpush1.msra.mxu0 0.0
        %4895 = vmatprep.subr.mxu0 0.0
        %4896 = vmatpush1.msra.mxu0 0.0
        %4897 = vmatprep.subr.mxu0 0.0
        %4898 = vmatpush1.msra.mxu0 0.0
        %4899 = vmatprep.subr.mxu0 0.0
        %4900 = vmatpush1.msra.mxu0 0.0
        %4901 = vmatprep.subr.mxu0 0.0
        %4902 = vmatpush1.msra.mxu0 0.0
        %4903 = vmatprep.subr.mxu0 0.0
        %4904 = vmatpush1.msra.mxu0 0.0
        %4905 = vmatprep.subr.mxu0 0.0
        %4906 = vmatpush1.msra.mxu0 0.0
        %4907 = vmatprep.subr.mxu0 0.0
        %4908 = vmatpush1.msra.mxu0 0.0
        %4909 = vmatprep.subr.mxu0 0.0
        %4910 = vmatpush1.msra.mxu0 0.0
        %4911 = vmatprep.subr.mxu0 0.0
        %4912 = vmatpush1.msra.mxu0 0.0
        %4913 = vmatprep.subr.mxu0 0.0
        %4914 = vmatpush1.msra.mxu0 0.0
        %4915 = vmatprep.subr.mxu0 0.0
        %4916 = vmatpush1.msra.mxu0 0.0
        %4917 = vmatprep.subr.mxu0 0.0
        %4918 = vmatpush1.msra.mxu0 0.0
        %4919 = vmatprep.subr.mxu0 0.0
        %4920 = vmatpush1.msra.mxu0 0.0
        %4921 = vmatprep.subr.mxu0 0.0
        %4922 = vmatpush1.msra.mxu0 0.0
        %4923 = vmatprep.subr.mxu0 0.0
        %4924 = vmatpush1.msra.mxu0 0.0
        %4925 = vmatprep.subr.mxu0 0.0
        %4926 = vmatpush1.msra.mxu0 0.0
        %4927 = vmatprep.subr.mxu0 0.0
        %4928 = vmatpush1.msra.mxu0 0.0
        %4929 = vmatprep.subr.mxu0 0.0
        %4930 = vmatpush1.msra.mxu0 0.0
        %4931 = vmatprep.subr.mxu0 0.0
        %4932 = vmatpush1.msra.mxu0 0.0
        %4933 = vmatprep.subr.mxu0 0.0
        %4934 = vmatpush1.msra.mxu0 0.0
        %4935 = vmatprep.subr.mxu0 0.0
        %4936 = vmatpush1.msra.mxu0 0.0
        %4937 = vmatprep.subr.mxu0 0.0
        %4938 = vmatpush1.msra.mxu0 0.0
        %4939 = vmatprep.subr.mxu0 0.0
        %4940 = vmatpush1.msra.mxu0 0.0
        %4941 = vmatprep.subr.mxu0 0.0
        %4942 = vmatpush1.msra.mxu0 0.0
        %4943 = vmatprep.subr.mxu0 0.0
        %4944 = vmatpush1.msra.mxu0 0.0
        %4945 = vmatprep.subr.mxu0 0.0
        %4946 = vmatpush1.msra.mxu0 0.0
        %4947 = vmatprep.subr.mxu0 0.0
        %4948 = vmatpush1.msra.mxu0 0.0
        %4949 = vmatprep.subr.mxu0 0.0
        %4950 = vmatpush1.msra.mxu0 0.0
        %4951 = vmatprep.subr.mxu0 0.0
        %4952 = vmatpush1.msra.mxu0 0.0
        %4953 = vmatprep.mubr.f32.mxu0 0.0
        %4954 = vmatmul.mubr.f32.gmra.mrb[0].mxu0 %v4887
        %v4955 = vpop.f32.mrb[0].mxu0
        %v4956 = vadd.f32 0.0, %v4955
        %v4957 = vpop.f32.mrb[0].mxu0
        %4958 = vdwg.mxu0
        %4959 = vrot.lane.b32.xlu0 %v3720, 124
        %v4960 = vpop.permute.xlu0 %4959
        %v4963 = vsel %vm1130, %v4426, 0
        %4965 = vmatprep.subr.mxu0 0.0
        %4966 = vmatpush1.msra.mxu0 %v4960
        %4967 = vmatprep.subr.mxu0 0.0
        %4968 = vmatpush1.msra.mxu0 0.0
        %4969 = vmatprep.subr.mxu0 0.0
        %4970 = vmatpush1.msra.mxu0 0.0
        %4971 = vmatprep.subr.mxu0 0.0
        %4972 = vmatpush1.msra.mxu0 0.0
        %4973 = vmatprep.subr.mxu0 0.0
        %4974 = vmatpush1.msra.mxu0 0.0
        %4975 = vmatprep.subr.mxu0 0.0
        %4976 = vmatpush1.msra.mxu0 0.0
        %4977 = vmatprep.subr.mxu0 0.0
        %4978 = vmatpush1.msra.mxu0 0.0
        %4979 = vmatprep.subr.mxu0 0.0
        %4980 = vmatpush1.msra.mxu0 0.0
        %4981 = vmatprep.subr.mxu0 0.0
        %4982 = vmatpush1.msra.mxu0 0.0
        %4983 = vmatprep.subr.mxu0 0.0
        %4984 = vmatpush1.msra.mxu0 0.0
        %4985 = vmatprep.subr.mxu0 0.0
        %4986 = vmatpush1.msra.mxu0 0.0
        %4987 = vmatprep.subr.mxu0 0.0
        %4988 = vmatpush1.msra.mxu0 0.0
        %4989 = vmatprep.subr.mxu0 0.0
        %4990 = vmatpush1.msra.mxu0 0.0
        %4991 = vmatprep.subr.mxu0 0.0
        %4992 = vmatpush1.msra.mxu0 0.0
        %4993 = vmatprep.subr.mxu0 0.0
        %4994 = vmatpush1.msra.mxu0 0.0
        %4995 = vmatprep.subr.mxu0 0.0
        %4996 = vmatpush1.msra.mxu0 0.0
        %4997 = vmatprep.subr.mxu0 0.0
        %4998 = vmatpush1.msra.mxu0 0.0
        %4999 = vmatprep.subr.mxu0 0.0
        %5000 = vmatpush1.msra.mxu0 0.0
        %5001 = vmatprep.subr.mxu0 0.0
        %5002 = vmatpush1.msra.mxu0 0.0
        %5003 = vmatprep.subr.mxu0 0.0
        %5004 = vmatpush1.msra.mxu0 0.0
        %5005 = vmatprep.subr.mxu0 0.0
        %5006 = vmatpush1.msra.mxu0 0.0
        %5007 = vmatprep.subr.mxu0 0.0
        %5008 = vmatpush1.msra.mxu0 0.0
        %5009 = vmatprep.subr.mxu0 0.0
        %5010 = vmatpush1.msra.mxu0 0.0
        %5011 = vmatprep.subr.mxu0 0.0
        %5012 = vmatpush1.msra.mxu0 0.0
        %5013 = vmatprep.subr.mxu0 0.0
        %5014 = vmatpush1.msra.mxu0 0.0
        %5015 = vmatprep.subr.mxu0 0.0
        %5016 = vmatpush1.msra.mxu0 0.0
        %5017 = vmatprep.subr.mxu0 0.0
        %5018 = vmatpush1.msra.mxu0 0.0
        %5019 = vmatprep.subr.mxu0 0.0
        %5020 = vmatpush1.msra.mxu0 0.0
        %5021 = vmatprep.subr.mxu0 0.0
        %5022 = vmatpush1.msra.mxu0 0.0
        %5023 = vmatprep.subr.mxu0 0.0
        %5024 = vmatpush1.msra.mxu0 0.0
        %5025 = vmatprep.subr.mxu0 0.0
        %5026 = vmatpush1.msra.mxu0 0.0
        %5027 = vmatprep.subr.mxu0 0.0
        %5028 = vmatpush1.msra.mxu0 0.0
        %5029 = vmatprep.mubr.f32.mxu0 0.0
        %5030 = vmatmul.mubr.f32.gmra.mrb[0].mxu0 %v4963
        %v5031 = vpop.f32.mrb[0].mxu0
        %v5032 = vadd.f32 0.0, %v5031
        %v5033 = vpop.f32.mrb[0].mxu0
        %5034 = vdwg.mxu0
        %v5035 = vstv %s3587
        %v5036 = vmul.f32 %v5035, %v4500
        %v5037 = vmul.f32 %v5035, %v4576
        %v5038 = vmul.f32 %v5035, %v4652
        %v5039 = vmul.f32 %v5035, %v4728
        %v5040 = vmul.f32 %v5035, %v4804
        %v5041 = vmul.f32 %v5035, %v4880
        %v5042 = vmul.f32 %v5035, %v4956
        %v5043 = vmul.f32 %v5035, %v5032
        %v5044 = vadd.f32 %v5036, %v3576
        %v5045 = vadd.f32 %v5037, %v3577
        %v5046 = vadd.f32 %v5038, %v3578
        %v5047 = vadd.f32 %v5039, %v3579
        %v5048 = vadd.f32 %v5040, %v3580
        %v5049 = vadd.f32 %v5041, %v3581
        %v5050 = vadd.f32 %v5042, %v3582
        %v5051 = vadd.f32 %v5043, %v3583
        %5052 = vst.msk [vmem:[%s364] sm:$0xff] %vm383, %v5044
        %5053 = vst.msk [vmem:[%s364 + $0x8] sm:$0xff] %vm383, %v5045
        %5054 = vst.msk [vmem:[%s364 + $0x10] sm:$0xff] %vm383, %v5046
        %5055 = vst.msk [vmem:[%s364 + $0x18] sm:$0xff] %vm383, %v5047
        %5056 = vst.msk [vmem:[%s364 + $0x20] sm:$0xff] %vm383, %v5048
        %5057 = vst.msk [vmem:[%s364 + $0x28] sm:$0xff] %vm383, %v5049
        %5058 = vst.msk [vmem:[%s364 + $0x30] sm:$0xff] %vm383, %v5050
        %5059 = vst.msk [vmem:[%s364 + $0x38] sm:$0xff] %vm383, %v5051
        %s5060 = sand.u32 %s208, 1
        %s5061 = scalar_lea.sflag [#allocation4], %s5060
        %s5062 = sand.u32 %s208, 1
        %s5063 = smul.addr %s5062, 64
        %s5064 = scalar_lea.vmem [#allocation10], %s5063
        // Predicated region
        $region69: #{tpu_custom_call.1} parent=51 // pred_check
          %p5065 = pneg %p218
        $region70: #{tpu_custom_call.1} parent=51 // pred_check_branch
          %5067 = sbr.rel (%p5065) target = $region72
        $region71: #{tpu_custom_call.1} parent=51 // pred_region
          %s5069 = ssub.s32 1024, 1024
          %5070 = vsyncadd %s5061, %s5069
          %s5071 = smul.addr %s27, 8
          %s5072 = smul.addr %s5071, 128
          %s5073 = scalar_lea.hbm %s8, %s5072
          %s5074 = sshll.u32 %s5064, 4
          %s5075 = int_to_ptr.vmem [resolvable:$true] %s5074
          %5080 = dma.vmem_to_hbm [thread:$0]  %s5075, 1024, %s5073, %s5061, 128, 128, 8
        $region72: #{tpu_custom_call.1} parent=51 // pred_fallthru
          _
      $region52: #{tpu_custom_call.1} parent=5 // pred_fallthru
        _
      %p5081 = scmp.le.s32.totalorder 2, %s22
      // Predicated region
      $region73: #{tpu_custom_call.1} parent=5 // pred_check
        %p5082 = pneg %p5081
      $region74: #{tpu_custom_call.1} parent=5 // pred_check_branch
        %5084 = sbr.rel (%p5082) target = $region76
      $region75: #{tpu_custom_call.1} parent=5 // pred_region
        %s5085 = ssub.s32 %s22, 2
        // Predicated region
        $region77: #{tpu_custom_call.1} parent=75 // pred_check
          %p5086 = pneg %p224
        $region78: #{tpu_custom_call.1} parent=75 // pred_check_branch
          %5088 = sbr.rel (%p5086) target = $region80
        $region79: #{tpu_custom_call.1} parent=75 // pred_region
          %s5089 = sand.u32 %s209, 1
          %s5090 = scalar_lea.sflag [#allocation4], %s5089
          %s5091 = sand.u32 %s209, 1
          %s5092 = smul.addr %s5091, 64
          %s5093 = scalar_lea.vmem [#allocation10], %s5092
          %5094 = dma.done %s5090, 1024
        $region80: #{tpu_custom_call.1} parent=75 // pred_fallthru
          _
      $region76: #{tpu_custom_call.1} parent=5 // pred_fallthru
        _
    $region6: #{tpu_custom_call.1} parent=1 // loop_footer
      %s26 = sadd.s32 1, %s22
    $region7: #{tpu_custom_call.1} parent=1 // loop_footer_branch
      %21 = sbr.rel target = $region3
    $region8: #{tpu_custom_call.1} parent=1 // loop_exit
      _
    %5095 = vsyncpa [#allocation3], 1
    %s5096 = scalar_lea.sflag [#allocation3], 1
    %5097 = vsyncpa %s5096, 1
    %5098 = vsyncpa [#allocation8], 1
    %5099 = vsyncpa [#allocation4], 1
    %s5100 = scalar_lea.sflag [#allocation4], 1
    %5101 = vsyncpa %s5100, 1
    %5102 = vsyncpa [#allocation5], 1
    %s5103 = scalar_lea.sflag [#allocation5], 1
    %5104 = vsyncpa %s5103, 1

</llo_original>
